<compile_context>
chip_gen: v6e
topology: v6e:2x2x1
jax: 0.10.0
libtpu: 0.0.40
codegen_flags: <defaults>
</compile_context>

<pallas_src>
import jax
import jax.numpy as jnp
from jax.experimental import pallas as pl
from jax.experimental.pallas import tpu as pltpu


# ----------------------------- model params ---------------------------------
# Shrunk (but structurally identical) dims, TPU-lane aligned.  The real module
# uses text_fc1_out = img_fc1_out = 2742; here 256.
MODEL_PARAMS = dict(
    text_in=768,
    img_in=4096,
    text_fc1_out=256,
    text_fc2_out=32,
    img_fc1_out=256,
    img_fc2_out=32,
    fusion_output_size=64,
)
BATCH = 2
OUT_LANES = 128  # lane-dense output slab; wrapper reads column 0


def _round_up(x, m):
    return (x + m - 1) // m * m


# --------------------------- small-param packing ------------------------------
def _pack_layout(mp):
    """Row/lane offsets for the single packed small-parameter buffer."""
    t1, t2 = mp["text_fc1_out"], mp["text_fc2_out"]
    i1, i2 = mp["img_fc1_out"], mp["img_fc2_out"]
    fo = mp["fusion_output_size"]
    assert t1 == i1, "packing assumes both fc1 layers share an output width"
    lanes = t1
    assert lanes % 128 == 0
    assert t2 + i2 + fo <= lanes and fo + 1 <= lanes
    r_wft = t1              # rows [0, t1)        : [w2t | w2v] side by side
    r_wfv = r_wft + t2      # rows [r_wft, r_wfv) : wft (t2, fo)
    r_b1t = r_wfv + i2      # rows [r_wfv, r_b1t) : wfv (i2, fo)
    r_b1v = r_b1t + 1       # row  r_b1t          : b1t (1, t1)
    r_bv = r_b1v + 1        # row  r_b1v          : b1v (1, i1)
    r_fc = r_bv + 1         # row  r_bv           : [b2t | b2v | bf]
    rows = _round_up(r_fc + 1, 8)  # row r_fc     : [wfc^T | bfc]
    return dict(lanes=lanes, rows=rows, r_wft=r_wft, r_wfv=r_wfv,
                r_b1t=r_b1t, r_b1v=r_b1v, r_bv=r_bv, r_fc=r_fc)


def pack_params(params, mp, layout):
    """Host-side: fold 15 tensors into 2 lane-dense buffers (1 bf16 + 1 f32)."""
    t1, t2 = mp["text_fc1_out"], mp["text_fc2_out"]
    i1, i2 = mp["img_fc1_out"], mp["img_fc2_out"]
    fo = mp["fusion_output_size"]
    L = layout
    # Big fc1 weights in bf16, stacked row-wise -> one ~2.4 MiB DMA.
    w1 = jnp.concatenate([params["w1t"], params["w1v"]], axis=0).astype(jnp.bfloat16)
    sp = jnp.zeros((L["rows"], L["lanes"]), jnp.float32)
    sp = sp.at[0:t1, 0:t2].set(params["w2t"])
    sp = sp.at[0:i1, t2:t2 + i2].set(params["w2v"])
    sp = sp.at[L["r_wft"]:L["r_wft"] + t2, 0:fo].set(params["wft"])
    sp = sp.at[L["r_wfv"]:L["r_wfv"] + i2, 0:fo].set(params["wfv"])
    sp = sp.at[L["r_b1t"], 0:t1].set(params["b1t"][0])
    sp = sp.at[L["r_b1v"], 0:i1].set(params["b1v"][0])
    sp = sp.at[L["r_bv"], 0:t2].set(params["b2t"][0])
    sp = sp.at[L["r_bv"], t2:t2 + i2].set(params["b2v"][0])
    sp = sp.at[L["r_bv"], t2 + i2:t2 + i2 + fo].set(params["bf"][0])
    sp = sp.at[L["r_fc"], 0:fo].set(params["wfc"][:, 0])
    sp = sp.at[L["r_fc"], fo].set(params["bfc"][0, 0])
    return w1, sp


# ------------------------------- kernel -------------------------------------
def make_kernel(mp, layout):
    t_in, i_in = mp["text_in"], mp["img_in"]
    t1, t2 = mp["text_fc1_out"], mp["text_fc2_out"]
    i1, i2 = mp["img_fc1_out"], mp["img_fc2_out"]
    fo = mp["fusion_output_size"]
    L = layout
    f32, bf16 = jnp.float32, jnp.bfloat16

    def kernel(txt_ref, img_ref, w1_ref, sp_ref, out_ref):
        # ---- unpack parameters with static slices ----
        w1t = w1_ref[0:t_in, :]                                    # (768, 256) bf16
        w1v = w1_ref[t_in:t_in + i_in, :]                          # (4096, 256) bf16
        w2t = sp_ref[0:t1, 0:t2]
        w2v = sp_ref[0:i1, t2:t2 + i2]
        wft = sp_ref[L["r_wft"]:L["r_wft"] + t2, 0:fo]
        wfv = sp_ref[L["r_wfv"]:L["r_wfv"] + i2, 0:fo]
        b1t = sp_ref[L["r_b1t"]:L["r_b1t"] + 1, 0:t1]
        b1v = sp_ref[L["r_b1v"]:L["r_b1v"] + 1, 0:i1]
        b2t = sp_ref[L["r_bv"]:L["r_bv"] + 1, 0:t2]
        b2v = sp_ref[L["r_bv"]:L["r_bv"] + 1, t2:t2 + i2]
        bfu = sp_ref[L["r_bv"]:L["r_bv"] + 1, t2 + i2:t2 + i2 + fo]
        wfc = sp_ref[L["r_fc"]:L["r_fc"] + 1, 0:fo]                # fc weight as row
        bfc = sp_ref[L["r_fc"]:L["r_fc"] + 1, fo:fo + 1]

        txt = txt_ref[...].astype(bf16)
        img = img_ref[...].astype(bf16)

        # ---- text branch: relu(fc2(relu(fc1(pooler_output)))) ----
        t = jnp.dot(txt, w1t, preferred_element_type=f32) + b1t
        t = jnp.maximum(t, 0.0)
        t = jnp.dot(t, w2t, preferred_element_type=f32) + b2t
        t = jnp.maximum(t, 0.0)

        # ---- vision branch: relu(fc2(relu(fc1(vgg_features)))) ----
        v = jnp.dot(img, w1v, preferred_element_type=f32) + b1v
        v = jnp.maximum(v, 0.0)
        v = jnp.dot(v, w2v, preferred_element_type=f32) + b2v
        v = jnp.maximum(v, 0.0)

        # ---- fusion: relu(cat([t, v]) @ Wf + bf), concat folded into 2 dots ----
        fused = (jnp.dot(t, wft, preferred_element_type=f32)
                 + jnp.dot(v, wfv, preferred_element_type=f32) + bfu)
        fused = jnp.maximum(fused, 0.0)

        # ---- final fc (64->1) as VPU mul + lane reduction, then sigmoid ----
        logit = jnp.sum(fused * wfc, axis=-1, keepdims=True) + bfc   # (TB, 1)
        prob = jax.nn.sigmoid(logit)
        # lane-dense output slab (unmasked stores); wrapper slices column 0
        out_ref[...] = jnp.broadcast_to(prob, out_ref.shape)

    return kernel


# ------------------------------- wrapper -------------------------------------
def text_concat_vision_forward(text_pooled, image_feat, params, mp=MODEL_PARAMS):
    B = text_pooled.shape[0]
    layout = _pack_layout(mp)
    w1, sp = pack_params(params, mp, layout)

    # Batch tiling over a "parallel" grid axis (weights resident across tiles).
    TB = min(64, _round_up(B, 8))
    B_pad = _round_up(B, TB)
    if B_pad != B:
        text_pooled = jnp.pad(text_pooled, ((0, B_pad - B), (0, 0)))
        image_feat = jnp.pad(image_feat, ((0, B_pad - B), (0, 0)))
    grid = (B_pad // TB,)

    t_in, i_in = mp["text_in"], mp["img_in"]
    t1, t2 = mp["text_fc1_out"], mp["text_fc2_out"]
    i1, i2 = mp["img_fc1_out"], mp["img_fc2_out"]
    fo = mp["fusion_output_size"]

    flops = 2 * B_pad * (t_in * t1 + t1 * t2 + i_in * i1 + i1 * i2
                         + t2 * fo + i2 * fo + fo)
    bytes_accessed = (text_pooled.size * 4 + image_feat.size * 4
                      + w1.size * 2 + sp.size * 4 + B_pad * OUT_LANES * 4)

    kernel = make_kernel(mp, layout)
    out = pl.pallas_call(
        kernel,
        out_shape=jax.ShapeDtypeStruct((B_pad, OUT_LANES), jnp.float32),
        grid=grid,
        in_specs=[
            pl.BlockSpec((TB, t_in), lambda i: (i, 0)),
            pl.BlockSpec((TB, i_in), lambda i: (i, 0)),
            pl.BlockSpec(w1.shape, lambda i: (0, 0)),   # weights stay resident
            pl.BlockSpec(sp.shape, lambda i: (0, 0)),
        ],
        out_specs=pl.BlockSpec((TB, OUT_LANES), lambda i: (i, 0)),
        compiler_params=pltpu.CompilerParams(
            dimension_semantics=("parallel",),
            vmem_limit_bytes=16 * 1024 * 1024,
        ),
        cost_estimate=pl.CostEstimate(
            flops=flops, transcendentals=B_pad, bytes_accessed=bytes_accessed),
    )(text_pooled, image_feat, w1, sp)

    # prediction = prediction.squeeze(-1); prediction.float()
    return out[:B, 0].astype(jnp.float32)


# --------------------------- parameter init ----------------------------------
def init_params(key, mp):
    ks = jax.random.split(key, 7)

    def linear(k, d_in, d_out):
        kw, kb = jax.random.split(k)
        scale = 1.0 / jnp.sqrt(jnp.float32(d_in))
        w = jax.random.uniform(kw, (d_in, d_out), jnp.float32, -scale, scale)
        b = jax.random.uniform(kb, (1, d_out), jnp.float32, -scale, scale)
        return w, b

    w1t, b1t = linear(ks[0], mp["text_in"], mp["text_fc1_out"])
    w2t, b2t = linear(ks[1], mp["text_fc1_out"], mp["text_fc2_out"])
    w1v, b1v = linear(ks[2], mp["img_in"], mp["img_fc1_out"])
    w2v, b2v = linear(ks[3], mp["img_fc1_out"], mp["img_fc2_out"])
    cat_dim = mp["text_fc2_out"] + mp["img_fc2_out"]
    wf, bf = linear(ks[4], cat_dim, mp["fusion_output_size"])
    wft = wf[: mp["text_fc2_out"], :]
    wfv = wf[mp["text_fc2_out"]:, :]
    wfc, bfc = linear(ks[5], mp["fusion_output_size"], 1)
    return dict(
        w1t=w1t, b1t=b1t, w2t=w2t, b2t=b2t,
        w1v=w1v, b1v=b1v, w2v=w2v, b2v=b2v,
        wft=wft, wfv=wfv, bf=bf, wfc=wfc, bfc=bfc,
    )


def reference_forward(text_pooled, image_feat, params):
    """Pure-JAX f32 reference (eval mode: dropout = identity)."""
    relu = jax.nn.relu
    t = relu(text_pooled @ params["w1t"] + params["b1t"])
    t = relu(t @ params["w2t"] + params["b2t"])
    v = relu(image_feat @ params["w1v"] + params["b1v"])
    v = relu(v @ params["w2v"] + params["b2v"])
    fused = relu(t @ params["wft"] + v @ params["wfv"] + params["bf"])
    logit = fused @ params["wfc"] + params["bfc"]
    return jax.nn.sigmoid(logit)[:, 0].astype(jnp.float32)


# --------------------------------- main --------------------------------------
if __name__ == "__main__":
    key = jax.random.PRNGKey(0)
    k_txt, k_img, k_par = jax.random.split(key, 3)

    mp = MODEL_PARAMS
    # Stand-ins for the frozen BERT pooler_output / VGG19 features.
    text_pooled = jax.random.normal(k_txt, (BATCH, mp["text_in"]), jnp.float32)
    image_feat = jax.random.normal(k_img, (BATCH, mp["img_in"]), jnp.float32)
    params = init_params(k_par, mp)

    pred = text_concat_vision_forward(text_pooled, image_feat, params)
    pred = jax.block_until_ready(pred)
    ref = reference_forward(text_pooled, image_feat, params)

    assert pred.shape == (BATCH,), pred.shape
    assert pred.dtype == jnp.float32, pred.dtype
    assert bool(jnp.all((pred >= 0.0) & (pred <= 1.0)))
    assert bool(jnp.allclose(pred, ref, atol=5e-2, rtol=5e-2)), (pred, ref)
    print("KERNEL_OK")
</pallas_src>

<mosaic_0001>
module attributes {stable_mosaic.version = 11 : i64} {
  func.func @kernel(%arg0: i32, %arg1: memref<8x768xf32, #tpu.memory_space<vmem>>, %arg2: memref<8x4096xf32, #tpu.memory_space<vmem>>, %arg3: memref<4864x256xbf16, #tpu.memory_space<vmem>>, %arg4: memref<328x256xf32, #tpu.memory_space<vmem>>, %arg5: memref<8x128xf32, #tpu.memory_space<vmem>>) attributes {dimension_semantics = [#tpu.dimension_semantics<parallel>], iteration_bounds = array<i64: 1>, scalar_prefetch = 0 : i64, scratch_operands = 0 : i64, tpu.core_type = #tpu.core_type<tc>, window_params = [{transform_indices = @transform_0, window_bounds = array<i64: 8, 768>}, {transform_indices = @transform_1, window_bounds = array<i64: 8, 4096>}, {pipeline_mode = #tpu.pipeline_mode<synchronous>, transform_indices = @transform_2, window_bounds = array<i64: 4864, 256>}, {pipeline_mode = #tpu.pipeline_mode<synchronous>, transform_indices = @transform_3, window_bounds = array<i64: 328, 256>}, {transform_indices = @transform_4, window_bounds = array<i64: 8, 128>}]} {
    %c0 = arith.constant 0 : index
    %c0_0 = arith.constant 0 : index
    %0 = vector.load %arg3[%c0, %c0_0] : memref<4864x256xbf16, #tpu.memory_space<vmem>>, vector<768x256xbf16>
    %c768 = arith.constant 768 : index
    %c0_1 = arith.constant 0 : index
    %1 = vector.load %arg3[%c768, %c0_1] : memref<4864x256xbf16, #tpu.memory_space<vmem>>, vector<4096x256xbf16>
    %c0_2 = arith.constant 0 : index
    %c0_3 = arith.constant 0 : index
    %2 = vector.load %arg4[%c0_2, %c0_3] : memref<328x256xf32, #tpu.memory_space<vmem>>, vector<256x32xf32>
    %c0_4 = arith.constant 0 : index
    %c32 = arith.constant 32 : index
    %3 = vector.load %arg4[%c0_4, %c32] : memref<328x256xf32, #tpu.memory_space<vmem>>, vector<256x32xf32>
    %c256 = arith.constant 256 : index
    %c0_5 = arith.constant 0 : index
    %4 = vector.load %arg4[%c256, %c0_5] : memref<328x256xf32, #tpu.memory_space<vmem>>, vector<32x64xf32>
    %c288 = arith.constant 288 : index
    %c0_6 = arith.constant 0 : index
    %5 = vector.load %arg4[%c288, %c0_6] : memref<328x256xf32, #tpu.memory_space<vmem>>, vector<32x64xf32>
    %c320 = arith.constant 320 : index
    %c0_7 = arith.constant 0 : index
    %6 = vector.load %arg4[%c320, %c0_7] : memref<328x256xf32, #tpu.memory_space<vmem>>, vector<1x256xf32>
    %c321 = arith.constant 321 : index
    %c0_8 = arith.constant 0 : index
    %7 = vector.load %arg4[%c321, %c0_8] : memref<328x256xf32, #tpu.memory_space<vmem>>, vector<1x256xf32>
    %c322 = arith.constant 322 : index
    %c0_9 = arith.constant 0 : index
    %8 = vector.load %arg4[%c322, %c0_9] : memref<328x256xf32, #tpu.memory_space<vmem>>, vector<1x32xf32>
    %c322_10 = arith.constant 322 : index
    %c32_11 = arith.constant 32 : index
    %9 = vector.load %arg4[%c322_10, %c32_11] : memref<328x256xf32, #tpu.memory_space<vmem>>, vector<1x32xf32>
    %c322_12 = arith.constant 322 : index
    %c64 = arith.constant 64 : index
    %10 = vector.load %arg4[%c322_12, %c64] : memref<328x256xf32, #tpu.memory_space<vmem>>, vector<1x64xf32>
    %c323 = arith.constant 323 : index
    %c0_13 = arith.constant 0 : index
    %11 = vector.load %arg4[%c323, %c0_13] : memref<328x256xf32, #tpu.memory_space<vmem>>, vector<1x64xf32>
    %c323_14 = arith.constant 323 : index
    %c64_15 = arith.constant 64 : index
    %12 = vector.load %arg4[%c323_14, %c64_15] : memref<328x256xf32, #tpu.memory_space<vmem>>, vector<1x1xf32>
    %c0_16 = arith.constant 0 : index
    %c0_17 = arith.constant 0 : index
    %13 = vector.load %arg1[%c0_16, %c0_17] : memref<8x768xf32, #tpu.memory_space<vmem>>, vector<8x768xf32>
    %14 = arith.truncf %13 : vector<8x768xf32> to vector<8x768xbf16>
    %c0_18 = arith.constant 0 : index
    %c0_19 = arith.constant 0 : index
    %15 = vector.load %arg2[%c0_18, %c0_19] : memref<8x4096xf32, #tpu.memory_space<vmem>>, vector<8x4096xf32>
    %16 = arith.truncf %15 : vector<8x4096xf32> to vector<8x4096xbf16>
    %cst = arith.constant dense<0.000000e+00> : vector<8x256xf32>
    %17 = tpu.matmul %14, %0, %cst {dimension_numbers = #tpu.dot_dimension_numbers<[1], [0], [0], [1], [0, 0, 1, 1], [], []>} : vector<8x768xbf16>, vector<768x256xbf16>, vector<8x256xf32> -> vector<8x256xf32>
    %18 = vector.broadcast %6 : vector<1x256xf32> to vector<8x256xf32>
    %19 = arith.addf %17, %18 : vector<8x256xf32>
    %cst_20 = arith.constant 0.000000e+00 : f32
    %20 = vector.broadcast %cst_20 : f32 to vector<8x256xf32>
    %21 = arith.maximumf %19, %20 : vector<8x256xf32>
    %cst_21 = arith.constant dense<0.000000e+00> : vector<8x32xf32>
    %22 = tpu.matmul %21, %2, %cst_21 {dimension_numbers = #tpu.dot_dimension_numbers<[1], [0], [0], [1], [0, 0, 1, 1], [], []>} : vector<8x256xf32>, vector<256x32xf32>, vector<8x32xf32> -> vector<8x32xf32>
    %23 = vector.broadcast %8 : vector<1x32xf32> to vector<8x32xf32>
    %24 = arith.addf %22, %23 : vector<8x32xf32>
    %cst_22 = arith.constant 0.000000e+00 : f32
    %25 = vector.broadcast %cst_22 : f32 to vector<8x32xf32>
    %26 = arith.maximumf %24, %25 : vector<8x32xf32>
    %cst_23 = arith.constant dense<0.000000e+00> : vector<8x256xf32>
    %27 = tpu.matmul %16, %1, %cst_23 {dimension_numbers = #tpu.dot_dimension_numbers<[1], [0], [0], [1], [0, 0, 1, 1], [], []>} : vector<8x4096xbf16>, vector<4096x256xbf16>, vector<8x256xf32> -> vector<8x256xf32>
    %28 = vector.broadcast %7 : vector<1x256xf32> to vector<8x256xf32>
    %29 = arith.addf %27, %28 : vector<8x256xf32>
    %cst_24 = arith.constant 0.000000e+00 : f32
    %30 = vector.broadcast %cst_24 : f32 to vector<8x256xf32>
    %31 = arith.maximumf %29, %30 : vector<8x256xf32>
    %cst_25 = arith.constant dense<0.000000e+00> : vector<8x32xf32>
    %32 = tpu.matmul %31, %3, %cst_25 {dimension_numbers = #tpu.dot_dimension_numbers<[1], [0], [0], [1], [0, 0, 1, 1], [], []>} : vector<8x256xf32>, vector<256x32xf32>, vector<8x32xf32> -> vector<8x32xf32>
    %33 = vector.broadcast %9 : vector<1x32xf32> to vector<8x32xf32>
    %34 = arith.addf %32, %33 : vector<8x32xf32>
    %cst_26 = arith.constant 0.000000e+00 : f32
    %35 = vector.broadcast %cst_26 : f32 to vector<8x32xf32>
    %36 = arith.maximumf %34, %35 : vector<8x32xf32>
    %cst_27 = arith.constant dense<0.000000e+00> : vector<8x64xf32>
    %37 = tpu.matmul %26, %4, %cst_27 {dimension_numbers = #tpu.dot_dimension_numbers<[1], [0], [0], [1], [0, 0, 1, 1], [], []>} : vector<8x32xf32>, vector<32x64xf32>, vector<8x64xf32> -> vector<8x64xf32>
    %cst_28 = arith.constant dense<0.000000e+00> : vector<8x64xf32>
    %38 = tpu.matmul %36, %5, %cst_28 {dimension_numbers = #tpu.dot_dimension_numbers<[1], [0], [0], [1], [0, 0, 1, 1], [], []>} : vector<8x32xf32>, vector<32x64xf32>, vector<8x64xf32> -> vector<8x64xf32>
    %39 = arith.addf %37, %38 : vector<8x64xf32>
    %40 = vector.broadcast %10 : vector<1x64xf32> to vector<8x64xf32>
    %41 = arith.addf %39, %40 : vector<8x64xf32>
    %cst_29 = arith.constant 0.000000e+00 : f32
    %42 = vector.broadcast %cst_29 : f32 to vector<8x64xf32>
    %43 = arith.maximumf %41, %42 : vector<8x64xf32>
    %44 = vector.broadcast %11 : vector<1x64xf32> to vector<8x64xf32>
    %45 = arith.mulf %43, %44 : vector<8x64xf32>
    %cst_30 = arith.constant dense<0.000000e+00> : vector<8xf32>
    %46 = vector.multi_reduction <add>, %45, %cst_30 [1] : vector<8x64xf32> to vector<8xf32>
    %47 = vector.shape_cast %46 : vector<8xf32> to vector<8x1xf32>
    %48 = vector.broadcast %12 : vector<1x1xf32> to vector<8x1xf32>
    %49 = arith.addf %47, %48 : vector<8x1xf32>
    %50 = arith.negf %49 : vector<8x1xf32>
    %51 = math.exp %50 : vector<8x1xf32>
    %cst_31 = arith.constant 1.000000e+00 : f32
    %52 = vector.broadcast %cst_31 : f32 to vector<8x1xf32>
    %53 = arith.addf %52, %51 : vector<8x1xf32>
    %54 = arith.divf %52, %53 : vector<8x1xf32>
    %55 = vector.shape_cast %54 : vector<8x1xf32> to vector<8x1xf32>
    %56 = vector.broadcast %55 : vector<8x1xf32> to vector<8x128xf32>
    %c0_32 = arith.constant 0 : index
    %c0_33 = arith.constant 0 : index
    %57 = vector.load %arg5[%c0_32, %c0_33] : memref<8x128xf32, #tpu.memory_space<vmem>>, vector<8x128xf32>
    tpu.vector_store %arg5[%c0_32, %c0_33], %56 {strides = array<i32>} : memref<8x128xf32, #tpu.memory_space<vmem>>, vector<8x128xf32>,
    return
  }
  func.func @transform_0(%arg0: i32) -> (i32, i32) {
    %c0_i32 = arith.constant 0 : i32
    %c0_i32_0 = arith.constant 0 : i32
    return %arg0, %c0_i32 : i32, i32
  }
  func.func @transform_1(%arg0: i32) -> (i32, i32) {
    %c0_i32 = arith.constant 0 : i32
    %c0_i32_0 = arith.constant 0 : i32
    return %arg0, %c0_i32 : i32, i32
  }
  func.func @transform_2(%arg0: i32) -> (i32, i32) {
    %c0_i32 = arith.constant 0 : i32
    %c0_i32_0 = arith.constant 0 : i32
    %c0_i32_1 = arith.constant 0 : i32
    return %c0_i32, %c0_i32_0 : i32, i32
  }
  func.func @transform_3(%arg0: i32) -> (i32, i32) {
    %c0_i32 = arith.constant 0 : i32
    %c0_i32_0 = arith.constant 0 : i32
    %c0_i32_1 = arith.constant 0 : i32
    return %c0_i32, %c0_i32_0 : i32, i32
  }
  func.func @transform_4(%arg0: i32) -> (i32, i32) {
    %c0_i32 = arith.constant 0 : i32
    %c0_i32_0 = arith.constant 0 : i32
    return %arg0, %c0_i32 : i32, i32
  }
}

</mosaic_0001>

<llo_original>
// kernel: tpu_custom_call.1
$region0: #{tpu_custom_call.1}
  #allocation0 [shape = 'u32[]', space=smem, size = 0x4, offset = 0x4, fixed_abs, tag = 'smem constant byte address 0x4 - core index']
  #allocation1 [shape = 'u32[144,128]{1,0:T(1,128)}', space=vmem, size = 0x12000, scoped, tag = 'internal scratch']
  %s0 = inlined_call_operand.hbm [shape: f32[8,768], index: 0, kind: input, shape index: {}]
  %s1 = inlined_call_operand.hbm [shape: f32[8,4096], index: 1, kind: input, shape index: {}]
  %s2 = inlined_call_operand.hbm [shape: bf16[4864,256], index: 2, kind: input, shape index: {}]
  %s3 = inlined_call_operand.hbm [shape: f32[328,256], index: 3, kind: input, shape index: {}]
  %s4 = inlined_call_operand.hbm [shape: f32[8,128], index: 4, kind: output, shape index: {}]
  %s5 = sld [smem:[#allocation0]]
  $region42: #{tpu_custom_call.1} parent=0
    _
  %s7 = ssub.s32 1, %s5
  %s8 = scalar_select 0, %s7, %s5
  $region1: #{tpu_custom_call.1} parent=0
    #allocation2 [shape = 'u8[24576]{0}', space=vmem, size = 0x6000, scoped, tag = 'input window, operand 0, single buffered']
    #allocation3 [shape = 's32[1]{0}', space=sflag, size = 0x4, scoped, tag = 'scoped memory for tpu_custom_call.1']
    #allocation4 [shape = 's32[1]{0}', space=sflag, size = 0x4, scoped, tag = 'scoped memory for tpu_custom_call.1']
    #allocation5 [shape = 'u8[131072]{0}', space=vmem, size = 0x20000, scoped, tag = 'input window, operand 1, single buffered']
    #allocation6 [shape = 's32[1]{0}', space=sflag, size = 0x4, scoped, tag = 'scoped memory for tpu_custom_call.1']
    #allocation7 [shape = 'u8[2490368]{0}', space=vmem, size = 0x260000, scoped, tag = 'input window, operand 2, single buffered']
    #allocation8 [shape = 'u8[335872]{0}', space=vmem, size = 0x52000, scoped, tag = 'input window, operand 3, single buffered']
    #allocation9 [shape = 's32[1]{0}', space=sflag, size = 0x4, scoped, tag = 'scoped memory for tpu_custom_call.1']
    #allocation10 [shape = 'u8[4096]{0}', space=vmem, size = 0x1000, scoped, tag = 'output window, operand 0, single buffered']
    %9 = vsyncpa [#allocation3], 0
    %10 = vsyncpa [#allocation6], 0
    %11 = vsyncpa [#allocation9], 0
    %12 = vsyncpa [#allocation4], 0
    // Predicated region
    $region2: #{tpu_custom_call.1} parent=1 // pred_check
      _
    $region3: #{tpu_custom_call.1} parent=1 // pred_check_branch
      %14 = sbr.rel (0) target = $region5
    $region4: #{tpu_custom_call.1} parent=1 // pred_region
      %s16 = ssub.s32 768, 768
      %17 = vsyncadd [#allocation3], %s16
      %s19 = sshll.u32 [#allocation2], 4
      %s20 = int_to_ptr.vmem [resolvable:$true] %s19
      %22 = dma.hbm_to_vmem [thread:$0]  %s0, 768, %s20, [#allocation3]
    $region5: #{tpu_custom_call.1} parent=1 // pred_fallthru
      _
    // Predicated region
    $region6: #{tpu_custom_call.1} parent=1 // pred_check
      _
    $region7: #{tpu_custom_call.1} parent=1 // pred_check_branch
      %24 = sbr.rel (0) target = $region9
    $region8: #{tpu_custom_call.1} parent=1 // pred_region
      %s26 = ssub.s32 4096, 4096
      %27 = vsyncadd [#allocation6], %s26
      %s29 = sshll.u32 [#allocation5], 4
      %s30 = int_to_ptr.vmem [resolvable:$true] %s29
      %32 = dma.hbm_to_vmem [thread:$0]  %s1, 4096, %s30, [#allocation6]
    $region9: #{tpu_custom_call.1} parent=1 // pred_fallthru
      _
    // Predicated region
    $region10: #{tpu_custom_call.1} parent=1 // pred_check
      _
    $region11: #{tpu_custom_call.1} parent=1 // pred_check_branch
      %34 = sbr.rel (0) target = $region13
    $region12: #{tpu_custom_call.1} parent=1 // pred_region
      %s36 = ssub.s32 77824, 77824
      %37 = vsyncadd [#allocation6], %s36
      %s38 = sshll.u32 [#allocation7], 4
      %s39 = int_to_ptr.vmem [resolvable:$true] %s38
      %44 = dma.hbm_to_vmem [thread:$0]  %s2, 77824, %s39, [#allocation6], 128, 128, 8
    $region13: #{tpu_custom_call.1} parent=1 // pred_fallthru
      _
    // Predicated region
    $region14: #{tpu_custom_call.1} parent=1 // pred_check
      _
    $region15: #{tpu_custom_call.1} parent=1 // pred_check_branch
      %46 = sbr.rel (0) target = $region17
    $region16: #{tpu_custom_call.1} parent=1 // pred_region
      %s48 = ssub.s32 10496, 10496
      %49 = vsyncadd [#allocation9], %s48
      %s50 = sshll.u32 [#allocation8], 4
      %s51 = int_to_ptr.vmem [resolvable:$true] %s50
      %56 = dma.hbm_to_vmem [thread:$0]  %s3, 10496, %s51, [#allocation9], 256, 256, 16
    $region17: #{tpu_custom_call.1} parent=1 // pred_fallthru
      _
    // Predicated region
    $region18: #{tpu_custom_call.1} parent=1 // pred_check
      _
    $region19: #{tpu_custom_call.1} parent=1 // pred_check_branch
      %58 = sbr.rel (0) target = $region21
    $region20: #{tpu_custom_call.1} parent=1 // pred_region
      %59 = dma.done [#allocation3], 768
    $region21: #{tpu_custom_call.1} parent=1 // pred_fallthru
      _
    // Predicated region
    $region22: #{tpu_custom_call.1} parent=1 // pred_check
      _
    $region23: #{tpu_custom_call.1} parent=1 // pred_check_branch
      %61 = sbr.rel (0) target = $region25
    $region24: #{tpu_custom_call.1} parent=1 // pred_region
      %62 = dma.done [#allocation6], 4096
    $region25: #{tpu_custom_call.1} parent=1 // pred_fallthru
      _
    // Predicated region
    $region26: #{tpu_custom_call.1} parent=1 // pred_check
      _
    $region27: #{tpu_custom_call.1} parent=1 // pred_check_branch
      %64 = sbr.rel (0) target = $region29
    $region28: #{tpu_custom_call.1} parent=1 // pred_region
      %65 = dma.done [#allocation6], 77824
    $region29: #{tpu_custom_call.1} parent=1 // pred_fallthru
      _
    // Predicated region
    $region30: #{tpu_custom_call.1} parent=1 // pred_check
      _
    $region31: #{tpu_custom_call.1} parent=1 // pred_check_branch
      %67 = sbr.rel (0) target = $region33
    $region32: #{tpu_custom_call.1} parent=1 // pred_region
      %68 = dma.done [#allocation9], 10496
    $region33: #{tpu_custom_call.1} parent=1 // pred_fallthru
      _
    %v69 = vld [vmem:[#allocation7] sm:$0xff]
    %v70 = vld [vmem:[#allocation7 + $0x8] sm:$0xff]
    %v71 = vld [vmem:[#allocation7 + $0x10] sm:$0xff]
    %v72 = vld [vmem:[#allocation7 + $0x18] sm:$0xff]
    %v73 = vld [vmem:[#allocation7 + $0x20] sm:$0xff]
    %v74 = vld [vmem:[#allocation7 + $0x28] sm:$0xff]
    %v75 = vld [vmem:[#allocation7 + $0x30] sm:$0xff]
    %v76 = vld [vmem:[#allocation7 + $0x38] sm:$0xff]
    %v77 = vld [vmem:[#allocation7 + $0x40] sm:$0xff]
    %v78 = vld [vmem:[#allocation7 + $0x48] sm:$0xff]
    %v79 = vld [vmem:[#allocation7 + $0x50] sm:$0xff]
    %v80 = vld [vmem:[#allocation7 + $0x58] sm:$0xff]
    %v81 = vld [vmem:[#allocation7 + $0x60] sm:$0xff]
    %v82 = vld [vmem:[#allocation7 + $0x68] sm:$0xff]
    %v83 = vld [vmem:[#allocation7 + $0x70] sm:$0xff]
    %v84 = vld [vmem:[#allocation7 + $0x78] sm:$0xff]
    %v85 = vld [vmem:[#allocation7 + $0x80] sm:$0xff]
    %v86 = vld [vmem:[#allocation7 + $0x88] sm:$0xff]
    %v87 = vld [vmem:[#allocation7 + $0x90] sm:$0xff]
    %v88 = vld [vmem:[#allocation7 + $0x98] sm:$0xff]
    %v89 = vld [vmem:[#allocation7 + $0xa0] sm:$0xff]
    %v90 = vld [vmem:[#allocation7 + $0xa8] sm:$0xff]
    %v91 = vld [vmem:[#allocation7 + $0xb0] sm:$0xff]
    %v92 = vld [vmem:[#allocation7 + $0xb8] sm:$0xff]
    %v93 = vld [vmem:[#allocation7 + $0xc0] sm:$0xff]
    %v94 = vld [vmem:[#allocation7 + $0xc8] sm:$0xff]
    %v95 = vld [vmem:[#allocation7 + $0xd0] sm:$0xff]
    %v96 = vld [vmem:[#allocation7 + $0xd8] sm:$0xff]
    %v97 = vld [vmem:[#allocation7 + $0xe0] sm:$0xff]
    %v98 = vld [vmem:[#allocation7 + $0xe8] sm:$0xff]
    %v99 = vld [vmem:[#allocation7 + $0xf0] sm:$0xff]
    %v100 = vld [vmem:[#allocation7 + $0xf8] sm:$0xff]
    %v101 = vld [vmem:[#allocation7 + $0x100] sm:$0xff]
    %v102 = vld [vmem:[#allocation7 + $0x108] sm:$0xff]
    %v103 = vld [vmem:[#allocation7 + $0x110] sm:$0xff]
    %v104 = vld [vmem:[#allocation7 + $0x118] sm:$0xff]
    %v105 = vld [vmem:[#allocation7 + $0x120] sm:$0xff]
    %v106 = vld [vmem:[#allocation7 + $0x128] sm:$0xff]
    %v107 = vld [vmem:[#allocation7 + $0x130] sm:$0xff]
    %v108 = vld [vmem:[#allocation7 + $0x138] sm:$0xff]
    %v109 = vld [vmem:[#allocation7 + $0x140] sm:$0xff]
    %v110 = vld [vmem:[#allocation7 + $0x148] sm:$0xff]
    %v111 = vld [vmem:[#allocation7 + $0x150] sm:$0xff]
    %v112 = vld [vmem:[#allocation7 + $0x158] sm:$0xff]
    %v113 = vld [vmem:[#allocation7 + $0x160] sm:$0xff]
    %v114 = vld [vmem:[#allocation7 + $0x168] sm:$0xff]
    %v115 = vld [vmem:[#allocation7 + $0x170] sm:$0xff]
    %v116 = vld [vmem:[#allocation7 + $0x178] sm:$0xff]
    %v117 = vld [vmem:[#allocation7 + $0x180] sm:$0xff]
    %v118 = vld [vmem:[#allocation7 + $0x188] sm:$0xff]
    %v119 = vld [vmem:[#allocation7 + $0x190] sm:$0xff]
    %v120 = vld [vmem:[#allocation7 + $0x198] sm:$0xff]
    %v121 = vld [vmem:[#allocation7 + $0x1a0] sm:$0xff]
    %v122 = vld [vmem:[#allocation7 + $0x1a8] sm:$0xff]
    %v123 = vld [vmem:[#allocation7 + $0x1b0] sm:$0xff]
    %v124 = vld [vmem:[#allocation7 + $0x1b8] sm:$0xff]
    %v125 = vld [vmem:[#allocation7 + $0x1c0] sm:$0xff]
    %v126 = vld [vmem:[#allocation7 + $0x1c8] sm:$0xff]
    %v127 = vld [vmem:[#allocation7 + $0x1d0] sm:$0xff]
    %v128 = vld [vmem:[#allocation7 + $0x1d8] sm:$0xff]
    %v129 = vld [vmem:[#allocation7 + $0x1e0] sm:$0xff]
    %v130 = vld [vmem:[#allocation7 + $0x1e8] sm:$0xff]
    %v131 = vld [vmem:[#allocation7 + $0x1f0] sm:$0xff]
    %v132 = vld [vmem:[#allocation7 + $0x1f8] sm:$0xff]
    %v133 = vld [vmem:[#allocation7 + $0x200] sm:$0xff]
    %v134 = vld [vmem:[#allocation7 + $0x208] sm:$0xff]
    %v135 = vld [vmem:[#allocation7 + $0x210] sm:$0xff]
    %v136 = vld [vmem:[#allocation7 + $0x218] sm:$0xff]
    %v137 = vld [vmem:[#allocation7 + $0x220] sm:$0xff]
    %v138 = vld [vmem:[#allocation7 + $0x228] sm:$0xff]
    %v139 = vld [vmem:[#allocation7 + $0x230] sm:$0xff]
    %v140 = vld [vmem:[#allocation7 + $0x238] sm:$0xff]
    %v141 = vld [vmem:[#allocation7 + $0x240] sm:$0xff]
    %v142 = vld [vmem:[#allocation7 + $0x248] sm:$0xff]
    %v143 = vld [vmem:[#allocation7 + $0x250] sm:$0xff]
    %v144 = vld [vmem:[#allocation7 + $0x258] sm:$0xff]
    %v145 = vld [vmem:[#allocation7 + $0x260] sm:$0xff]
    %v146 = vld [vmem:[#allocation7 + $0x268] sm:$0xff]
    %v147 = vld [vmem:[#allocation7 + $0x270] sm:$0xff]
    %v148 = vld [vmem:[#allocation7 + $0x278] sm:$0xff]
    %v149 = vld [vmem:[#allocation7 + $0x280] sm:$0xff]
    %v150 = vld [vmem:[#allocation7 + $0x288] sm:$0xff]
    %v151 = vld [vmem:[#allocation7 + $0x290] sm:$0xff]
    %v152 = vld [vmem:[#allocation7 + $0x298] sm:$0xff]
    %v153 = vld [vmem:[#allocation7 + $0x2a0] sm:$0xff]
    %v154 = vld [vmem:[#allocation7 + $0x2a8] sm:$0xff]
    %v155 = vld [vmem:[#allocation7 + $0x2b0] sm:$0xff]
    %v156 = vld [vmem:[#allocation7 + $0x2b8] sm:$0xff]
    %v157 = vld [vmem:[#allocation7 + $0x2c0] sm:$0xff]
    %v158 = vld [vmem:[#allocation7 + $0x2c8] sm:$0xff]
    %v159 = vld [vmem:[#allocation7 + $0x2d0] sm:$0xff]
    %v160 = vld [vmem:[#allocation7 + $0x2d8] sm:$0xff]
    %v161 = vld [vmem:[#allocation7 + $0x2e0] sm:$0xff]
    %v162 = vld [vmem:[#allocation7 + $0x2e8] sm:$0xff]
    %v163 = vld [vmem:[#allocation7 + $0x2f0] sm:$0xff]
    %v164 = vld [vmem:[#allocation7 + $0x2f8] sm:$0xff]
    %v165 = vld [vmem:[#allocation7 + $0x300] sm:$0xff]
    %v166 = vld [vmem:[#allocation7 + $0x308] sm:$0xff]
    %v167 = vld [vmem:[#allocation7 + $0x310] sm:$0xff]
    %v168 = vld [vmem:[#allocation7 + $0x318] sm:$0xff]
    %v169 = vld [vmem:[#allocation7 + $0x320] sm:$0xff]
    %v170 = vld [vmem:[#allocation7 + $0x328] sm:$0xff]
    %v171 = vld [vmem:[#allocation7 + $0x330] sm:$0xff]
    %v172 = vld [vmem:[#allocation7 + $0x338] sm:$0xff]
    %v173 = vld [vmem:[#allocation7 + $0x340] sm:$0xff]
    %v174 = vld [vmem:[#allocation7 + $0x348] sm:$0xff]
    %v175 = vld [vmem:[#allocation7 + $0x350] sm:$0xff]
    %v176 = vld [vmem:[#allocation7 + $0x358] sm:$0xff]
    %v177 = vld [vmem:[#allocation7 + $0x360] sm:$0xff]
    %v178 = vld [vmem:[#allocation7 + $0x368] sm:$0xff]
    %v179 = vld [vmem:[#allocation7 + $0x370] sm:$0xff]
    %v180 = vld [vmem:[#allocation7 + $0x378] sm:$0xff]
    %v181 = vld [vmem:[#allocation7 + $0x380] sm:$0xff]
    %v182 = vld [vmem:[#allocation7 + $0x388] sm:$0xff]
    %v183 = vld [vmem:[#allocation7 + $0x390] sm:$0xff]
    %v184 = vld [vmem:[#allocation7 + $0x398] sm:$0xff]
    %v185 = vld [vmem:[#allocation7 + $0x3a0] sm:$0xff]
    %v186 = vld [vmem:[#allocation7 + $0x3a8] sm:$0xff]
    %v187 = vld [vmem:[#allocation7 + $0x3b0] sm:$0xff]
    %v188 = vld [vmem:[#allocation7 + $0x3b8] sm:$0xff]
    %v189 = vld [vmem:[#allocation7 + $0x3c0] sm:$0xff]
    %v190 = vld [vmem:[#allocation7 + $0x3c8] sm:$0xff]
    %v191 = vld [vmem:[#allocation7 + $0x3d0] sm:$0xff]
    %v192 = vld [vmem:[#allocation7 + $0x3d8] sm:$0xff]
    %v193 = vld [vmem:[#allocation7 + $0x3e0] sm:$0xff]
    %v194 = vld [vmem:[#allocation7 + $0x3e8] sm:$0xff]
    %v195 = vld [vmem:[#allocation7 + $0x3f0] sm:$0xff]
    %v196 = vld [vmem:[#allocation7 + $0x3f8] sm:$0xff]
    %v197 = vld [vmem:[#allocation7 + $0x400] sm:$0xff]
    %v198 = vld [vmem:[#allocation7 + $0x408] sm:$0xff]
    %v199 = vld [vmem:[#allocation7 + $0x410] sm:$0xff]
    %v200 = vld [vmem:[#allocation7 + $0x418] sm:$0xff]
    %v201 = vld [vmem:[#allocation7 + $0x420] sm:$0xff]
    %v202 = vld [vmem:[#allocation7 + $0x428] sm:$0xff]
    %v203 = vld [vmem:[#allocation7 + $0x430] sm:$0xff]
    %v204 = vld [vmem:[#allocation7 + $0x438] sm:$0xff]
    %v205 = vld [vmem:[#allocation7 + $0x440] sm:$0xff]
    %v206 = vld [vmem:[#allocation7 + $0x448] sm:$0xff]
    %v207 = vld [vmem:[#allocation7 + $0x450] sm:$0xff]
    %v208 = vld [vmem:[#allocation7 + $0x458] sm:$0xff]
    %v209 = vld [vmem:[#allocation7 + $0x460] sm:$0xff]
    %v210 = vld [vmem:[#allocation7 + $0x468] sm:$0xff]
    %v211 = vld [vmem:[#allocation7 + $0x470] sm:$0xff]
    %v212 = vld [vmem:[#allocation7 + $0x478] sm:$0xff]
    %v213 = vld [vmem:[#allocation7 + $0x480] sm:$0xff]
    %v214 = vld [vmem:[#allocation7 + $0x488] sm:$0xff]
    %v215 = vld [vmem:[#allocation7 + $0x490] sm:$0xff]
    %v216 = vld [vmem:[#allocation7 + $0x498] sm:$0xff]
    %v217 = vld [vmem:[#allocation7 + $0x4a0] sm:$0xff]
    %v218 = vld [vmem:[#allocation7 + $0x4a8] sm:$0xff]
    %v219 = vld [vmem:[#allocation7 + $0x4b0] sm:$0xff]
    %v220 = vld [vmem:[#allocation7 + $0x4b8] sm:$0xff]
    %v221 = vld [vmem:[#allocation7 + $0x4c0] sm:$0xff]
    %v222 = vld [vmem:[#allocation7 + $0x4c8] sm:$0xff]
    %v223 = vld [vmem:[#allocation7 + $0x4d0] sm:$0xff]
    %v224 = vld [vmem:[#allocation7 + $0x4d8] sm:$0xff]
    %v225 = vld [vmem:[#allocation7 + $0x4e0] sm:$0xff]
    %v226 = vld [vmem:[#allocation7 + $0x4e8] sm:$0xff]
    %v227 = vld [vmem:[#allocation7 + $0x4f0] sm:$0xff]
    %v228 = vld [vmem:[#allocation7 + $0x4f8] sm:$0xff]
    %v229 = vld [vmem:[#allocation7 + $0x500] sm:$0xff]
    %v230 = vld [vmem:[#allocation7 + $0x508] sm:$0xff]
    %v231 = vld [vmem:[#allocation7 + $0x510] sm:$0xff]
    %v232 = vld [vmem:[#allocation7 + $0x518] sm:$0xff]
    %v233 = vld [vmem:[#allocation7 + $0x520] sm:$0xff]
    %v234 = vld [vmem:[#allocation7 + $0x528] sm:$0xff]
    %v235 = vld [vmem:[#allocation7 + $0x530] sm:$0xff]
    %v236 = vld [vmem:[#allocation7 + $0x538] sm:$0xff]
    %v237 = vld [vmem:[#allocation7 + $0x540] sm:$0xff]
    %v238 = vld [vmem:[#allocation7 + $0x548] sm:$0xff]
    %v239 = vld [vmem:[#allocation7 + $0x550] sm:$0xff]
    %v240 = vld [vmem:[#allocation7 + $0x558] sm:$0xff]
    %v241 = vld [vmem:[#allocation7 + $0x560] sm:$0xff]
    %v242 = vld [vmem:[#allocation7 + $0x568] sm:$0xff]
    %v243 = vld [vmem:[#allocation7 + $0x570] sm:$0xff]
    %v244 = vld [vmem:[#allocation7 + $0x578] sm:$0xff]
    %v245 = vld [vmem:[#allocation7 + $0x580] sm:$0xff]
    %v246 = vld [vmem:[#allocation7 + $0x588] sm:$0xff]
    %v247 = vld [vmem:[#allocation7 + $0x590] sm:$0xff]
    %v248 = vld [vmem:[#allocation7 + $0x598] sm:$0xff]
    %v249 = vld [vmem:[#allocation7 + $0x5a0] sm:$0xff]
    %v250 = vld [vmem:[#allocation7 + $0x5a8] sm:$0xff]
    %v251 = vld [vmem:[#allocation7 + $0x5b0] sm:$0xff]
    %v252 = vld [vmem:[#allocation7 + $0x5b8] sm:$0xff]
    %v253 = vld [vmem:[#allocation7 + $0x5c0] sm:$0xff]
    %v254 = vld [vmem:[#allocation7 + $0x5c8] sm:$0xff]
    %v255 = vld [vmem:[#allocation7 + $0x5d0] sm:$0xff]
    %v256 = vld [vmem:[#allocation7 + $0x5d8] sm:$0xff]
    %v257 = vld [vmem:[#allocation7 + $0x5e0] sm:$0xff]
    %v258 = vld [vmem:[#allocation7 + $0x5e8] sm:$0xff]
    %v259 = vld [vmem:[#allocation7 + $0x5f0] sm:$0xff]
    %v260 = vld [vmem:[#allocation7 + $0x5f8] sm:$0xff]
    %v261 = vld [vmem:[#allocation7 + $0x600] sm:$0xff]
    %v262 = vld [vmem:[#allocation7 + $0x608] sm:$0xff]
    %v263 = vld [vmem:[#allocation7 + $0x610] sm:$0xff]
    %v264 = vld [vmem:[#allocation7 + $0x618] sm:$0xff]
    %v265 = vld [vmem:[#allocation7 + $0x620] sm:$0xff]
    %v266 = vld [vmem:[#allocation7 + $0x628] sm:$0xff]
    %v267 = vld [vmem:[#allocation7 + $0x630] sm:$0xff]
    %v268 = vld [vmem:[#allocation7 + $0x638] sm:$0xff]
    %v269 = vld [vmem:[#allocation7 + $0x640] sm:$0xff]
    %v270 = vld [vmem:[#allocation7 + $0x648] sm:$0xff]
    %v271 = vld [vmem:[#allocation7 + $0x650] sm:$0xff]
    %v272 = vld [vmem:[#allocation7 + $0x658] sm:$0xff]
    %v273 = vld [vmem:[#allocation7 + $0x660] sm:$0xff]
    %v274 = vld [vmem:[#allocation7 + $0x668] sm:$0xff]
    %v275 = vld [vmem:[#allocation7 + $0x670] sm:$0xff]
    %v276 = vld [vmem:[#allocation7 + $0x678] sm:$0xff]
    %v277 = vld [vmem:[#allocation7 + $0x680] sm:$0xff]
    %v278 = vld [vmem:[#allocation7 + $0x688] sm:$0xff]
    %v279 = vld [vmem:[#allocation7 + $0x690] sm:$0xff]
    %v280 = vld [vmem:[#allocation7 + $0x698] sm:$0xff]
    %v281 = vld [vmem:[#allocation7 + $0x6a0] sm:$0xff]
    %v282 = vld [vmem:[#allocation7 + $0x6a8] sm:$0xff]
    %v283 = vld [vmem:[#allocation7 + $0x6b0] sm:$0xff]
    %v284 = vld [vmem:[#allocation7 + $0x6b8] sm:$0xff]
    %v285 = vld [vmem:[#allocation7 + $0x6c0] sm:$0xff]
    %v286 = vld [vmem:[#allocation7 + $0x6c8] sm:$0xff]
    %v287 = vld [vmem:[#allocation7 + $0x6d0] sm:$0xff]
    %v288 = vld [vmem:[#allocation7 + $0x6d8] sm:$0xff]
    %v289 = vld [vmem:[#allocation7 + $0x6e0] sm:$0xff]
    %v290 = vld [vmem:[#allocation7 + $0x6e8] sm:$0xff]
    %v291 = vld [vmem:[#allocation7 + $0x6f0] sm:$0xff]
    %v292 = vld [vmem:[#allocation7 + $0x6f8] sm:$0xff]
    %v293 = vld [vmem:[#allocation7 + $0x700] sm:$0xff]
    %v294 = vld [vmem:[#allocation7 + $0x708] sm:$0xff]
    %v295 = vld [vmem:[#allocation7 + $0x710] sm:$0xff]
    %v296 = vld [vmem:[#allocation7 + $0x718] sm:$0xff]
    %v297 = vld [vmem:[#allocation7 + $0x720] sm:$0xff]
    %v298 = vld [vmem:[#allocation7 + $0x728] sm:$0xff]
    %v299 = vld [vmem:[#allocation7 + $0x730] sm:$0xff]
    %v300 = vld [vmem:[#allocation7 + $0x738] sm:$0xff]
    %v301 = vld [vmem:[#allocation7 + $0x740] sm:$0xff]
    %v302 = vld [vmem:[#allocation7 + $0x748] sm:$0xff]
    %v303 = vld [vmem:[#allocation7 + $0x750] sm:$0xff]
    %v304 = vld [vmem:[#allocation7 + $0x758] sm:$0xff]
    %v305 = vld [vmem:[#allocation7 + $0x760] sm:$0xff]
    %v306 = vld [vmem:[#allocation7 + $0x768] sm:$0xff]
    %v307 = vld [vmem:[#allocation7 + $0x770] sm:$0xff]
    %v308 = vld [vmem:[#allocation7 + $0x778] sm:$0xff]
    %v309 = vld [vmem:[#allocation7 + $0x780] sm:$0xff]
    %v310 = vld [vmem:[#allocation7 + $0x788] sm:$0xff]
    %v311 = vld [vmem:[#allocation7 + $0x790] sm:$0xff]
    %v312 = vld [vmem:[#allocation7 + $0x798] sm:$0xff]
    %v313 = vld [vmem:[#allocation7 + $0x7a0] sm:$0xff]
    %v314 = vld [vmem:[#allocation7 + $0x7a8] sm:$0xff]
    %v315 = vld [vmem:[#allocation7 + $0x7b0] sm:$0xff]
    %v316 = vld [vmem:[#allocation7 + $0x7b8] sm:$0xff]
    %v317 = vld [vmem:[#allocation7 + $0x7c0] sm:$0xff]
    %v318 = vld [vmem:[#allocation7 + $0x7c8] sm:$0xff]
    %v319 = vld [vmem:[#allocation7 + $0x7d0] sm:$0xff]
    %v320 = vld [vmem:[#allocation7 + $0x7d8] sm:$0xff]
    %v321 = vld [vmem:[#allocation7 + $0x7e0] sm:$0xff]
    %v322 = vld [vmem:[#allocation7 + $0x7e8] sm:$0xff]
    %v323 = vld [vmem:[#allocation7 + $0x7f0] sm:$0xff]
    %v324 = vld [vmem:[#allocation7 + $0x7f8] sm:$0xff]
    %v325 = vld [vmem:[#allocation7 + $0x800] sm:$0xff]
    %v326 = vld [vmem:[#allocation7 + $0x808] sm:$0xff]
    %v327 = vld [vmem:[#allocation7 + $0x810] sm:$0xff]
    %v328 = vld [vmem:[#allocation7 + $0x818] sm:$0xff]
    %v329 = vld [vmem:[#allocation7 + $0x820] sm:$0xff]
    %v330 = vld [vmem:[#allocation7 + $0x828] sm:$0xff]
    %v331 = vld [vmem:[#allocation7 + $0x830] sm:$0xff]
    %v332 = vld [vmem:[#allocation7 + $0x838] sm:$0xff]
    %v333 = vld [vmem:[#allocation7 + $0x840] sm:$0xff]
    %v334 = vld [vmem:[#allocation7 + $0x848] sm:$0xff]
    %v335 = vld [vmem:[#allocation7 + $0x850] sm:$0xff]
    %v336 = vld [vmem:[#allocation7 + $0x858] sm:$0xff]
    %v337 = vld [vmem:[#allocation7 + $0x860] sm:$0xff]
    %v338 = vld [vmem:[#allocation7 + $0x868] sm:$0xff]
    %v339 = vld [vmem:[#allocation7 + $0x870] sm:$0xff]
    %v340 = vld [vmem:[#allocation7 + $0x878] sm:$0xff]
    %v341 = vld [vmem:[#allocation7 + $0x880] sm:$0xff]
    %v342 = vld [vmem:[#allocation7 + $0x888] sm:$0xff]
    %v343 = vld [vmem:[#allocation7 + $0x890] sm:$0xff]
    %v344 = vld [vmem:[#allocation7 + $0x898] sm:$0xff]
    %v345 = vld [vmem:[#allocation7 + $0x8a0] sm:$0xff]
    %v346 = vld [vmem:[#allocation7 + $0x8a8] sm:$0xff]
    %v347 = vld [vmem:[#allocation7 + $0x8b0] sm:$0xff]
    %v348 = vld [vmem:[#allocation7 + $0x8b8] sm:$0xff]
    %v349 = vld [vmem:[#allocation7 + $0x8c0] sm:$0xff]
    %v350 = vld [vmem:[#allocation7 + $0x8c8] sm:$0xff]
    %v351 = vld [vmem:[#allocation7 + $0x8d0] sm:$0xff]
    %v352 = vld [vmem:[#allocation7 + $0x8d8] sm:$0xff]
    %v353 = vld [vmem:[#allocation7 + $0x8e0] sm:$0xff]
    %v354 = vld [vmem:[#allocation7 + $0x8e8] sm:$0xff]
    %v355 = vld [vmem:[#allocation7 + $0x8f0] sm:$0xff]
    %v356 = vld [vmem:[#allocation7 + $0x8f8] sm:$0xff]
    %v357 = vld [vmem:[#allocation7 + $0x900] sm:$0xff]
    %v358 = vld [vmem:[#allocation7 + $0x908] sm:$0xff]
    %v359 = vld [vmem:[#allocation7 + $0x910] sm:$0xff]
    %v360 = vld [vmem:[#allocation7 + $0x918] sm:$0xff]
    %v361 = vld [vmem:[#allocation7 + $0x920] sm:$0xff]
    %v362 = vld [vmem:[#allocation7 + $0x928] sm:$0xff]
    %v363 = vld [vmem:[#allocation7 + $0x930] sm:$0xff]
    %v364 = vld [vmem:[#allocation7 + $0x938] sm:$0xff]
    %v365 = vld [vmem:[#allocation7 + $0x940] sm:$0xff]
    %v366 = vld [vmem:[#allocation7 + $0x948] sm:$0xff]
    %v367 = vld [vmem:[#allocation7 + $0x950] sm:$0xff]
    %v368 = vld [vmem:[#allocation7 + $0x958] sm:$0xff]
    %v369 = vld [vmem:[#allocation7 + $0x960] sm:$0xff]
    %v370 = vld [vmem:[#allocation7 + $0x968] sm:$0xff]
    %v371 = vld [vmem:[#allocation7 + $0x970] sm:$0xff]
    %v372 = vld [vmem:[#allocation7 + $0x978] sm:$0xff]
    %v373 = vld [vmem:[#allocation7 + $0x980] sm:$0xff]
    %v374 = vld [vmem:[#allocation7 + $0x988] sm:$0xff]
    %v375 = vld [vmem:[#allocation7 + $0x990] sm:$0xff]
    %v376 = vld [vmem:[#allocation7 + $0x998] sm:$0xff]
    %v377 = vld [vmem:[#allocation7 + $0x9a0] sm:$0xff]
    %v378 = vld [vmem:[#allocation7 + $0x9a8] sm:$0xff]
    %v379 = vld [vmem:[#allocation7 + $0x9b0] sm:$0xff]
    %v380 = vld [vmem:[#allocation7 + $0x9b8] sm:$0xff]
    %v381 = vld [vmem:[#allocation7 + $0x9c0] sm:$0xff]
    %v382 = vld [vmem:[#allocation7 + $0x9c8] sm:$0xff]
    %v383 = vld [vmem:[#allocation7 + $0x9d0] sm:$0xff]
    %v384 = vld [vmem:[#allocation7 + $0x9d8] sm:$0xff]
    %v385 = vld [vmem:[#allocation7 + $0x9e0] sm:$0xff]
    %v386 = vld [vmem:[#allocation7 + $0x9e8] sm:$0xff]
    %v387 = vld [vmem:[#allocation7 + $0x9f0] sm:$0xff]
    %v388 = vld [vmem:[#allocation7 + $0x9f8] sm:$0xff]
    %v389 = vld [vmem:[#allocation7 + $0xa00] sm:$0xff]
    %v390 = vld [vmem:[#allocation7 + $0xa08] sm:$0xff]
    %v391 = vld [vmem:[#allocation7 + $0xa10] sm:$0xff]
    %v392 = vld [vmem:[#allocation7 + $0xa18] sm:$0xff]
    %v393 = vld [vmem:[#allocation7 + $0xa20] sm:$0xff]
    %v394 = vld [vmem:[#allocation7 + $0xa28] sm:$0xff]
    %v395 = vld [vmem:[#allocation7 + $0xa30] sm:$0xff]
    %v396 = vld [vmem:[#allocation7 + $0xa38] sm:$0xff]
    %v397 = vld [vmem:[#allocation7 + $0xa40] sm:$0xff]
    %v398 = vld [vmem:[#allocation7 + $0xa48] sm:$0xff]
    %v399 = vld [vmem:[#allocation7 + $0xa50] sm:$0xff]
    %v400 = vld [vmem:[#allocation7 + $0xa58] sm:$0xff]
    %v401 = vld [vmem:[#allocation7 + $0xa60] sm:$0xff]
    %v402 = vld [vmem:[#allocation7 + $0xa68] sm:$0xff]
    %v403 = vld [vmem:[#allocation7 + $0xa70] sm:$0xff]
    %v404 = vld [vmem:[#allocation7 + $0xa78] sm:$0xff]
    %v405 = vld [vmem:[#allocation7 + $0xa80] sm:$0xff]
    %v406 = vld [vmem:[#allocation7 + $0xa88] sm:$0xff]
    %v407 = vld [vmem:[#allocation7 + $0xa90] sm:$0xff]
    %v408 = vld [vmem:[#allocation7 + $0xa98] sm:$0xff]
    %v409 = vld [vmem:[#allocation7 + $0xaa0] sm:$0xff]
    %v410 = vld [vmem:[#allocation7 + $0xaa8] sm:$0xff]
    %v411 = vld [vmem:[#allocation7 + $0xab0] sm:$0xff]
    %v412 = vld [vmem:[#allocation7 + $0xab8] sm:$0xff]
    %v413 = vld [vmem:[#allocation7 + $0xac0] sm:$0xff]
    %v414 = vld [vmem:[#allocation7 + $0xac8] sm:$0xff]
    %v415 = vld [vmem:[#allocation7 + $0xad0] sm:$0xff]
    %v416 = vld [vmem:[#allocation7 + $0xad8] sm:$0xff]
    %v417 = vld [vmem:[#allocation7 + $0xae0] sm:$0xff]
    %v418 = vld [vmem:[#allocation7 + $0xae8] sm:$0xff]
    %v419 = vld [vmem:[#allocation7 + $0xaf0] sm:$0xff]
    %v420 = vld [vmem:[#allocation7 + $0xaf8] sm:$0xff]
    %v421 = vld [vmem:[#allocation7 + $0xb00] sm:$0xff]
    %v422 = vld [vmem:[#allocation7 + $0xb08] sm:$0xff]
    %v423 = vld [vmem:[#allocation7 + $0xb10] sm:$0xff]
    %v424 = vld [vmem:[#allocation7 + $0xb18] sm:$0xff]
    %v425 = vld [vmem:[#allocation7 + $0xb20] sm:$0xff]
    %v426 = vld [vmem:[#allocation7 + $0xb28] sm:$0xff]
    %v427 = vld [vmem:[#allocation7 + $0xb30] sm:$0xff]
    %v428 = vld [vmem:[#allocation7 + $0xb38] sm:$0xff]
    %v429 = vld [vmem:[#allocation7 + $0xb40] sm:$0xff]
    %v430 = vld [vmem:[#allocation7 + $0xb48] sm:$0xff]
    %v431 = vld [vmem:[#allocation7 + $0xb50] sm:$0xff]
    %v432 = vld [vmem:[#allocation7 + $0xb58] sm:$0xff]
    %v433 = vld [vmem:[#allocation7 + $0xb60] sm:$0xff]
    %v434 = vld [vmem:[#allocation7 + $0xb68] sm:$0xff]
    %v435 = vld [vmem:[#allocation7 + $0xb70] sm:$0xff]
    %v436 = vld [vmem:[#allocation7 + $0xb78] sm:$0xff]
    %v437 = vld [vmem:[#allocation7 + $0xb80] sm:$0xff]
    %v438 = vld [vmem:[#allocation7 + $0xb88] sm:$0xff]
    %v439 = vld [vmem:[#allocation7 + $0xb90] sm:$0xff]
    %v440 = vld [vmem:[#allocation7 + $0xb98] sm:$0xff]
    %v441 = vld [vmem:[#allocation7 + $0xba0] sm:$0xff]
    %v442 = vld [vmem:[#allocation7 + $0xba8] sm:$0xff]
    %v443 = vld [vmem:[#allocation7 + $0xbb0] sm:$0xff]
    %v444 = vld [vmem:[#allocation7 + $0xbb8] sm:$0xff]
    %v445 = vld [vmem:[#allocation7 + $0xbc0] sm:$0xff]
    %v446 = vld [vmem:[#allocation7 + $0xbc8] sm:$0xff]
    %v447 = vld [vmem:[#allocation7 + $0xbd0] sm:$0xff]
    %v448 = vld [vmem:[#allocation7 + $0xbd8] sm:$0xff]
    %v449 = vld [vmem:[#allocation7 + $0xbe0] sm:$0xff]
    %v450 = vld [vmem:[#allocation7 + $0xbe8] sm:$0xff]
    %v451 = vld [vmem:[#allocation7 + $0xbf0] sm:$0xff]
    %v452 = vld [vmem:[#allocation7 + $0xbf8] sm:$0xff]
    %v453 = vld [vmem:[#allocation7 + $0xc00] sm:$0xff]
    %v454 = vld [vmem:[#allocation7 + $0xc08] sm:$0xff]
    %v455 = vld [vmem:[#allocation7 + $0xc10] sm:$0xff]
    %v456 = vld [vmem:[#allocation7 + $0xc18] sm:$0xff]
    %v457 = vld [vmem:[#allocation7 + $0xc20] sm:$0xff]
    %v458 = vld [vmem:[#allocation7 + $0xc28] sm:$0xff]
    %v459 = vld [vmem:[#allocation7 + $0xc30] sm:$0xff]
    %v460 = vld [vmem:[#allocation7 + $0xc38] sm:$0xff]
    %v461 = vld [vmem:[#allocation7 + $0xc40] sm:$0xff]
    %v462 = vld [vmem:[#allocation7 + $0xc48] sm:$0xff]
    %v463 = vld [vmem:[#allocation7 + $0xc50] sm:$0xff]
    %v464 = vld [vmem:[#allocation7 + $0xc58] sm:$0xff]
    %v465 = vld [vmem:[#allocation7 + $0xc60] sm:$0xff]
    %v466 = vld [vmem:[#allocation7 + $0xc68] sm:$0xff]
    %v467 = vld [vmem:[#allocation7 + $0xc70] sm:$0xff]
    %v468 = vld [vmem:[#allocation7 + $0xc78] sm:$0xff]
    %v469 = vld [vmem:[#allocation7 + $0xc80] sm:$0xff]
    %v470 = vld [vmem:[#allocation7 + $0xc88] sm:$0xff]
    %v471 = vld [vmem:[#allocation7 + $0xc90] sm:$0xff]
    %v472 = vld [vmem:[#allocation7 + $0xc98] sm:$0xff]
    %v473 = vld [vmem:[#allocation7 + $0xca0] sm:$0xff]
    %v474 = vld [vmem:[#allocation7 + $0xca8] sm:$0xff]
    %v475 = vld [vmem:[#allocation7 + $0xcb0] sm:$0xff]
    %v476 = vld [vmem:[#allocation7 + $0xcb8] sm:$0xff]
    %v477 = vld [vmem:[#allocation7 + $0xcc0] sm:$0xff]
    %v478 = vld [vmem:[#allocation7 + $0xcc8] sm:$0xff]
    %v479 = vld [vmem:[#allocation7 + $0xcd0] sm:$0xff]
    %v480 = vld [vmem:[#allocation7 + $0xcd8] sm:$0xff]
    %v481 = vld [vmem:[#allocation7 + $0xce0] sm:$0xff]
    %v482 = vld [vmem:[#allocation7 + $0xce8] sm:$0xff]
    %v483 = vld [vmem:[#allocation7 + $0xcf0] sm:$0xff]
    %v484 = vld [vmem:[#allocation7 + $0xcf8] sm:$0xff]
    %v485 = vld [vmem:[#allocation7 + $0xd00] sm:$0xff]
    %v486 = vld [vmem:[#allocation7 + $0xd08] sm:$0xff]
    %v487 = vld [vmem:[#allocation7 + $0xd10] sm:$0xff]
    %v488 = vld [vmem:[#allocation7 + $0xd18] sm:$0xff]
    %v489 = vld [vmem:[#allocation7 + $0xd20] sm:$0xff]
    %v490 = vld [vmem:[#allocation7 + $0xd28] sm:$0xff]
    %v491 = vld [vmem:[#allocation7 + $0xd30] sm:$0xff]
    %v492 = vld [vmem:[#allocation7 + $0xd38] sm:$0xff]
    %v493 = vld [vmem:[#allocation7 + $0xd40] sm:$0xff]
    %v494 = vld [vmem:[#allocation7 + $0xd48] sm:$0xff]
    %v495 = vld [vmem:[#allocation7 + $0xd50] sm:$0xff]
    %v496 = vld [vmem:[#allocation7 + $0xd58] sm:$0xff]
    %v497 = vld [vmem:[#allocation7 + $0xd60] sm:$0xff]
    %v498 = vld [vmem:[#allocation7 + $0xd68] sm:$0xff]
    %v499 = vld [vmem:[#allocation7 + $0xd70] sm:$0xff]
    %v500 = vld [vmem:[#allocation7 + $0xd78] sm:$0xff]
    %v501 = vld [vmem:[#allocation7 + $0xd80] sm:$0xff]
    %v502 = vld [vmem:[#allocation7 + $0xd88] sm:$0xff]
    %v503 = vld [vmem:[#allocation7 + $0xd90] sm:$0xff]
    %v504 = vld [vmem:[#allocation7 + $0xd98] sm:$0xff]
    %v505 = vld [vmem:[#allocation7 + $0xda0] sm:$0xff]
    %v506 = vld [vmem:[#allocation7 + $0xda8] sm:$0xff]
    %v507 = vld [vmem:[#allocation7 + $0xdb0] sm:$0xff]
    %v508 = vld [vmem:[#allocation7 + $0xdb8] sm:$0xff]
    %v509 = vld [vmem:[#allocation7 + $0xdc0] sm:$0xff]
    %v510 = vld [vmem:[#allocation7 + $0xdc8] sm:$0xff]
    %v511 = vld [vmem:[#allocation7 + $0xdd0] sm:$0xff]
    %v512 = vld [vmem:[#allocation7 + $0xdd8] sm:$0xff]
    %v513 = vld [vmem:[#allocation7 + $0xde0] sm:$0xff]
    %v514 = vld [vmem:[#allocation7 + $0xde8] sm:$0xff]
    %v515 = vld [vmem:[#allocation7 + $0xdf0] sm:$0xff]
    %v516 = vld [vmem:[#allocation7 + $0xdf8] sm:$0xff]
    %v517 = vld [vmem:[#allocation7 + $0xe00] sm:$0xff]
    %v518 = vld [vmem:[#allocation7 + $0xe08] sm:$0xff]
    %v519 = vld [vmem:[#allocation7 + $0xe10] sm:$0xff]
    %v520 = vld [vmem:[#allocation7 + $0xe18] sm:$0xff]
    %v521 = vld [vmem:[#allocation7 + $0xe20] sm:$0xff]
    %v522 = vld [vmem:[#allocation7 + $0xe28] sm:$0xff]
    %v523 = vld [vmem:[#allocation7 + $0xe30] sm:$0xff]
    %v524 = vld [vmem:[#allocation7 + $0xe38] sm:$0xff]
    %v525 = vld [vmem:[#allocation7 + $0xe40] sm:$0xff]
    %v526 = vld [vmem:[#allocation7 + $0xe48] sm:$0xff]
    %v527 = vld [vmem:[#allocation7 + $0xe50] sm:$0xff]
    %v528 = vld [vmem:[#allocation7 + $0xe58] sm:$0xff]
    %v529 = vld [vmem:[#allocation7 + $0xe60] sm:$0xff]
    %v530 = vld [vmem:[#allocation7 + $0xe68] sm:$0xff]
    %v531 = vld [vmem:[#allocation7 + $0xe70] sm:$0xff]
    %v532 = vld [vmem:[#allocation7 + $0xe78] sm:$0xff]
    %v533 = vld [vmem:[#allocation7 + $0xe80] sm:$0xff]
    %v534 = vld [vmem:[#allocation7 + $0xe88] sm:$0xff]
    %v535 = vld [vmem:[#allocation7 + $0xe90] sm:$0xff]
    %v536 = vld [vmem:[#allocation7 + $0xe98] sm:$0xff]
    %v537 = vld [vmem:[#allocation7 + $0xea0] sm:$0xff]
    %v538 = vld [vmem:[#allocation7 + $0xea8] sm:$0xff]
    %v539 = vld [vmem:[#allocation7 + $0xeb0] sm:$0xff]
    %v540 = vld [vmem:[#allocation7 + $0xeb8] sm:$0xff]
    %v541 = vld [vmem:[#allocation7 + $0xec0] sm:$0xff]
    %v542 = vld [vmem:[#allocation7 + $0xec8] sm:$0xff]
    %v543 = vld [vmem:[#allocation7 + $0xed0] sm:$0xff]
    %v544 = vld [vmem:[#allocation7 + $0xed8] sm:$0xff]
    %v545 = vld [vmem:[#allocation7 + $0xee0] sm:$0xff]
    %v546 = vld [vmem:[#allocation7 + $0xee8] sm:$0xff]
    %v547 = vld [vmem:[#allocation7 + $0xef0] sm:$0xff]
    %v548 = vld [vmem:[#allocation7 + $0xef8] sm:$0xff]
    %v549 = vld [vmem:[#allocation7 + $0xf00] sm:$0xff]
    %v550 = vld [vmem:[#allocation7 + $0xf08] sm:$0xff]
    %v551 = vld [vmem:[#allocation7 + $0xf10] sm:$0xff]
    %v552 = vld [vmem:[#allocation7 + $0xf18] sm:$0xff]
    %v553 = vld [vmem:[#allocation7 + $0xf20] sm:$0xff]
    %v554 = vld [vmem:[#allocation7 + $0xf28] sm:$0xff]
    %v555 = vld [vmem:[#allocation7 + $0xf30] sm:$0xff]
    %v556 = vld [vmem:[#allocation7 + $0xf38] sm:$0xff]
    %v557 = vld [vmem:[#allocation7 + $0xf40] sm:$0xff]
    %v558 = vld [vmem:[#allocation7 + $0xf48] sm:$0xff]
    %v559 = vld [vmem:[#allocation7 + $0xf50] sm:$0xff]
    %v560 = vld [vmem:[#allocation7 + $0xf58] sm:$0xff]
    %v561 = vld [vmem:[#allocation7 + $0xf60] sm:$0xff]
    %v562 = vld [vmem:[#allocation7 + $0xf68] sm:$0xff]
    %v563 = vld [vmem:[#allocation7 + $0xf70] sm:$0xff]
    %v564 = vld [vmem:[#allocation7 + $0xf78] sm:$0xff]
    %v565 = vld [vmem:[#allocation7 + $0xf80] sm:$0xff]
    %v566 = vld [vmem:[#allocation7 + $0xf88] sm:$0xff]
    %v567 = vld [vmem:[#allocation7 + $0xf90] sm:$0xff]
    %v568 = vld [vmem:[#allocation7 + $0xf98] sm:$0xff]
    %v569 = vld [vmem:[#allocation7 + $0xfa0] sm:$0xff]
    %v570 = vld [vmem:[#allocation7 + $0xfa8] sm:$0xff]
    %v571 = vld [vmem:[#allocation7 + $0xfb0] sm:$0xff]
    %v572 = vld [vmem:[#allocation7 + $0xfb8] sm:$0xff]
    %v573 = vld [vmem:[#allocation7 + $0xfc0] sm:$0xff]
    %v574 = vld [vmem:[#allocation7 + $0xfc8] sm:$0xff]
    %v575 = vld [vmem:[#allocation7 + $0xfd0] sm:$0xff]
    %v576 = vld [vmem:[#allocation7 + $0xfd8] sm:$0xff]
    %v577 = vld [vmem:[#allocation7 + $0xfe0] sm:$0xff]
    %v578 = vld [vmem:[#allocation7 + $0xfe8] sm:$0xff]
    %v579 = vld [vmem:[#allocation7 + $0xff0] sm:$0xff]
    %v580 = vld [vmem:[#allocation7 + $0xff8] sm:$0xff]
    %v581 = vld [vmem:[#allocation7 + $0x1000] sm:$0xff]
    %v582 = vld [vmem:[#allocation7 + $0x1008] sm:$0xff]
    %v583 = vld [vmem:[#allocation7 + $0x1010] sm:$0xff]
    %v584 = vld [vmem:[#allocation7 + $0x1018] sm:$0xff]
    %v585 = vld [vmem:[#allocation7 + $0x1020] sm:$0xff]
    %v586 = vld [vmem:[#allocation7 + $0x1028] sm:$0xff]
    %v587 = vld [vmem:[#allocation7 + $0x1030] sm:$0xff]
    %v588 = vld [vmem:[#allocation7 + $0x1038] sm:$0xff]
    %v589 = vld [vmem:[#allocation7 + $0x1040] sm:$0xff]
    %v590 = vld [vmem:[#allocation7 + $0x1048] sm:$0xff]
    %v591 = vld [vmem:[#allocation7 + $0x1050] sm:$0xff]
    %v592 = vld [vmem:[#allocation7 + $0x1058] sm:$0xff]
    %v593 = vld [vmem:[#allocation7 + $0x1060] sm:$0xff]
    %v594 = vld [vmem:[#allocation7 + $0x1068] sm:$0xff]
    %v595 = vld [vmem:[#allocation7 + $0x1070] sm:$0xff]
    %v596 = vld [vmem:[#allocation7 + $0x1078] sm:$0xff]
    %v597 = vld [vmem:[#allocation7 + $0x1080] sm:$0xff]
    %v598 = vld [vmem:[#allocation7 + $0x1088] sm:$0xff]
    %v599 = vld [vmem:[#allocation7 + $0x1090] sm:$0xff]
    %v600 = vld [vmem:[#allocation7 + $0x1098] sm:$0xff]
    %v601 = vld [vmem:[#allocation7 + $0x10a0] sm:$0xff]
    %v602 = vld [vmem:[#allocation7 + $0x10a8] sm:$0xff]
    %v603 = vld [vmem:[#allocation7 + $0x10b0] sm:$0xff]
    %v604 = vld [vmem:[#allocation7 + $0x10b8] sm:$0xff]
    %v605 = vld [vmem:[#allocation7 + $0x10c0] sm:$0xff]
    %v606 = vld [vmem:[#allocation7 + $0x10c8] sm:$0xff]
    %v607 = vld [vmem:[#allocation7 + $0x10d0] sm:$0xff]
    %v608 = vld [vmem:[#allocation7 + $0x10d8] sm:$0xff]
    %v609 = vld [vmem:[#allocation7 + $0x10e0] sm:$0xff]
    %v610 = vld [vmem:[#allocation7 + $0x10e8] sm:$0xff]
    %v611 = vld [vmem:[#allocation7 + $0x10f0] sm:$0xff]
    %v612 = vld [vmem:[#allocation7 + $0x10f8] sm:$0xff]
    %v613 = vld [vmem:[#allocation7 + $0x1100] sm:$0xff]
    %v614 = vld [vmem:[#allocation7 + $0x1108] sm:$0xff]
    %v615 = vld [vmem:[#allocation7 + $0x1110] sm:$0xff]
    %v616 = vld [vmem:[#allocation7 + $0x1118] sm:$0xff]
    %v617 = vld [vmem:[#allocation7 + $0x1120] sm:$0xff]
    %v618 = vld [vmem:[#allocation7 + $0x1128] sm:$0xff]
    %v619 = vld [vmem:[#allocation7 + $0x1130] sm:$0xff]
    %v620 = vld [vmem:[#allocation7 + $0x1138] sm:$0xff]
    %v621 = vld [vmem:[#allocation7 + $0x1140] sm:$0xff]
    %v622 = vld [vmem:[#allocation7 + $0x1148] sm:$0xff]
    %v623 = vld [vmem:[#allocation7 + $0x1150] sm:$0xff]
    %v624 = vld [vmem:[#allocation7 + $0x1158] sm:$0xff]
    %v625 = vld [vmem:[#allocation7 + $0x1160] sm:$0xff]
    %v626 = vld [vmem:[#allocation7 + $0x1168] sm:$0xff]
    %v627 = vld [vmem:[#allocation7 + $0x1170] sm:$0xff]
    %v628 = vld [vmem:[#allocation7 + $0x1178] sm:$0xff]
    %v629 = vld [vmem:[#allocation7 + $0x1180] sm:$0xff]
    %v630 = vld [vmem:[#allocation7 + $0x1188] sm:$0xff]
    %v631 = vld [vmem:[#allocation7 + $0x1190] sm:$0xff]
    %v632 = vld [vmem:[#allocation7 + $0x1198] sm:$0xff]
    %v633 = vld [vmem:[#allocation7 + $0x11a0] sm:$0xff]
    %v634 = vld [vmem:[#allocation7 + $0x11a8] sm:$0xff]
    %v635 = vld [vmem:[#allocation7 + $0x11b0] sm:$0xff]
    %v636 = vld [vmem:[#allocation7 + $0x11b8] sm:$0xff]
    %v637 = vld [vmem:[#allocation7 + $0x11c0] sm:$0xff]
    %v638 = vld [vmem:[#allocation7 + $0x11c8] sm:$0xff]
    %v639 = vld [vmem:[#allocation7 + $0x11d0] sm:$0xff]
    %v640 = vld [vmem:[#allocation7 + $0x11d8] sm:$0xff]
    %v641 = vld [vmem:[#allocation7 + $0x11e0] sm:$0xff]
    %v642 = vld [vmem:[#allocation7 + $0x11e8] sm:$0xff]
    %v643 = vld [vmem:[#allocation7 + $0x11f0] sm:$0xff]
    %v644 = vld [vmem:[#allocation7 + $0x11f8] sm:$0xff]
    %v645 = vld [vmem:[#allocation7 + $0x1200] sm:$0xff]
    %v646 = vld [vmem:[#allocation7 + $0x1208] sm:$0xff]
    %v647 = vld [vmem:[#allocation7 + $0x1210] sm:$0xff]
    %v648 = vld [vmem:[#allocation7 + $0x1218] sm:$0xff]
    %v649 = vld [vmem:[#allocation7 + $0x1220] sm:$0xff]
    %v650 = vld [vmem:[#allocation7 + $0x1228] sm:$0xff]
    %v651 = vld [vmem:[#allocation7 + $0x1230] sm:$0xff]
    %v652 = vld [vmem:[#allocation7 + $0x1238] sm:$0xff]
    %v653 = vld [vmem:[#allocation7 + $0x1240] sm:$0xff]
    %v654 = vld [vmem:[#allocation7 + $0x1248] sm:$0xff]
    %v655 = vld [vmem:[#allocation7 + $0x1250] sm:$0xff]
    %v656 = vld [vmem:[#allocation7 + $0x1258] sm:$0xff]
    %v657 = vld [vmem:[#allocation7 + $0x1260] sm:$0xff]
    %v658 = vld [vmem:[#allocation7 + $0x1268] sm:$0xff]
    %v659 = vld [vmem:[#allocation7 + $0x1270] sm:$0xff]
    %v660 = vld [vmem:[#allocation7 + $0x1278] sm:$0xff]
    %v661 = vld [vmem:[#allocation7 + $0x1280] sm:$0xff]
    %v662 = vld [vmem:[#allocation7 + $0x1288] sm:$0xff]
    %v663 = vld [vmem:[#allocation7 + $0x1290] sm:$0xff]
    %v664 = vld [vmem:[#allocation7 + $0x1298] sm:$0xff]
    %v665 = vld [vmem:[#allocation7 + $0x12a0] sm:$0xff]
    %v666 = vld [vmem:[#allocation7 + $0x12a8] sm:$0xff]
    %v667 = vld [vmem:[#allocation7 + $0x12b0] sm:$0xff]
    %v668 = vld [vmem:[#allocation7 + $0x12b8] sm:$0xff]
    %v669 = vld [vmem:[#allocation7 + $0x12c0] sm:$0xff]
    %v670 = vld [vmem:[#allocation7 + $0x12c8] sm:$0xff]
    %v671 = vld [vmem:[#allocation7 + $0x12d0] sm:$0xff]
    %v672 = vld [vmem:[#allocation7 + $0x12d8] sm:$0xff]
    %v673 = vld [vmem:[#allocation7 + $0x12e0] sm:$0xff]
    %v674 = vld [vmem:[#allocation7 + $0x12e8] sm:$0xff]
    %v675 = vld [vmem:[#allocation7 + $0x12f0] sm:$0xff]
    %v676 = vld [vmem:[#allocation7 + $0x12f8] sm:$0xff]
    %v677 = vld [vmem:[#allocation8] sm:$0xff]
    %v678 = vld [vmem:[#allocation8 + $0x10] sm:$0xff]
    %v679 = vld [vmem:[#allocation8 + $0x20] sm:$0xff]
    %v680 = vld [vmem:[#allocation8 + $0x30] sm:$0xff]
    %v681 = vld [vmem:[#allocation8 + $0x40] sm:$0xff]
    %v682 = vld [vmem:[#allocation8 + $0x50] sm:$0xff]
    %v683 = vld [vmem:[#allocation8 + $0x60] sm:$0xff]
    %v684 = vld [vmem:[#allocation8 + $0x70] sm:$0xff]
    %v685 = vld [vmem:[#allocation8 + $0x80] sm:$0xff]
    %v686 = vld [vmem:[#allocation8 + $0x90] sm:$0xff]
    %v687 = vld [vmem:[#allocation8 + $0xa0] sm:$0xff]
    %v688 = vld [vmem:[#allocation8 + $0xb0] sm:$0xff]
    %v689 = vld [vmem:[#allocation8 + $0xc0] sm:$0xff]
    %v690 = vld [vmem:[#allocation8 + $0xd0] sm:$0xff]
    %v691 = vld [vmem:[#allocation8 + $0xe0] sm:$0xff]
    %v692 = vld [vmem:[#allocation8 + $0xf0] sm:$0xff]
    %v693 = vld [vmem:[#allocation8 + $0x100] sm:$0xff]
    %v694 = vld [vmem:[#allocation8 + $0x110] sm:$0xff]
    %v695 = vld [vmem:[#allocation8 + $0x120] sm:$0xff]
    %v696 = vld [vmem:[#allocation8 + $0x130] sm:$0xff]
    %v697 = vld [vmem:[#allocation8 + $0x140] sm:$0xff]
    %v698 = vld [vmem:[#allocation8 + $0x150] sm:$0xff]
    %v699 = vld [vmem:[#allocation8 + $0x160] sm:$0xff]
    %v700 = vld [vmem:[#allocation8 + $0x170] sm:$0xff]
    %v701 = vld [vmem:[#allocation8 + $0x180] sm:$0xff]
    %v702 = vld [vmem:[#allocation8 + $0x190] sm:$0xff]
    %v703 = vld [vmem:[#allocation8 + $0x1a0] sm:$0xff]
    %v704 = vld [vmem:[#allocation8 + $0x1b0] sm:$0xff]
    %v705 = vld [vmem:[#allocation8 + $0x1c0] sm:$0xff]
    %v706 = vld [vmem:[#allocation8 + $0x1d0] sm:$0xff]
    %v707 = vld [vmem:[#allocation8 + $0x1e0] sm:$0xff]
    %v708 = vld [vmem:[#allocation8 + $0x1f0] sm:$0xff]
    %v709 = vld [vmem:[#allocation8 + $0x200] sm:$0xff]
    %v710 = vld [vmem:[#allocation8 + $0x210] sm:$0xff]
    %v711 = vld [vmem:[#allocation8 + $0x220] sm:$0xff]
    %v712 = vld [vmem:[#allocation8 + $0x230] sm:$0xff]
    %v713 = vld [vmem:[#allocation8 + $0x240] sm:$0xff]
    %v714 = vld [vmem:[#allocation8 + $0x250] sm:$0xff]
    %v715 = vld [vmem:[#allocation8 + $0x260] sm:$0xff]
    %v716 = vld [vmem:[#allocation8 + $0x270] sm:$0xff]
    %s717 = scalar_lea.vmem [#allocation8], 640
    %v718 = vld [vmem:[%s717] ss:$8 sm:$0x3]
    %s719 = scalar_lea.vmem [#allocation8], 641
    %v720 = vld [vmem:[%s719] ss:$8 sm:$0x3]
    %v721 = vld [vmem:[#allocation8 + $0x282] ss:$0 sm:$0xff]
    %v722 = vld [vmem:[#allocation8 + $0x283] ss:$0 sm:$0xff]
    %v723 = vld [vmem:[#allocation2] sm:$0xff]
    %v724 = vld [vmem:[#allocation2 + $0x8] sm:$0xff]
    %v725 = vld [vmem:[#allocation2 + $0x10] sm:$0xff]
    %v726 = vld [vmem:[#allocation2 + $0x18] sm:$0xff]
    %v727 = vld [vmem:[#allocation2 + $0x20] sm:$0xff]
    %v728 = vld [vmem:[#allocation2 + $0x28] sm:$0xff]
    %v729 = vpack.c.bf16 %v723, %v723
    %v730 = vpack.c.bf16 %v724, %v724
    %v731 = vpack.c.bf16 %v725, %v725
    %v732 = vpack.c.bf16 %v726, %v726
    %v733 = vpack.c.bf16 %v727, %v727
    %v734 = vpack.c.bf16 %v728, %v728
    %v735 = vld [vmem:[#allocation5] sm:$0xff]
    %v736 = vld [vmem:[#allocation5 + $0x8] sm:$0xff]
    %v737 = vld [vmem:[#allocation5 + $0x10] sm:$0xff]
    %v738 = vld [vmem:[#allocation5 + $0x18] sm:$0xff]
    %v739 = vld [vmem:[#allocation5 + $0x20] sm:$0xff]
    %v740 = vld [vmem:[#allocation5 + $0x28] sm:$0xff]
    %v741 = vld [vmem:[#allocation5 + $0x30] sm:$0xff]
    %v742 = vld [vmem:[#allocation5 + $0x38] sm:$0xff]
    %v743 = vld [vmem:[#allocation5 + $0x40] sm:$0xff]
    %v744 = vld [vmem:[#allocation5 + $0x48] sm:$0xff]
    %v745 = vld [vmem:[#allocation5 + $0x50] sm:$0xff]
    %v746 = vld [vmem:[#allocation5 + $0x58] sm:$0xff]
    %v747 = vld [vmem:[#allocation5 + $0x60] sm:$0xff]
    %v748 = vld [vmem:[#allocation5 + $0x68] sm:$0xff]
    %v749 = vld [vmem:[#allocation5 + $0x70] sm:$0xff]
    %v750 = vld [vmem:[#allocation5 + $0x78] sm:$0xff]
    %v751 = vld [vmem:[#allocation5 + $0x80] sm:$0xff]
    %v752 = vld [vmem:[#allocation5 + $0x88] sm:$0xff]
    %v753 = vld [vmem:[#allocation5 + $0x90] sm:$0xff]
    %v754 = vld [vmem:[#allocation5 + $0x98] sm:$0xff]
    %v755 = vld [vmem:[#allocation5 + $0xa0] sm:$0xff]
    %v756 = vld [vmem:[#allocation5 + $0xa8] sm:$0xff]
    %v757 = vld [vmem:[#allocation5 + $0xb0] sm:$0xff]
    %v758 = vld [vmem:[#allocation5 + $0xb8] sm:$0xff]
    %v759 = vld [vmem:[#allocation5 + $0xc0] sm:$0xff]
    %v760 = vld [vmem:[#allocation5 + $0xc8] sm:$0xff]
    %v761 = vld [vmem:[#allocation5 + $0xd0] sm:$0xff]
    %v762 = vld [vmem:[#allocation5 + $0xd8] sm:$0xff]
    %v763 = vld [vmem:[#allocation5 + $0xe0] sm:$0xff]
    %v764 = vld [vmem:[#allocation5 + $0xe8] sm:$0xff]
    %v765 = vld [vmem:[#allocation5 + $0xf0] sm:$0xff]
    %v766 = vld [vmem:[#allocation5 + $0xf8] sm:$0xff]
    %v767 = vpack.c.bf16 %v735, %v735
    %v768 = vpack.c.bf16 %v736, %v736
    %v769 = vpack.c.bf16 %v737, %v737
    %v770 = vpack.c.bf16 %v738, %v738
    %v771 = vpack.c.bf16 %v739, %v739
    %v772 = vpack.c.bf16 %v740, %v740
    %v773 = vpack.c.bf16 %v741, %v741
    %v774 = vpack.c.bf16 %v742, %v742
    %v775 = vpack.c.bf16 %v743, %v743
    %v776 = vpack.c.bf16 %v744, %v744
    %v777 = vpack.c.bf16 %v745, %v745
    %v778 = vpack.c.bf16 %v746, %v746
    %v779 = vpack.c.bf16 %v747, %v747
    %v780 = vpack.c.bf16 %v748, %v748
    %v781 = vpack.c.bf16 %v749, %v749
    %v782 = vpack.c.bf16 %v750, %v750
    %v783 = vpack.c.bf16 %v751, %v751
    %v784 = vpack.c.bf16 %v752, %v752
    %v785 = vpack.c.bf16 %v753, %v753
    %v786 = vpack.c.bf16 %v754, %v754
    %v787 = vpack.c.bf16 %v755, %v755
    %v788 = vpack.c.bf16 %v756, %v756
    %v789 = vpack.c.bf16 %v757, %v757
    %v790 = vpack.c.bf16 %v758, %v758
    %v791 = vpack.c.bf16 %v759, %v759
    %v792 = vpack.c.bf16 %v760, %v760
    %v793 = vpack.c.bf16 %v761, %v761
    %v794 = vpack.c.bf16 %v762, %v762
    %v795 = vpack.c.bf16 %v763, %v763
    %v796 = vpack.c.bf16 %v764, %v764
    %v797 = vpack.c.bf16 %v765, %v765
    %v798 = vpack.c.bf16 %v766, %v766
    %v800 = vlaneseq
    %v801 = vshrl.u32 %v800, 7
    %v802 = vsub.s32 0, %v801
    %v803 = vrot.slane %v718, %v802
    %v804 = vlaneseq
    %v805 = vshrl.u32 %v804, 7
    %v806 = vsub.s32 1, %v805
    %v807 = vrot.slane %v718, %v806
    %v906 = vunpack.c.l.b16 %v69
    %v907 = vunpack.c.h.b16 %v69
    %v908 = vunpack.c.l.b16 %v70
    %v909 = vunpack.c.h.b16 %v70
    %v910 = vunpack.c.l.b16 %v71
    %v911 = vunpack.c.h.b16 %v71
    %v912 = vunpack.c.l.b16 %v72
    %v913 = vunpack.c.h.b16 %v72
    %v914 = vunpack.c.l.b16 %v73
    %v915 = vunpack.c.h.b16 %v73
    %v916 = vunpack.c.l.b16 %v74
    %v917 = vunpack.c.h.b16 %v74
    %v918 = vunpack.c.l.b16 %v75
    %v919 = vunpack.c.h.b16 %v75
    %v920 = vunpack.c.l.b16 %v76
    %v921 = vunpack.c.h.b16 %v76
    %v922 = vunpack.c.l.b16 %v77
    %v923 = vunpack.c.h.b16 %v77
    %v924 = vunpack.c.l.b16 %v78
    %v925 = vunpack.c.h.b16 %v78
    %v926 = vunpack.c.l.b16 %v79
    %v927 = vunpack.c.h.b16 %v79
    %v928 = vunpack.c.l.b16 %v80
    %v929 = vunpack.c.h.b16 %v80
    %v930 = vunpack.c.l.b16 %v81
    %v931 = vunpack.c.h.b16 %v81
    %v932 = vunpack.c.l.b16 %v82
    %v933 = vunpack.c.h.b16 %v82
    %v934 = vunpack.c.l.b16 %v83
    %v935 = vunpack.c.h.b16 %v83
    %v936 = vunpack.c.l.b16 %v84
    %v937 = vunpack.c.h.b16 %v84
    %v938 = vunpack.c.l.b16 %v85
    %v939 = vunpack.c.h.b16 %v85
    %v940 = vunpack.c.l.b16 %v86
    %v941 = vunpack.c.h.b16 %v86
    %v942 = vunpack.c.l.b16 %v87
    %v943 = vunpack.c.h.b16 %v87
    %v944 = vunpack.c.l.b16 %v88
    %v945 = vunpack.c.h.b16 %v88
    %v946 = vunpack.c.l.b16 %v89
    %v947 = vunpack.c.h.b16 %v89
    %v948 = vunpack.c.l.b16 %v90
    %v949 = vunpack.c.h.b16 %v90
    %v950 = vunpack.c.l.b16 %v91
    %v951 = vunpack.c.h.b16 %v91
    %v952 = vunpack.c.l.b16 %v92
    %v953 = vunpack.c.h.b16 %v92
    %v954 = vunpack.c.l.b16 %v93
    %v955 = vunpack.c.h.b16 %v93
    %v956 = vunpack.c.l.b16 %v94
    %v957 = vunpack.c.h.b16 %v94
    %v958 = vunpack.c.l.b16 %v95
    %v959 = vunpack.c.h.b16 %v95
    %v960 = vunpack.c.l.b16 %v96
    %v961 = vunpack.c.h.b16 %v96
    %v962 = vunpack.c.l.b16 %v97
    %v963 = vunpack.c.h.b16 %v97
    %v964 = vunpack.c.l.b16 %v98
    %v965 = vunpack.c.h.b16 %v98
    %v966 = vunpack.c.l.b16 %v99
    %v967 = vunpack.c.h.b16 %v99
    %v968 = vunpack.c.l.b16 %v100
    %v969 = vunpack.c.h.b16 %v100
    %v970 = vunpack.c.l.b16 %v101
    %v971 = vunpack.c.h.b16 %v101
    %v972 = vunpack.c.l.b16 %v102
    %v973 = vunpack.c.h.b16 %v102
    %v974 = vunpack.c.l.b16 %v103
    %v975 = vunpack.c.h.b16 %v103
    %v976 = vunpack.c.l.b16 %v104
    %v977 = vunpack.c.h.b16 %v104
    %v978 = vunpack.c.l.b16 %v105
    %v979 = vunpack.c.h.b16 %v105
    %v980 = vunpack.c.l.b16 %v106
    %v981 = vunpack.c.h.b16 %v106
    %v982 = vunpack.c.l.b16 %v107
    %v983 = vunpack.c.h.b16 %v107
    %v984 = vunpack.c.l.b16 %v108
    %v985 = vunpack.c.h.b16 %v108
    %v986 = vunpack.c.l.b16 %v109
    %v987 = vunpack.c.h.b16 %v109
    %v988 = vunpack.c.l.b16 %v110
    %v989 = vunpack.c.h.b16 %v110
    %v990 = vunpack.c.l.b16 %v111
    %v991 = vunpack.c.h.b16 %v111
    %v992 = vunpack.c.l.b16 %v112
    %v993 = vunpack.c.h.b16 %v112
    %v994 = vunpack.c.l.b16 %v113
    %v995 = vunpack.c.h.b16 %v113
    %v996 = vunpack.c.l.b16 %v114
    %v997 = vunpack.c.h.b16 %v114
    %v998 = vunpack.c.l.b16 %v115
    %v999 = vunpack.c.h.b16 %v115
    %v1000 = vunpack.c.l.b16 %v116
    %v1001 = vunpack.c.h.b16 %v116
    %v1002 = vunpack.c.l.b16 %v117
    %v1003 = vunpack.c.h.b16 %v117
    %v1004 = vunpack.c.l.b16 %v118
    %v1005 = vunpack.c.h.b16 %v118
    %v1006 = vunpack.c.l.b16 %v119
    %v1007 = vunpack.c.h.b16 %v119
    %v1008 = vunpack.c.l.b16 %v120
    %v1009 = vunpack.c.h.b16 %v120
    %v1010 = vunpack.c.l.b16 %v121
    %v1011 = vunpack.c.h.b16 %v121
    %v1012 = vunpack.c.l.b16 %v122
    %v1013 = vunpack.c.h.b16 %v122
    %v1014 = vunpack.c.l.b16 %v123
    %v1015 = vunpack.c.h.b16 %v123
    %v1016 = vunpack.c.l.b16 %v124
    %v1017 = vunpack.c.h.b16 %v124
    %v1018 = vunpack.c.l.b16 %v125
    %v1019 = vunpack.c.h.b16 %v125
    %v1020 = vunpack.c.l.b16 %v126
    %v1021 = vunpack.c.h.b16 %v126
    %v1022 = vunpack.c.l.b16 %v127
    %v1023 = vunpack.c.h.b16 %v127
    %v1024 = vunpack.c.l.b16 %v128
    %v1025 = vunpack.c.h.b16 %v128
    %v1026 = vunpack.c.l.b16 %v129
    %v1027 = vunpack.c.h.b16 %v129
    %v1028 = vunpack.c.l.b16 %v130
    %v1029 = vunpack.c.h.b16 %v130
    %v1030 = vunpack.c.l.b16 %v131
    %v1031 = vunpack.c.h.b16 %v131
    %v1032 = vunpack.c.l.b16 %v132
    %v1033 = vunpack.c.h.b16 %v132
    %v1034 = vunpack.c.l.b16 %v133
    %v1035 = vunpack.c.h.b16 %v133
    %v1036 = vunpack.c.l.b16 %v134
    %v1037 = vunpack.c.h.b16 %v134
    %v1038 = vunpack.c.l.b16 %v135
    %v1039 = vunpack.c.h.b16 %v135
    %v1040 = vunpack.c.l.b16 %v136
    %v1041 = vunpack.c.h.b16 %v136
    %v1042 = vunpack.c.l.b16 %v137
    %v1043 = vunpack.c.h.b16 %v137
    %v1044 = vunpack.c.l.b16 %v138
    %v1045 = vunpack.c.h.b16 %v138
    %v1046 = vunpack.c.l.b16 %v139
    %v1047 = vunpack.c.h.b16 %v139
    %v1048 = vunpack.c.l.b16 %v140
    %v1049 = vunpack.c.h.b16 %v140
    %v1050 = vunpack.c.l.b16 %v141
    %v1051 = vunpack.c.h.b16 %v141
    %v1052 = vunpack.c.l.b16 %v142
    %v1053 = vunpack.c.h.b16 %v142
    %v1054 = vunpack.c.l.b16 %v143
    %v1055 = vunpack.c.h.b16 %v143
    %v1056 = vunpack.c.l.b16 %v144
    %v1057 = vunpack.c.h.b16 %v144
    %v1058 = vunpack.c.l.b16 %v145
    %v1059 = vunpack.c.h.b16 %v145
    %v1060 = vunpack.c.l.b16 %v146
    %v1061 = vunpack.c.h.b16 %v146
    %v1062 = vunpack.c.l.b16 %v147
    %v1063 = vunpack.c.h.b16 %v147
    %v1064 = vunpack.c.l.b16 %v148
    %v1065 = vunpack.c.h.b16 %v148
    %v1066 = vunpack.c.l.b16 %v149
    %v1067 = vunpack.c.h.b16 %v149
    %v1068 = vunpack.c.l.b16 %v150
    %v1069 = vunpack.c.h.b16 %v150
    %v1070 = vunpack.c.l.b16 %v151
    %v1071 = vunpack.c.h.b16 %v151
    %v1072 = vunpack.c.l.b16 %v152
    %v1073 = vunpack.c.h.b16 %v152
    %v1074 = vunpack.c.l.b16 %v153
    %v1075 = vunpack.c.h.b16 %v153
    %v1076 = vunpack.c.l.b16 %v154
    %v1077 = vunpack.c.h.b16 %v154
    %v1078 = vunpack.c.l.b16 %v155
    %v1079 = vunpack.c.h.b16 %v155
    %v1080 = vunpack.c.l.b16 %v156
    %v1081 = vunpack.c.h.b16 %v156
    %v1082 = vunpack.c.l.b16 %v157
    %v1083 = vunpack.c.h.b16 %v157
    %v1084 = vunpack.c.l.b16 %v158
    %v1085 = vunpack.c.h.b16 %v158
    %v1086 = vunpack.c.l.b16 %v159
    %v1087 = vunpack.c.h.b16 %v159
    %v1088 = vunpack.c.l.b16 %v160
    %v1089 = vunpack.c.h.b16 %v160
    %v1090 = vunpack.c.l.b16 %v161
    %v1091 = vunpack.c.h.b16 %v161
    %v1092 = vunpack.c.l.b16 %v162
    %v1093 = vunpack.c.h.b16 %v162
    %v1094 = vunpack.c.l.b16 %v163
    %v1095 = vunpack.c.h.b16 %v163
    %v1096 = vunpack.c.l.b16 %v164
    %v1097 = vunpack.c.h.b16 %v164
    %v1098 = vpack.c.b16 %v908, %v906
    %v1099 = vpack.c.b16 %v909, %v907
    %v1100 = vpack.c.b16 %v912, %v910
    %v1101 = vpack.c.b16 %v913, %v911
    %v1102 = vpack.c.b16 %v916, %v914
    %v1103 = vpack.c.b16 %v917, %v915
    %v1104 = vpack.c.b16 %v920, %v918
    %v1105 = vpack.c.b16 %v921, %v919
    %v1106 = vpack.c.b16 %v924, %v922
    %v1107 = vpack.c.b16 %v925, %v923
    %v1108 = vpack.c.b16 %v928, %v926
    %v1109 = vpack.c.b16 %v929, %v927
    %v1110 = vpack.c.b16 %v932, %v930
    %v1111 = vpack.c.b16 %v933, %v931
    %v1112 = vpack.c.b16 %v936, %v934
    %v1113 = vpack.c.b16 %v937, %v935
    %v1114 = vpack.c.b16 %v940, %v938
    %v1115 = vpack.c.b16 %v941, %v939
    %v1116 = vpack.c.b16 %v944, %v942
    %v1117 = vpack.c.b16 %v945, %v943
    %v1118 = vpack.c.b16 %v948, %v946
    %v1119 = vpack.c.b16 %v949, %v947
    %v1120 = vpack.c.b16 %v952, %v950
    %v1121 = vpack.c.b16 %v953, %v951
    %v1122 = vpack.c.b16 %v956, %v954
    %v1123 = vpack.c.b16 %v957, %v955
    %v1124 = vpack.c.b16 %v960, %v958
    %v1125 = vpack.c.b16 %v961, %v959
    %v1126 = vpack.c.b16 %v964, %v962
    %v1127 = vpack.c.b16 %v965, %v963
    %v1128 = vpack.c.b16 %v968, %v966
    %v1129 = vpack.c.b16 %v969, %v967
    %v1130 = vpack.c.b16 %v972, %v970
    %v1131 = vpack.c.b16 %v973, %v971
    %v1132 = vpack.c.b16 %v976, %v974
    %v1133 = vpack.c.b16 %v977, %v975
    %v1134 = vpack.c.b16 %v980, %v978
    %v1135 = vpack.c.b16 %v981, %v979
    %v1136 = vpack.c.b16 %v984, %v982
    %v1137 = vpack.c.b16 %v985, %v983
    %v1138 = vpack.c.b16 %v988, %v986
    %v1139 = vpack.c.b16 %v989, %v987
    %v1140 = vpack.c.b16 %v992, %v990
    %v1141 = vpack.c.b16 %v993, %v991
    %v1142 = vpack.c.b16 %v996, %v994
    %v1143 = vpack.c.b16 %v997, %v995
    %v1144 = vpack.c.b16 %v1000, %v998
    %v1145 = vpack.c.b16 %v1001, %v999
    %v1146 = vpack.c.b16 %v1004, %v1002
    %v1147 = vpack.c.b16 %v1005, %v1003
    %v1148 = vpack.c.b16 %v1008, %v1006
    %v1149 = vpack.c.b16 %v1009, %v1007
    %v1150 = vpack.c.b16 %v1012, %v1010
    %v1151 = vpack.c.b16 %v1013, %v1011
    %v1152 = vpack.c.b16 %v1016, %v1014
    %v1153 = vpack.c.b16 %v1017, %v1015
    %v1154 = vpack.c.b16 %v1020, %v1018
    %v1155 = vpack.c.b16 %v1021, %v1019
    %v1156 = vpack.c.b16 %v1024, %v1022
    %v1157 = vpack.c.b16 %v1025, %v1023
    %v1158 = vpack.c.b16 %v1028, %v1026
    %v1159 = vpack.c.b16 %v1029, %v1027
    %v1160 = vpack.c.b16 %v1032, %v1030
    %v1161 = vpack.c.b16 %v1033, %v1031
    %v1162 = vpack.c.b16 %v1036, %v1034
    %v1163 = vpack.c.b16 %v1037, %v1035
    %v1164 = vpack.c.b16 %v1040, %v1038
    %v1165 = vpack.c.b16 %v1041, %v1039
    %v1166 = vpack.c.b16 %v1044, %v1042
    %v1167 = vpack.c.b16 %v1045, %v1043
    %v1168 = vpack.c.b16 %v1048, %v1046
    %v1169 = vpack.c.b16 %v1049, %v1047
    %v1170 = vpack.c.b16 %v1052, %v1050
    %v1171 = vpack.c.b16 %v1053, %v1051
    %v1172 = vpack.c.b16 %v1056, %v1054
    %v1173 = vpack.c.b16 %v1057, %v1055
    %v1174 = vpack.c.b16 %v1060, %v1058
    %v1175 = vpack.c.b16 %v1061, %v1059
    %v1176 = vpack.c.b16 %v1064, %v1062
    %v1177 = vpack.c.b16 %v1065, %v1063
    %v1178 = vpack.c.b16 %v1068, %v1066
    %v1179 = vpack.c.b16 %v1069, %v1067
    %v1180 = vpack.c.b16 %v1072, %v1070
    %v1181 = vpack.c.b16 %v1073, %v1071
    %v1182 = vpack.c.b16 %v1076, %v1074
    %v1183 = vpack.c.b16 %v1077, %v1075
    %v1184 = vpack.c.b16 %v1080, %v1078
    %v1185 = vpack.c.b16 %v1081, %v1079
    %v1186 = vpack.c.b16 %v1084, %v1082
    %v1187 = vpack.c.b16 %v1085, %v1083
    %v1188 = vpack.c.b16 %v1088, %v1086
    %v1189 = vpack.c.b16 %v1089, %v1087
    %v1190 = vpack.c.b16 %v1092, %v1090
    %v1191 = vpack.c.b16 %v1093, %v1091
    %v1192 = vpack.c.b16 %v1096, %v1094
    %v1193 = vpack.c.b16 %v1097, %v1095
    %1290 = vmatprep.subr.bf16.mxu0 %v1113
    %1291 = vmatpush1.bf16.msra.mxu0 %v1112
    %1292 = vmatprep.subr.bf16.mxu0 %v1111
    %1293 = vmatpush1.bf16.msra.mxu0 %v1110
    %1294 = vmatprep.subr.bf16.mxu0 %v1109
    %1295 = vmatpush1.bf16.msra.mxu0 %v1108
    %1296 = vmatprep.subr.bf16.mxu0 %v1107
    %1297 = vmatpush1.bf16.msra.mxu0 %v1106
    %1298 = vmatprep.subr.bf16.mxu0 %v1105
    %1299 = vmatpush1.bf16.msra.mxu0 %v1104
    %1300 = vmatprep.subr.bf16.mxu0 %v1103
    %1301 = vmatpush1.bf16.msra.mxu0 %v1102
    %1302 = vmatprep.subr.bf16.mxu0 %v1101
    %1303 = vmatpush1.bf16.msra.mxu0 %v1100
    %1304 = vmatprep.subr.bf16.mxu0 %v1099
    %1305 = vmatpush1.bf16.msra.mxu0 %v1098
    %1306 = vmatprep.subr.bf16.mxu0 %v1129
    %1307 = vmatpush2.bf16.msra.mxu0 %v1128
    %1308 = vmatprep.subr.bf16.mxu0 %v1127
    %1309 = vmatpush2.bf16.msra.mxu0 %v1126
    %1310 = vmatprep.subr.bf16.mxu0 %v1125
    %1311 = vmatpush2.bf16.msra.mxu0 %v1124
    %1312 = vmatprep.subr.bf16.mxu0 %v1123
    %1313 = vmatpush2.bf16.msra.mxu0 %v1122
    %1314 = vmatprep.subr.bf16.mxu0 %v1121
    %1315 = vmatpush2.bf16.msra.mxu0 %v1120
    %1316 = vmatprep.subr.bf16.mxu0 %v1119
    %1317 = vmatpush2.bf16.msra.mxu0 %v1118
    %1318 = vmatprep.subr.bf16.mxu0 %v1117
    %1319 = vmatpush2.bf16.msra.mxu0 %v1116
    %1320 = vmatprep.subr.bf16.mxu0 %v1115
    %1321 = vmatpush2.bf16.msra.mxu0 %v1114
    %1322 = vmatprep.mubr.bf16.mxu0 %v730
    %1323 = vmatmul.mubr.bf16.gmra.mxu0 %v729
    %v1324 = vpop.f32.mrf.mxu0
    %v1325 = vadd.f32 %v803, %v1324
    %v1326 = vpop.f32.mrf.mxu0
    %v1327 = vadd.f32 %v807, %v1326
    %v1328 = vpop.f32.mrf.mxu0
    %v1329 = vpop.f32.mrf.mxu0
    %1330 = vdwg.mxu0
    %1331 = vmatprep.subr.bf16.mxu0 %v1145
    %1332 = vmatpush1.bf16.msra.mxu0 %v1144
    %1333 = vmatprep.subr.bf16.mxu0 %v1143
    %1334 = vmatpush1.bf16.msra.mxu0 %v1142
    %1335 = vmatprep.subr.bf16.mxu0 %v1141
    %1336 = vmatpush1.bf16.msra.mxu0 %v1140
    %1337 = vmatprep.subr.bf16.mxu0 %v1139
    %1338 = vmatpush1.bf16.msra.mxu0 %v1138
    %1339 = vmatprep.subr.bf16.mxu0 %v1137
    %1340 = vmatpush1.bf16.msra.mxu0 %v1136
    %1341 = vmatprep.subr.bf16.mxu0 %v1135
    %1342 = vmatpush1.bf16.msra.mxu0 %v1134
    %1343 = vmatprep.subr.bf16.mxu0 %v1133
    %1344 = vmatpush1.bf16.msra.mxu0 %v1132
    %1345 = vmatprep.subr.bf16.mxu0 %v1131
    %1346 = vmatpush1.bf16.msra.mxu0 %v1130
    %1347 = vmatprep.subr.bf16.mxu0 %v1161
    %1348 = vmatpush2.bf16.msra.mxu0 %v1160
    %1349 = vmatprep.subr.bf16.mxu0 %v1159
    %1350 = vmatpush2.bf16.msra.mxu0 %v1158
    %1351 = vmatprep.subr.bf16.mxu0 %v1157
    %1352 = vmatpush2.bf16.msra.mxu0 %v1156
    %1353 = vmatprep.subr.bf16.mxu0 %v1155
    %1354 = vmatpush2.bf16.msra.mxu0 %v1154
    %1355 = vmatprep.subr.bf16.mxu0 %v1153
    %1356 = vmatpush2.bf16.msra.mxu0 %v1152
    %1357 = vmatprep.subr.bf16.mxu0 %v1151
    %1358 = vmatpush2.bf16.msra.mxu0 %v1150
    %1359 = vmatprep.subr.bf16.mxu0 %v1149
    %1360 = vmatpush2.bf16.msra.mxu0 %v1148
    %1361 = vmatprep.subr.bf16.mxu0 %v1147
    %1362 = vmatpush2.bf16.msra.mxu0 %v1146
    %1363 = vmatprep.mubr.bf16.mxu0 %v732
    %1364 = vmatmul.mubr.bf16.gmra.mxu0 %v731
    %v1365 = vpop.f32.mrf.mxu0
    %v1366 = vadd.f32 %v1325, %v1365
    %v1367 = vpop.f32.mrf.mxu0
    %v1368 = vadd.f32 %v1327, %v1367
    %v1369 = vpop.f32.mrf.mxu0
    %v1370 = vpop.f32.mrf.mxu0
    %1371 = vdwg.mxu0
    %1372 = vmatprep.subr.bf16.mxu0 %v1177
    %1373 = vmatpush1.bf16.msra.mxu0 %v1176
    %1374 = vmatprep.subr.bf16.mxu0 %v1175
    %1375 = vmatpush1.bf16.msra.mxu0 %v1174
    %1376 = vmatprep.subr.bf16.mxu0 %v1173
    %1377 = vmatpush1.bf16.msra.mxu0 %v1172
    %1378 = vmatprep.subr.bf16.mxu0 %v1171
    %1379 = vmatpush1.bf16.msra.mxu0 %v1170
    %1380 = vmatprep.subr.bf16.mxu0 %v1169
    %1381 = vmatpush1.bf16.msra.mxu0 %v1168
    %1382 = vmatprep.subr.bf16.mxu0 %v1167
    %1383 = vmatpush1.bf16.msra.mxu0 %v1166
    %1384 = vmatprep.subr.bf16.mxu0 %v1165
    %1385 = vmatpush1.bf16.msra.mxu0 %v1164
    %1386 = vmatprep.subr.bf16.mxu0 %v1163
    %1387 = vmatpush1.bf16.msra.mxu0 %v1162
    %1388 = vmatprep.subr.bf16.mxu0 %v1193
    %1389 = vmatpush2.bf16.msra.mxu0 %v1192
    %1390 = vmatprep.subr.bf16.mxu0 %v1191
    %1391 = vmatpush2.bf16.msra.mxu0 %v1190
    %1392 = vmatprep.subr.bf16.mxu0 %v1189
    %1393 = vmatpush2.bf16.msra.mxu0 %v1188
    %1394 = vmatprep.subr.bf16.mxu0 %v1187
    %1395 = vmatpush2.bf16.msra.mxu0 %v1186
    %1396 = vmatprep.subr.bf16.mxu0 %v1185
    %1397 = vmatpush2.bf16.msra.mxu0 %v1184
    %1398 = vmatprep.subr.bf16.mxu0 %v1183
    %1399 = vmatpush2.bf16.msra.mxu0 %v1182
    %1400 = vmatprep.subr.bf16.mxu0 %v1181
    %1401 = vmatpush2.bf16.msra.mxu0 %v1180
    %1402 = vmatprep.subr.bf16.mxu0 %v1179
    %1403 = vmatpush2.bf16.msra.mxu0 %v1178
    %1404 = vmatprep.mubr.bf16.mxu0 %v734
    %1405 = vmatmul.mubr.bf16.gmra.mxu0 %v733
    %v1406 = vpop.f32.mrf.mxu0
    %v1407 = vadd.f32 %v1366, %v1406
    %v1408 = vpop.f32.mrf.mxu0
    %v1409 = vadd.f32 %v1368, %v1408
    %v1410 = vpop.f32.mrf.mxu0
    %v1411 = vpop.f32.mrf.mxu0
    %1412 = vdwg.mxu0
    %v1413 = vmax.f32 %v1407, 0.0
    %v1414 = vmax.f32 %v1409, 0.0
    %1415 = vmatprep.subr.mxu0 0.0
    %1416 = vmatpush1.msra.mxu0 %v692
    %1417 = vmatprep.subr.mxu0 0.0
    %1418 = vmatpush1.msra.mxu0 %v691
    %1419 = vmatprep.subr.mxu0 0.0
    %1420 = vmatpush1.msra.mxu0 %v690
    %1421 = vmatprep.subr.mxu0 0.0
    %1422 = vmatpush1.msra.mxu0 %v689
    %1423 = vmatprep.subr.mxu0 0.0
    %1424 = vmatpush1.msra.mxu0 %v688
    %1425 = vmatprep.subr.mxu0 0.0
    %1426 = vmatpush1.msra.mxu0 %v687
    %1427 = vmatprep.subr.mxu0 0.0
    %1428 = vmatpush1.msra.mxu0 %v686
    %1429 = vmatprep.subr.mxu0 0.0
    %1430 = vmatpush1.msra.mxu0 %v685
    %1431 = vmatprep.subr.mxu0 0.0
    %1432 = vmatpush1.msra.mxu0 %v684
    %1433 = vmatprep.subr.mxu0 0.0
    %1434 = vmatpush1.msra.mxu0 %v683
    %1435 = vmatprep.subr.mxu0 0.0
    %1436 = vmatpush1.msra.mxu0 %v682
    %1437 = vmatprep.subr.mxu0 0.0
    %1438 = vmatpush1.msra.mxu0 %v681
    %1439 = vmatprep.subr.mxu0 0.0
    %1440 = vmatpush1.msra.mxu0 %v680
    %1441 = vmatprep.subr.mxu0 0.0
    %1442 = vmatpush1.msra.mxu0 %v679
    %1443 = vmatprep.subr.mxu0 0.0
    %1444 = vmatpush1.msra.mxu0 %v678
    %1445 = vmatprep.subr.mxu0 0.0
    %1446 = vmatpush1.msra.mxu0 %v677
    %1447 = vmatprep.subr.mxu0 0.0
    %1448 = vmatpush2.msra.mxu0 %v708
    %1449 = vmatprep.subr.mxu0 0.0
    %1450 = vmatpush2.msra.mxu0 %v707
    %1451 = vmatprep.subr.mxu0 0.0
    %1452 = vmatpush2.msra.mxu0 %v706
    %1453 = vmatprep.subr.mxu0 0.0
    %1454 = vmatpush2.msra.mxu0 %v705
    %1455 = vmatprep.subr.mxu0 0.0
    %1456 = vmatpush2.msra.mxu0 %v704
    %1457 = vmatprep.subr.mxu0 0.0
    %1458 = vmatpush2.msra.mxu0 %v703
    %1459 = vmatprep.subr.mxu0 0.0
    %1460 = vmatpush2.msra.mxu0 %v702
    %1461 = vmatprep.subr.mxu0 0.0
    %1462 = vmatpush2.msra.mxu0 %v701
    %1463 = vmatprep.subr.mxu0 0.0
    %1464 = vmatpush2.msra.mxu0 %v700
    %1465 = vmatprep.subr.mxu0 0.0
    %1466 = vmatpush2.msra.mxu0 %v699
    %1467 = vmatprep.subr.mxu0 0.0
    %1468 = vmatpush2.msra.mxu0 %v698
    %1469 = vmatprep.subr.mxu0 0.0
    %1470 = vmatpush2.msra.mxu0 %v697
    %1471 = vmatprep.subr.mxu0 0.0
    %1472 = vmatpush2.msra.mxu0 %v696
    %1473 = vmatprep.subr.mxu0 0.0
    %1474 = vmatpush2.msra.mxu0 %v695
    %1475 = vmatprep.subr.mxu0 0.0
    %1476 = vmatpush2.msra.mxu0 %v694
    %1477 = vmatprep.subr.mxu0 0.0
    %1478 = vmatpush2.msra.mxu0 %v693
    %1479 = vmatprep.mubr.f32.mxu0 %v1414
    %1480 = vmatmul.mubr.f32.gmra.mxu0 %v1413
    %v1481 = vpop.f32.mrf.mxu0
    %v1482 = vadd.f32 %v721, %v1481
    %v1483 = vpop.f32.mrf.mxu0
    %1484 = vdwg.mxu0
    %v1485 = vmax.f32 %v1482, 0.0
    %v1487 = vlaneseq
    %v1488 = vshrl.u32 %v1487, 7
    %v1489 = vsub.s32 0, %v1488
    %v1490 = vrot.slane %v720, %v1489
    %v1491 = vlaneseq
    %v1492 = vshrl.u32 %v1491, 7
    %v1493 = vsub.s32 1, %v1492
    %v1494 = vrot.slane %v720, %v1493
    %v2009 = vunpack.c.l.b16 %v165
    %v2010 = vunpack.c.h.b16 %v165
    %v2011 = vunpack.c.l.b16 %v166
    %v2012 = vunpack.c.h.b16 %v166
    %v2013 = vunpack.c.l.b16 %v167
    %v2014 = vunpack.c.h.b16 %v167
    %v2015 = vunpack.c.l.b16 %v168
    %v2016 = vunpack.c.h.b16 %v168
    %v2017 = vunpack.c.l.b16 %v169
    %v2018 = vunpack.c.h.b16 %v169
    %v2019 = vunpack.c.l.b16 %v170
    %v2020 = vunpack.c.h.b16 %v170
    %v2021 = vunpack.c.l.b16 %v171
    %v2022 = vunpack.c.h.b16 %v171
    %v2023 = vunpack.c.l.b16 %v172
    %v2024 = vunpack.c.h.b16 %v172
    %v2025 = vunpack.c.l.b16 %v173
    %v2026 = vunpack.c.h.b16 %v173
    %v2027 = vunpack.c.l.b16 %v174
    %v2028 = vunpack.c.h.b16 %v174
    %v2029 = vunpack.c.l.b16 %v175
    %v2030 = vunpack.c.h.b16 %v175
    %v2031 = vunpack.c.l.b16 %v176
    %v2032 = vunpack.c.h.b16 %v176
    %v2033 = vunpack.c.l.b16 %v177
    %v2034 = vunpack.c.h.b16 %v177
    %v2035 = vunpack.c.l.b16 %v178
    %v2036 = vunpack.c.h.b16 %v178
    %v2037 = vunpack.c.l.b16 %v179
    %v2038 = vunpack.c.h.b16 %v179
    %v2039 = vunpack.c.l.b16 %v180
    %v2040 = vunpack.c.h.b16 %v180
    %v2041 = vunpack.c.l.b16 %v181
    %v2042 = vunpack.c.h.b16 %v181
    %v2043 = vunpack.c.l.b16 %v182
    %v2044 = vunpack.c.h.b16 %v182
    %v2045 = vunpack.c.l.b16 %v183
    %v2046 = vunpack.c.h.b16 %v183
    %v2047 = vunpack.c.l.b16 %v184
    %v2048 = vunpack.c.h.b16 %v184
    %v2049 = vunpack.c.l.b16 %v185
    %v2050 = vunpack.c.h.b16 %v185
    %v2051 = vunpack.c.l.b16 %v186
    %v2052 = vunpack.c.h.b16 %v186
    %v2053 = vunpack.c.l.b16 %v187
    %v2054 = vunpack.c.h.b16 %v187
    %v2055 = vunpack.c.l.b16 %v188
    %v2056 = vunpack.c.h.b16 %v188
    %v2057 = vunpack.c.l.b16 %v189
    %v2058 = vunpack.c.h.b16 %v189
    %v2059 = vunpack.c.l.b16 %v190
    %v2060 = vunpack.c.h.b16 %v190
    %v2061 = vunpack.c.l.b16 %v191
    %v2062 = vunpack.c.h.b16 %v191
    %v2063 = vunpack.c.l.b16 %v192
    %v2064 = vunpack.c.h.b16 %v192
    %v2065 = vunpack.c.l.b16 %v193
    %v2066 = vunpack.c.h.b16 %v193
    %v2067 = vunpack.c.l.b16 %v194
    %v2068 = vunpack.c.h.b16 %v194
    %v2069 = vunpack.c.l.b16 %v195
    %v2070 = vunpack.c.h.b16 %v195
    %v2071 = vunpack.c.l.b16 %v196
    %v2072 = vunpack.c.h.b16 %v196
    %v2073 = vunpack.c.l.b16 %v197
    %v2074 = vunpack.c.h.b16 %v197
    %v2075 = vunpack.c.l.b16 %v198
    %v2076 = vunpack.c.h.b16 %v198
    %v2077 = vunpack.c.l.b16 %v199
    %v2078 = vunpack.c.h.b16 %v199
    %v2079 = vunpack.c.l.b16 %v200
    %v2080 = vunpack.c.h.b16 %v200
    %v2081 = vunpack.c.l.b16 %v201
    %v2082 = vunpack.c.h.b16 %v201
    %v2083 = vunpack.c.l.b16 %v202
    %v2084 = vunpack.c.h.b16 %v202
    %v2085 = vunpack.c.l.b16 %v203
    %v2086 = vunpack.c.h.b16 %v203
    %v2087 = vunpack.c.l.b16 %v204
    %v2088 = vunpack.c.h.b16 %v204
    %v2089 = vunpack.c.l.b16 %v205
    %v2090 = vunpack.c.h.b16 %v205
    %v2091 = vunpack.c.l.b16 %v206
    %v2092 = vunpack.c.h.b16 %v206
    %v2093 = vunpack.c.l.b16 %v207
    %v2094 = vunpack.c.h.b16 %v207
    %v2095 = vunpack.c.l.b16 %v208
    %v2096 = vunpack.c.h.b16 %v208
    %v2097 = vunpack.c.l.b16 %v209
    %v2098 = vunpack.c.h.b16 %v209
    %v2099 = vunpack.c.l.b16 %v210
    %v2100 = vunpack.c.h.b16 %v210
    %v2101 = vunpack.c.l.b16 %v211
    %v2102 = vunpack.c.h.b16 %v211
    %v2103 = vunpack.c.l.b16 %v212
    %v2104 = vunpack.c.h.b16 %v212
    %v2105 = vunpack.c.l.b16 %v213
    %v2106 = vunpack.c.h.b16 %v213
    %v2107 = vunpack.c.l.b16 %v214
    %v2108 = vunpack.c.h.b16 %v214
    %v2109 = vunpack.c.l.b16 %v215
    %v2110 = vunpack.c.h.b16 %v215
    %v2111 = vunpack.c.l.b16 %v216
    %v2112 = vunpack.c.h.b16 %v216
    %v2113 = vunpack.c.l.b16 %v217
    %v2114 = vunpack.c.h.b16 %v217
    %v2115 = vunpack.c.l.b16 %v218
    %v2116 = vunpack.c.h.b16 %v218
    %v2117 = vunpack.c.l.b16 %v219
    %v2118 = vunpack.c.h.b16 %v219
    %v2119 = vunpack.c.l.b16 %v220
    %v2120 = vunpack.c.h.b16 %v220
    %v2121 = vunpack.c.l.b16 %v221
    %v2122 = vunpack.c.h.b16 %v221
    %v2123 = vunpack.c.l.b16 %v222
    %v2124 = vunpack.c.h.b16 %v222
    %v2125 = vunpack.c.l.b16 %v223
    %v2126 = vunpack.c.h.b16 %v223
    %v2127 = vunpack.c.l.b16 %v224
    %v2128 = vunpack.c.h.b16 %v224
    %v2129 = vunpack.c.l.b16 %v225
    %v2130 = vunpack.c.h.b16 %v225
    %v2131 = vunpack.c.l.b16 %v226
    %v2132 = vunpack.c.h.b16 %v226
    %v2133 = vunpack.c.l.b16 %v227
    %v2134 = vunpack.c.h.b16 %v227
    %v2135 = vunpack.c.l.b16 %v228
    %v2136 = vunpack.c.h.b16 %v228
    %v2137 = vunpack.c.l.b16 %v229
    %v2138 = vunpack.c.h.b16 %v229
    %v2139 = vunpack.c.l.b16 %v230
    %v2140 = vunpack.c.h.b16 %v230
    %v2141 = vunpack.c.l.b16 %v231
    %v2142 = vunpack.c.h.b16 %v231
    %v2143 = vunpack.c.l.b16 %v232
    %v2144 = vunpack.c.h.b16 %v232
    %v2145 = vunpack.c.l.b16 %v233
    %v2146 = vunpack.c.h.b16 %v233
    %v2147 = vunpack.c.l.b16 %v234
    %v2148 = vunpack.c.h.b16 %v234
    %v2149 = vunpack.c.l.b16 %v235
    %v2150 = vunpack.c.h.b16 %v235
    %v2151 = vunpack.c.l.b16 %v236
    %v2152 = vunpack.c.h.b16 %v236
    %v2153 = vunpack.c.l.b16 %v237
    %v2154 = vunpack.c.h.b16 %v237
    %v2155 = vunpack.c.l.b16 %v238
    %v2156 = vunpack.c.h.b16 %v238
    %v2157 = vunpack.c.l.b16 %v239
    %v2158 = vunpack.c.h.b16 %v239
    %v2159 = vunpack.c.l.b16 %v240
    %v2160 = vunpack.c.h.b16 %v240
    %v2161 = vunpack.c.l.b16 %v241
    %v2162 = vunpack.c.h.b16 %v241
    %v2163 = vunpack.c.l.b16 %v242
    %v2164 = vunpack.c.h.b16 %v242
    %v2165 = vunpack.c.l.b16 %v243
    %v2166 = vunpack.c.h.b16 %v243
    %v2167 = vunpack.c.l.b16 %v244
    %v2168 = vunpack.c.h.b16 %v244
    %v2169 = vunpack.c.l.b16 %v245
    %v2170 = vunpack.c.h.b16 %v245
    %v2171 = vunpack.c.l.b16 %v246
    %v2172 = vunpack.c.h.b16 %v246
    %v2173 = vunpack.c.l.b16 %v247
    %v2174 = vunpack.c.h.b16 %v247
    %v2175 = vunpack.c.l.b16 %v248
    %v2176 = vunpack.c.h.b16 %v248
    %v2177 = vunpack.c.l.b16 %v249
    %v2178 = vunpack.c.h.b16 %v249
    %v2179 = vunpack.c.l.b16 %v250
    %v2180 = vunpack.c.h.b16 %v250
    %v2181 = vunpack.c.l.b16 %v251
    %v2182 = vunpack.c.h.b16 %v251
    %v2183 = vunpack.c.l.b16 %v252
    %v2184 = vunpack.c.h.b16 %v252
    %v2185 = vunpack.c.l.b16 %v253
    %v2186 = vunpack.c.h.b16 %v253
    %v2187 = vunpack.c.l.b16 %v254
    %v2188 = vunpack.c.h.b16 %v254
    %v2189 = vunpack.c.l.b16 %v255
    %v2190 = vunpack.c.h.b16 %v255
    %v2191 = vunpack.c.l.b16 %v256
    %v2192 = vunpack.c.h.b16 %v256
    %v2193 = vunpack.c.l.b16 %v257
    %v2194 = vunpack.c.h.b16 %v257
    %v2195 = vunpack.c.l.b16 %v258
    %v2196 = vunpack.c.h.b16 %v258
    %v2197 = vunpack.c.l.b16 %v259
    %v2198 = vunpack.c.h.b16 %v259
    %v2199 = vunpack.c.l.b16 %v260
    %v2200 = vunpack.c.h.b16 %v260
    %v2201 = vunpack.c.l.b16 %v261
    %v2202 = vunpack.c.h.b16 %v261
    %v2203 = vunpack.c.l.b16 %v262
    %v2204 = vunpack.c.h.b16 %v262
    %v2205 = vunpack.c.l.b16 %v263
    %v2206 = vunpack.c.h.b16 %v263
    %v2207 = vunpack.c.l.b16 %v264
    %v2208 = vunpack.c.h.b16 %v264
    %v2209 = vunpack.c.l.b16 %v265
    %v2210 = vunpack.c.h.b16 %v265
    %v2211 = vunpack.c.l.b16 %v266
    %v2212 = vunpack.c.h.b16 %v266
    %v2213 = vunpack.c.l.b16 %v267
    %v2214 = vunpack.c.h.b16 %v267
    %v2215 = vunpack.c.l.b16 %v268
    %v2216 = vunpack.c.h.b16 %v268
    %v2217 = vunpack.c.l.b16 %v269
    %v2218 = vunpack.c.h.b16 %v269
    %v2219 = vunpack.c.l.b16 %v270
    %v2220 = vunpack.c.h.b16 %v270
    %v2221 = vunpack.c.l.b16 %v271
    %v2222 = vunpack.c.h.b16 %v271
    %v2223 = vunpack.c.l.b16 %v272
    %v2224 = vunpack.c.h.b16 %v272
    %v2225 = vunpack.c.l.b16 %v273
    %v2226 = vunpack.c.h.b16 %v273
    %v2227 = vunpack.c.l.b16 %v274
    %v2228 = vunpack.c.h.b16 %v274
    %v2229 = vunpack.c.l.b16 %v275
    %v2230 = vunpack.c.h.b16 %v275
    %v2231 = vunpack.c.l.b16 %v276
    %v2232 = vunpack.c.h.b16 %v276
    %v2233 = vunpack.c.l.b16 %v277
    %v2234 = vunpack.c.h.b16 %v277
    %v2235 = vunpack.c.l.b16 %v278
    %v2236 = vunpack.c.h.b16 %v278
    %v2237 = vunpack.c.l.b16 %v279
    %v2238 = vunpack.c.h.b16 %v279
    %v2239 = vunpack.c.l.b16 %v280
    %v2240 = vunpack.c.h.b16 %v280
    %v2241 = vunpack.c.l.b16 %v281
    %v2242 = vunpack.c.h.b16 %v281
    %v2243 = vunpack.c.l.b16 %v282
    %v2244 = vunpack.c.h.b16 %v282
    %v2245 = vunpack.c.l.b16 %v283
    %v2246 = vunpack.c.h.b16 %v283
    %v2247 = vunpack.c.l.b16 %v284
    %v2248 = vunpack.c.h.b16 %v284
    %v2249 = vunpack.c.l.b16 %v285
    %v2250 = vunpack.c.h.b16 %v285
    %v2251 = vunpack.c.l.b16 %v286
    %v2252 = vunpack.c.h.b16 %v286
    %v2253 = vunpack.c.l.b16 %v287
    %v2254 = vunpack.c.h.b16 %v287
    %v2255 = vunpack.c.l.b16 %v288
    %v2256 = vunpack.c.h.b16 %v288
    %v2257 = vunpack.c.l.b16 %v289
    %v2258 = vunpack.c.h.b16 %v289
    %v2259 = vunpack.c.l.b16 %v290
    %v2260 = vunpack.c.h.b16 %v290
    %v2261 = vunpack.c.l.b16 %v291
    %v2262 = vunpack.c.h.b16 %v291
    %v2263 = vunpack.c.l.b16 %v292
    %v2264 = vunpack.c.h.b16 %v292
    %v2265 = vunpack.c.l.b16 %v293
    %v2266 = vunpack.c.h.b16 %v293
    %v2267 = vunpack.c.l.b16 %v294
    %v2268 = vunpack.c.h.b16 %v294
    %v2269 = vunpack.c.l.b16 %v295
    %v2270 = vunpack.c.h.b16 %v295
    %v2271 = vunpack.c.l.b16 %v296
    %v2272 = vunpack.c.h.b16 %v296
    %v2273 = vunpack.c.l.b16 %v297
    %v2274 = vunpack.c.h.b16 %v297
    %v2275 = vunpack.c.l.b16 %v298
    %v2276 = vunpack.c.h.b16 %v298
    %v2277 = vunpack.c.l.b16 %v299
    %v2278 = vunpack.c.h.b16 %v299
    %v2279 = vunpack.c.l.b16 %v300
    %v2280 = vunpack.c.h.b16 %v300
    %v2281 = vunpack.c.l.b16 %v301
    %v2282 = vunpack.c.h.b16 %v301
    %v2283 = vunpack.c.l.b16 %v302
    %v2284 = vunpack.c.h.b16 %v302
    %v2285 = vunpack.c.l.b16 %v303
    %v2286 = vunpack.c.h.b16 %v303
    %v2287 = vunpack.c.l.b16 %v304
    %v2288 = vunpack.c.h.b16 %v304
    %v2289 = vunpack.c.l.b16 %v305
    %v2290 = vunpack.c.h.b16 %v305
    %v2291 = vunpack.c.l.b16 %v306
    %v2292 = vunpack.c.h.b16 %v306
    %v2293 = vunpack.c.l.b16 %v307
    %v2294 = vunpack.c.h.b16 %v307
    %v2295 = vunpack.c.l.b16 %v308
    %v2296 = vunpack.c.h.b16 %v308
    %v2297 = vunpack.c.l.b16 %v309
    %v2298 = vunpack.c.h.b16 %v309
    %v2299 = vunpack.c.l.b16 %v310
    %v2300 = vunpack.c.h.b16 %v310
    %v2301 = vunpack.c.l.b16 %v311
    %v2302 = vunpack.c.h.b16 %v311
    %v2303 = vunpack.c.l.b16 %v312
    %v2304 = vunpack.c.h.b16 %v312
    %v2305 = vunpack.c.l.b16 %v313
    %v2306 = vunpack.c.h.b16 %v313
    %v2307 = vunpack.c.l.b16 %v314
    %v2308 = vunpack.c.h.b16 %v314
    %v2309 = vunpack.c.l.b16 %v315
    %v2310 = vunpack.c.h.b16 %v315
    %v2311 = vunpack.c.l.b16 %v316
    %v2312 = vunpack.c.h.b16 %v316
    %v2313 = vunpack.c.l.b16 %v317
    %v2314 = vunpack.c.h.b16 %v317
    %v2315 = vunpack.c.l.b16 %v318
    %v2316 = vunpack.c.h.b16 %v318
    %v2317 = vunpack.c.l.b16 %v319
    %v2318 = vunpack.c.h.b16 %v319
    %v2319 = vunpack.c.l.b16 %v320
    %v2320 = vunpack.c.h.b16 %v320
    %v2321 = vunpack.c.l.b16 %v321
    %v2322 = vunpack.c.h.b16 %v321
    %v2323 = vunpack.c.l.b16 %v322
    %v2324 = vunpack.c.h.b16 %v322
    %v2325 = vunpack.c.l.b16 %v323
    %v2326 = vunpack.c.h.b16 %v323
    %v2327 = vunpack.c.l.b16 %v324
    %v2328 = vunpack.c.h.b16 %v324
    %v2329 = vunpack.c.l.b16 %v325
    %v2330 = vunpack.c.h.b16 %v325
    %v2331 = vunpack.c.l.b16 %v326
    %v2332 = vunpack.c.h.b16 %v326
    %v2333 = vunpack.c.l.b16 %v327
    %v2334 = vunpack.c.h.b16 %v327
    %v2335 = vunpack.c.l.b16 %v328
    %v2336 = vunpack.c.h.b16 %v328
    %v2337 = vunpack.c.l.b16 %v329
    %v2338 = vunpack.c.h.b16 %v329
    %v2339 = vunpack.c.l.b16 %v330
    %v2340 = vunpack.c.h.b16 %v330
    %v2341 = vunpack.c.l.b16 %v331
    %v2342 = vunpack.c.h.b16 %v331
    %v2343 = vunpack.c.l.b16 %v332
    %v2344 = vunpack.c.h.b16 %v332
    %v2345 = vunpack.c.l.b16 %v333
    %v2346 = vunpack.c.h.b16 %v333
    %v2347 = vunpack.c.l.b16 %v334
    %v2348 = vunpack.c.h.b16 %v334
    %v2349 = vunpack.c.l.b16 %v335
    %v2350 = vunpack.c.h.b16 %v335
    %v2351 = vunpack.c.l.b16 %v336
    %v2352 = vunpack.c.h.b16 %v336
    %v2353 = vunpack.c.l.b16 %v337
    %v2354 = vunpack.c.h.b16 %v337
    %v2355 = vunpack.c.l.b16 %v338
    %v2356 = vunpack.c.h.b16 %v338
    %v2357 = vunpack.c.l.b16 %v339
    %v2358 = vunpack.c.h.b16 %v339
    %v2359 = vunpack.c.l.b16 %v340
    %v2360 = vunpack.c.h.b16 %v340
    %v2361 = vunpack.c.l.b16 %v341
    %v2362 = vunpack.c.h.b16 %v341
    %v2363 = vunpack.c.l.b16 %v342
    %v2364 = vunpack.c.h.b16 %v342
    %v2365 = vunpack.c.l.b16 %v343
    %v2366 = vunpack.c.h.b16 %v343
    %v2367 = vunpack.c.l.b16 %v344
    %v2368 = vunpack.c.h.b16 %v344
    %v2369 = vunpack.c.l.b16 %v345
    %v2370 = vunpack.c.h.b16 %v345
    %v2371 = vunpack.c.l.b16 %v346
    %v2372 = vunpack.c.h.b16 %v346
    %v2373 = vunpack.c.l.b16 %v347
    %v2374 = vunpack.c.h.b16 %v347
    %v2375 = vunpack.c.l.b16 %v348
    %v2376 = vunpack.c.h.b16 %v348
    %v2377 = vunpack.c.l.b16 %v349
    %v2378 = vunpack.c.h.b16 %v349
    %v2379 = vunpack.c.l.b16 %v350
    %v2380 = vunpack.c.h.b16 %v350
    %v2381 = vunpack.c.l.b16 %v351
    %v2382 = vunpack.c.h.b16 %v351
    %v2383 = vunpack.c.l.b16 %v352
    %v2384 = vunpack.c.h.b16 %v352
    %v2385 = vunpack.c.l.b16 %v353
    %v2386 = vunpack.c.h.b16 %v353
    %v2387 = vunpack.c.l.b16 %v354
    %v2388 = vunpack.c.h.b16 %v354
    %v2389 = vunpack.c.l.b16 %v355
    %v2390 = vunpack.c.h.b16 %v355
    %v2391 = vunpack.c.l.b16 %v356
    %v2392 = vunpack.c.h.b16 %v356
    %v2393 = vunpack.c.l.b16 %v357
    %v2394 = vunpack.c.h.b16 %v357
    %v2395 = vunpack.c.l.b16 %v358
    %v2396 = vunpack.c.h.b16 %v358
    %v2397 = vunpack.c.l.b16 %v359
    %v2398 = vunpack.c.h.b16 %v359
    %v2399 = vunpack.c.l.b16 %v360
    %v2400 = vunpack.c.h.b16 %v360
    %v2401 = vunpack.c.l.b16 %v361
    %v2402 = vunpack.c.h.b16 %v361
    %v2403 = vunpack.c.l.b16 %v362
    %v2404 = vunpack.c.h.b16 %v362
    %v2405 = vunpack.c.l.b16 %v363
    %v2406 = vunpack.c.h.b16 %v363
    %v2407 = vunpack.c.l.b16 %v364
    %v2408 = vunpack.c.h.b16 %v364
    %v2409 = vunpack.c.l.b16 %v365
    %v2410 = vunpack.c.h.b16 %v365
    %v2411 = vunpack.c.l.b16 %v366
    %v2412 = vunpack.c.h.b16 %v366
    %v2413 = vunpack.c.l.b16 %v367
    %v2414 = vunpack.c.h.b16 %v367
    %v2415 = vunpack.c.l.b16 %v368
    %v2416 = vunpack.c.h.b16 %v368
    %v2417 = vunpack.c.l.b16 %v369
    %v2418 = vunpack.c.h.b16 %v369
    %v2419 = vunpack.c.l.b16 %v370
    %v2420 = vunpack.c.h.b16 %v370
    %v2421 = vunpack.c.l.b16 %v371
    %v2422 = vunpack.c.h.b16 %v371
    %v2423 = vunpack.c.l.b16 %v372
    %v2424 = vunpack.c.h.b16 %v372
    %v2425 = vunpack.c.l.b16 %v373
    %v2426 = vunpack.c.h.b16 %v373
    %v2427 = vunpack.c.l.b16 %v374
    %v2428 = vunpack.c.h.b16 %v374
    %v2429 = vunpack.c.l.b16 %v375
    %v2430 = vunpack.c.h.b16 %v375
    %v2431 = vunpack.c.l.b16 %v376
    %v2432 = vunpack.c.h.b16 %v376
    %v2433 = vunpack.c.l.b16 %v377
    %v2434 = vunpack.c.h.b16 %v377
    %v2435 = vunpack.c.l.b16 %v378
    %v2436 = vunpack.c.h.b16 %v378
    %v2437 = vunpack.c.l.b16 %v379
    %v2438 = vunpack.c.h.b16 %v379
    %v2439 = vunpack.c.l.b16 %v380
    %v2440 = vunpack.c.h.b16 %v380
    %v2441 = vunpack.c.l.b16 %v381
    %v2442 = vunpack.c.h.b16 %v381
    %v2443 = vunpack.c.l.b16 %v382
    %v2444 = vunpack.c.h.b16 %v382
    %v2445 = vunpack.c.l.b16 %v383
    %v2446 = vunpack.c.h.b16 %v383
    %v2447 = vunpack.c.l.b16 %v384
    %v2448 = vunpack.c.h.b16 %v384
    %v2449 = vunpack.c.l.b16 %v385
    %v2450 = vunpack.c.h.b16 %v385
    %v2451 = vunpack.c.l.b16 %v386
    %v2452 = vunpack.c.h.b16 %v386
    %v2453 = vunpack.c.l.b16 %v387
    %v2454 = vunpack.c.h.b16 %v387
    %v2455 = vunpack.c.l.b16 %v388
    %v2456 = vunpack.c.h.b16 %v388
    %v2457 = vunpack.c.l.b16 %v389
    %v2458 = vunpack.c.h.b16 %v389
    %v2459 = vunpack.c.l.b16 %v390
    %v2460 = vunpack.c.h.b16 %v390
    %v2461 = vunpack.c.l.b16 %v391
    %v2462 = vunpack.c.h.b16 %v391
    %v2463 = vunpack.c.l.b16 %v392
    %v2464 = vunpack.c.h.b16 %v392
    %v2465 = vunpack.c.l.b16 %v393
    %v2466 = vunpack.c.h.b16 %v393
    %v2467 = vunpack.c.l.b16 %v394
    %v2468 = vunpack.c.h.b16 %v394
    %v2469 = vunpack.c.l.b16 %v395
    %v2470 = vunpack.c.h.b16 %v395
    %v2471 = vunpack.c.l.b16 %v396
    %v2472 = vunpack.c.h.b16 %v396
    %v2473 = vunpack.c.l.b16 %v397
    %v2474 = vunpack.c.h.b16 %v397
    %v2475 = vunpack.c.l.b16 %v398
    %v2476 = vunpack.c.h.b16 %v398
    %v2477 = vunpack.c.l.b16 %v399
    %v2478 = vunpack.c.h.b16 %v399
    %v2479 = vunpack.c.l.b16 %v400
    %v2480 = vunpack.c.h.b16 %v400
    %v2481 = vunpack.c.l.b16 %v401
    %v2482 = vunpack.c.h.b16 %v401
    %v2483 = vunpack.c.l.b16 %v402
    %v2484 = vunpack.c.h.b16 %v402
    %v2485 = vunpack.c.l.b16 %v403
    %v2486 = vunpack.c.h.b16 %v403
    %v2487 = vunpack.c.l.b16 %v404
    %v2488 = vunpack.c.h.b16 %v404
    %v2489 = vunpack.c.l.b16 %v405
    %v2490 = vunpack.c.h.b16 %v405
    %v2491 = vunpack.c.l.b16 %v406
    %v2492 = vunpack.c.h.b16 %v406
    %v2493 = vunpack.c.l.b16 %v407
    %v2494 = vunpack.c.h.b16 %v407
    %v2495 = vunpack.c.l.b16 %v408
    %v2496 = vunpack.c.h.b16 %v408
    %v2497 = vunpack.c.l.b16 %v409
    %v2498 = vunpack.c.h.b16 %v409
    %v2499 = vunpack.c.l.b16 %v410
    %v2500 = vunpack.c.h.b16 %v410
    %v2501 = vunpack.c.l.b16 %v411
    %v2502 = vunpack.c.h.b16 %v411
    %v2503 = vunpack.c.l.b16 %v412
    %v2504 = vunpack.c.h.b16 %v412
    %v2505 = vunpack.c.l.b16 %v413
    %v2506 = vunpack.c.h.b16 %v413
    %v2507 = vunpack.c.l.b16 %v414
    %v2508 = vunpack.c.h.b16 %v414
    %v2509 = vunpack.c.l.b16 %v415
    %v2510 = vunpack.c.h.b16 %v415
    %v2511 = vunpack.c.l.b16 %v416
    %v2512 = vunpack.c.h.b16 %v416
    %v2513 = vunpack.c.l.b16 %v417
    %v2514 = vunpack.c.h.b16 %v417
    %v2515 = vunpack.c.l.b16 %v418
    %v2516 = vunpack.c.h.b16 %v418
    %v2517 = vunpack.c.l.b16 %v419
    %v2518 = vunpack.c.h.b16 %v419
    %v2519 = vunpack.c.l.b16 %v420
    %v2520 = vunpack.c.h.b16 %v420
    %v2521 = vunpack.c.l.b16 %v421
    %v2522 = vunpack.c.h.b16 %v421
    %v2523 = vunpack.c.l.b16 %v422
    %v2524 = vunpack.c.h.b16 %v422
    %v2525 = vunpack.c.l.b16 %v423
    %v2526 = vunpack.c.h.b16 %v423
    %v2527 = vunpack.c.l.b16 %v424
    %v2528 = vunpack.c.h.b16 %v424
    %v2529 = vunpack.c.l.b16 %v425
    %v2530 = vunpack.c.h.b16 %v425
    %v2531 = vunpack.c.l.b16 %v426
    %v2532 = vunpack.c.h.b16 %v426
    %v2533 = vunpack.c.l.b16 %v427
    %v2534 = vunpack.c.h.b16 %v427
    %v2535 = vunpack.c.l.b16 %v428
    %v2536 = vunpack.c.h.b16 %v428
    %v2537 = vunpack.c.l.b16 %v429
    %v2538 = vunpack.c.h.b16 %v429
    %v2539 = vunpack.c.l.b16 %v430
    %v2540 = vunpack.c.h.b16 %v430
    %v2541 = vunpack.c.l.b16 %v431
    %v2542 = vunpack.c.h.b16 %v431
    %v2543 = vunpack.c.l.b16 %v432
    %v2544 = vunpack.c.h.b16 %v432
    %v2545 = vunpack.c.l.b16 %v433
    %v2546 = vunpack.c.h.b16 %v433
    %v2547 = vunpack.c.l.b16 %v434
    %v2548 = vunpack.c.h.b16 %v434
    %v2549 = vunpack.c.l.b16 %v435
    %v2550 = vunpack.c.h.b16 %v435
    %v2551 = vunpack.c.l.b16 %v436
    %v2552 = vunpack.c.h.b16 %v436
    %v2553 = vunpack.c.l.b16 %v437
    %v2554 = vunpack.c.h.b16 %v437
    %v2555 = vunpack.c.l.b16 %v438
    %v2556 = vunpack.c.h.b16 %v438
    %v2557 = vunpack.c.l.b16 %v439
    %v2558 = vunpack.c.h.b16 %v439
    %v2559 = vunpack.c.l.b16 %v440
    %v2560 = vunpack.c.h.b16 %v440
    %v2561 = vunpack.c.l.b16 %v441
    %v2562 = vunpack.c.h.b16 %v441
    %v2563 = vunpack.c.l.b16 %v442
    %v2564 = vunpack.c.h.b16 %v442
    %v2565 = vunpack.c.l.b16 %v443
    %v2566 = vunpack.c.h.b16 %v443
    %v2567 = vunpack.c.l.b16 %v444
    %v2568 = vunpack.c.h.b16 %v444
    %v2569 = vunpack.c.l.b16 %v445
    %v2570 = vunpack.c.h.b16 %v445
    %v2571 = vunpack.c.l.b16 %v446
    %v2572 = vunpack.c.h.b16 %v446
    %v2573 = vunpack.c.l.b16 %v447
    %v2574 = vunpack.c.h.b16 %v447
    %v2575 = vunpack.c.l.b16 %v448
    %v2576 = vunpack.c.h.b16 %v448
    %v2577 = vunpack.c.l.b16 %v449
    %v2578 = vunpack.c.h.b16 %v449
    %v2579 = vunpack.c.l.b16 %v450
    %v2580 = vunpack.c.h.b16 %v450
    %v2581 = vunpack.c.l.b16 %v451
    %v2582 = vunpack.c.h.b16 %v451
    %v2583 = vunpack.c.l.b16 %v452
    %v2584 = vunpack.c.h.b16 %v452
    %v2585 = vunpack.c.l.b16 %v453
    %v2586 = vunpack.c.h.b16 %v453
    %v2587 = vunpack.c.l.b16 %v454
    %v2588 = vunpack.c.h.b16 %v454
    %v2589 = vunpack.c.l.b16 %v455
    %v2590 = vunpack.c.h.b16 %v455
    %v2591 = vunpack.c.l.b16 %v456
    %v2592 = vunpack.c.h.b16 %v456
    %v2593 = vunpack.c.l.b16 %v457
    %v2594 = vunpack.c.h.b16 %v457
    %v2595 = vunpack.c.l.b16 %v458
    %v2596 = vunpack.c.h.b16 %v458
    %v2597 = vunpack.c.l.b16 %v459
    %v2598 = vunpack.c.h.b16 %v459
    %v2599 = vunpack.c.l.b16 %v460
    %v2600 = vunpack.c.h.b16 %v460
    %v2601 = vunpack.c.l.b16 %v461
    %v2602 = vunpack.c.h.b16 %v461
    %v2603 = vunpack.c.l.b16 %v462
    %v2604 = vunpack.c.h.b16 %v462
    %v2605 = vunpack.c.l.b16 %v463
    %v2606 = vunpack.c.h.b16 %v463
    %v2607 = vunpack.c.l.b16 %v464
    %v2608 = vunpack.c.h.b16 %v464
    %v2609 = vunpack.c.l.b16 %v465
    %v2610 = vunpack.c.h.b16 %v465
    %v2611 = vunpack.c.l.b16 %v466
    %v2612 = vunpack.c.h.b16 %v466
    %v2613 = vunpack.c.l.b16 %v467
    %v2614 = vunpack.c.h.b16 %v467
    %v2615 = vunpack.c.l.b16 %v468
    %v2616 = vunpack.c.h.b16 %v468
    %v2617 = vunpack.c.l.b16 %v469
    %v2618 = vunpack.c.h.b16 %v469
    %v2619 = vunpack.c.l.b16 %v470
    %v2620 = vunpack.c.h.b16 %v470
    %v2621 = vunpack.c.l.b16 %v471
    %v2622 = vunpack.c.h.b16 %v471
    %v2623 = vunpack.c.l.b16 %v472
    %v2624 = vunpack.c.h.b16 %v472
    %v2625 = vunpack.c.l.b16 %v473
    %v2626 = vunpack.c.h.b16 %v473
    %v2627 = vunpack.c.l.b16 %v474
    %v2628 = vunpack.c.h.b16 %v474
    %v2629 = vunpack.c.l.b16 %v475
    %v2630 = vunpack.c.h.b16 %v475
    %v2631 = vunpack.c.l.b16 %v476
    %v2632 = vunpack.c.h.b16 %v476
    %v2633 = vunpack.c.l.b16 %v477
    %v2634 = vunpack.c.h.b16 %v477
    %v2635 = vunpack.c.l.b16 %v478
    %v2636 = vunpack.c.h.b16 %v478
    %v2637 = vunpack.c.l.b16 %v479
    %v2638 = vunpack.c.h.b16 %v479
    %v2639 = vunpack.c.l.b16 %v480
    %v2640 = vunpack.c.h.b16 %v480
    %v2641 = vunpack.c.l.b16 %v481
    %v2642 = vunpack.c.h.b16 %v481
    %v2643 = vunpack.c.l.b16 %v482
    %v2644 = vunpack.c.h.b16 %v482
    %v2645 = vunpack.c.l.b16 %v483
    %v2646 = vunpack.c.h.b16 %v483
    %v2647 = vunpack.c.l.b16 %v484
    %v2648 = vunpack.c.h.b16 %v484
    %v2649 = vunpack.c.l.b16 %v485
    %v2650 = vunpack.c.h.b16 %v485
    %v2651 = vunpack.c.l.b16 %v486
    %v2652 = vunpack.c.h.b16 %v486
    %v2653 = vunpack.c.l.b16 %v487
    %v2654 = vunpack.c.h.b16 %v487
    %v2655 = vunpack.c.l.b16 %v488
    %v2656 = vunpack.c.h.b16 %v488
    %v2657 = vunpack.c.l.b16 %v489
    %v2658 = vunpack.c.h.b16 %v489
    %v2659 = vunpack.c.l.b16 %v490
    %v2660 = vunpack.c.h.b16 %v490
    %v2661 = vunpack.c.l.b16 %v491
    %v2662 = vunpack.c.h.b16 %v491
    %v2663 = vunpack.c.l.b16 %v492
    %v2664 = vunpack.c.h.b16 %v492
    %v2665 = vunpack.c.l.b16 %v493
    %v2666 = vunpack.c.h.b16 %v493
    %v2667 = vunpack.c.l.b16 %v494
    %v2668 = vunpack.c.h.b16 %v494
    %v2669 = vunpack.c.l.b16 %v495
    %v2670 = vunpack.c.h.b16 %v495
    %v2671 = vunpack.c.l.b16 %v496
    %v2672 = vunpack.c.h.b16 %v496
    %v2673 = vunpack.c.l.b16 %v497
    %v2674 = vunpack.c.h.b16 %v497
    %v2675 = vunpack.c.l.b16 %v498
    %v2676 = vunpack.c.h.b16 %v498
    %v2677 = vunpack.c.l.b16 %v499
    %v2678 = vunpack.c.h.b16 %v499
    %v2679 = vunpack.c.l.b16 %v500
    %v2680 = vunpack.c.h.b16 %v500
    %v2681 = vunpack.c.l.b16 %v501
    %v2682 = vunpack.c.h.b16 %v501
    %v2683 = vunpack.c.l.b16 %v502
    %v2684 = vunpack.c.h.b16 %v502
    %v2685 = vunpack.c.l.b16 %v503
    %v2686 = vunpack.c.h.b16 %v503
    %v2687 = vunpack.c.l.b16 %v504
    %v2688 = vunpack.c.h.b16 %v504
    %v2689 = vunpack.c.l.b16 %v505
    %v2690 = vunpack.c.h.b16 %v505
    %v2691 = vunpack.c.l.b16 %v506
    %v2692 = vunpack.c.h.b16 %v506
    %v2693 = vunpack.c.l.b16 %v507
    %v2694 = vunpack.c.h.b16 %v507
    %v2695 = vunpack.c.l.b16 %v508
    %v2696 = vunpack.c.h.b16 %v508
    %v2697 = vunpack.c.l.b16 %v509
    %v2698 = vunpack.c.h.b16 %v509
    %v2699 = vunpack.c.l.b16 %v510
    %v2700 = vunpack.c.h.b16 %v510
    %v2701 = vunpack.c.l.b16 %v511
    %v2702 = vunpack.c.h.b16 %v511
    %v2703 = vunpack.c.l.b16 %v512
    %v2704 = vunpack.c.h.b16 %v512
    %v2705 = vunpack.c.l.b16 %v513
    %v2706 = vunpack.c.h.b16 %v513
    %v2707 = vunpack.c.l.b16 %v514
    %v2708 = vunpack.c.h.b16 %v514
    %v2709 = vunpack.c.l.b16 %v515
    %v2710 = vunpack.c.h.b16 %v515
    %v2711 = vunpack.c.l.b16 %v516
    %v2712 = vunpack.c.h.b16 %v516
    %v2713 = vunpack.c.l.b16 %v517
    %v2714 = vunpack.c.h.b16 %v517
    %v2715 = vunpack.c.l.b16 %v518
    %v2716 = vunpack.c.h.b16 %v518
    %v2717 = vunpack.c.l.b16 %v519
    %v2718 = vunpack.c.h.b16 %v519
    %v2719 = vunpack.c.l.b16 %v520
    %v2720 = vunpack.c.h.b16 %v520
    %v2721 = vunpack.c.l.b16 %v521
    %v2722 = vunpack.c.h.b16 %v521
    %v2723 = vunpack.c.l.b16 %v522
    %v2724 = vunpack.c.h.b16 %v522
    %v2725 = vunpack.c.l.b16 %v523
    %v2726 = vunpack.c.h.b16 %v523
    %v2727 = vunpack.c.l.b16 %v524
    %v2728 = vunpack.c.h.b16 %v524
    %v2729 = vunpack.c.l.b16 %v525
    %v2730 = vunpack.c.h.b16 %v525
    %v2731 = vunpack.c.l.b16 %v526
    %v2732 = vunpack.c.h.b16 %v526
    %v2733 = vunpack.c.l.b16 %v527
    %v2734 = vunpack.c.h.b16 %v527
    %v2735 = vunpack.c.l.b16 %v528
    %v2736 = vunpack.c.h.b16 %v528
    %v2737 = vunpack.c.l.b16 %v529
    %v2738 = vunpack.c.h.b16 %v529
    %v2739 = vunpack.c.l.b16 %v530
    %v2740 = vunpack.c.h.b16 %v530
    %v2741 = vunpack.c.l.b16 %v531
    %v2742 = vunpack.c.h.b16 %v531
    %v2743 = vunpack.c.l.b16 %v532
    %v2744 = vunpack.c.h.b16 %v532
    %v2745 = vunpack.c.l.b16 %v533
    %v2746 = vunpack.c.h.b16 %v533
    %v2747 = vunpack.c.l.b16 %v534
    %v2748 = vunpack.c.h.b16 %v534
    %v2749 = vunpack.c.l.b16 %v535
    %v2750 = vunpack.c.h.b16 %v535
    %v2751 = vunpack.c.l.b16 %v536
    %v2752 = vunpack.c.h.b16 %v536
    %v2753 = vunpack.c.l.b16 %v537
    %v2754 = vunpack.c.h.b16 %v537
    %v2755 = vunpack.c.l.b16 %v538
    %v2756 = vunpack.c.h.b16 %v538
    %v2757 = vunpack.c.l.b16 %v539
    %v2758 = vunpack.c.h.b16 %v539
    %v2759 = vunpack.c.l.b16 %v540
    %v2760 = vunpack.c.h.b16 %v540
    %v2761 = vunpack.c.l.b16 %v541
    %v2762 = vunpack.c.h.b16 %v541
    %v2763 = vunpack.c.l.b16 %v542
    %v2764 = vunpack.c.h.b16 %v542
    %v2765 = vunpack.c.l.b16 %v543
    %v2766 = vunpack.c.h.b16 %v543
    %v2767 = vunpack.c.l.b16 %v544
    %v2768 = vunpack.c.h.b16 %v544
    %v2769 = vunpack.c.l.b16 %v545
    %v2770 = vunpack.c.h.b16 %v545
    %v2771 = vunpack.c.l.b16 %v546
    %v2772 = vunpack.c.h.b16 %v546
    %v2773 = vunpack.c.l.b16 %v547
    %v2774 = vunpack.c.h.b16 %v547
    %v2775 = vunpack.c.l.b16 %v548
    %v2776 = vunpack.c.h.b16 %v548
    %v2777 = vunpack.c.l.b16 %v549
    %v2778 = vunpack.c.h.b16 %v549
    %v2779 = vunpack.c.l.b16 %v550
    %v2780 = vunpack.c.h.b16 %v550
    %v2781 = vunpack.c.l.b16 %v551
    %v2782 = vunpack.c.h.b16 %v551
    %v2783 = vunpack.c.l.b16 %v552
    %v2784 = vunpack.c.h.b16 %v552
    %v2785 = vunpack.c.l.b16 %v553
    %v2786 = vunpack.c.h.b16 %v553
    %v2787 = vunpack.c.l.b16 %v554
    %v2788 = vunpack.c.h.b16 %v554
    %v2789 = vunpack.c.l.b16 %v555
    %v2790 = vunpack.c.h.b16 %v555
    %v2791 = vunpack.c.l.b16 %v556
    %v2792 = vunpack.c.h.b16 %v556
    %v2793 = vunpack.c.l.b16 %v557
    %v2794 = vunpack.c.h.b16 %v557
    %v2795 = vunpack.c.l.b16 %v558
    %v2796 = vunpack.c.h.b16 %v558
    %v2797 = vunpack.c.l.b16 %v559
    %v2798 = vunpack.c.h.b16 %v559
    %v2799 = vunpack.c.l.b16 %v560
    %v2800 = vunpack.c.h.b16 %v560
    %v2801 = vunpack.c.l.b16 %v561
    %v2802 = vunpack.c.h.b16 %v561
    %v2803 = vunpack.c.l.b16 %v562
    %v2804 = vunpack.c.h.b16 %v562
    %v2805 = vunpack.c.l.b16 %v563
    %v2806 = vunpack.c.h.b16 %v563
    %v2807 = vunpack.c.l.b16 %v564
    %v2808 = vunpack.c.h.b16 %v564
    %v2809 = vunpack.c.l.b16 %v565
    %v2810 = vunpack.c.h.b16 %v565
    %v2811 = vunpack.c.l.b16 %v566
    %v2812 = vunpack.c.h.b16 %v566
    %v2813 = vunpack.c.l.b16 %v567
    %v2814 = vunpack.c.h.b16 %v567
    %v2815 = vunpack.c.l.b16 %v568
    %v2816 = vunpack.c.h.b16 %v568
    %v2817 = vunpack.c.l.b16 %v569
    %v2818 = vunpack.c.h.b16 %v569
    %v2819 = vunpack.c.l.b16 %v570
    %v2820 = vunpack.c.h.b16 %v570
    %v2821 = vunpack.c.l.b16 %v571
    %v2822 = vunpack.c.h.b16 %v571
    %v2823 = vunpack.c.l.b16 %v572
    %v2824 = vunpack.c.h.b16 %v572
    %v2825 = vunpack.c.l.b16 %v573
    %v2826 = vunpack.c.h.b16 %v573
    %v2827 = vunpack.c.l.b16 %v574
    %v2828 = vunpack.c.h.b16 %v574
    %v2829 = vunpack.c.l.b16 %v575
    %v2830 = vunpack.c.h.b16 %v575
    %v2831 = vunpack.c.l.b16 %v576
    %v2832 = vunpack.c.h.b16 %v576
    %v2833 = vunpack.c.l.b16 %v577
    %v2834 = vunpack.c.h.b16 %v577
    %v2835 = vunpack.c.l.b16 %v578
    %v2836 = vunpack.c.h.b16 %v578
    %v2837 = vunpack.c.l.b16 %v579
    %v2838 = vunpack.c.h.b16 %v579
    %v2839 = vunpack.c.l.b16 %v580
    %v2840 = vunpack.c.h.b16 %v580
    %v2841 = vunpack.c.l.b16 %v581
    %v2842 = vunpack.c.h.b16 %v581
    %v2843 = vunpack.c.l.b16 %v582
    %v2844 = vunpack.c.h.b16 %v582
    %v2845 = vunpack.c.l.b16 %v583
    %v2846 = vunpack.c.h.b16 %v583
    %v2847 = vunpack.c.l.b16 %v584
    %v2848 = vunpack.c.h.b16 %v584
    %v2849 = vunpack.c.l.b16 %v585
    %v2850 = vunpack.c.h.b16 %v585
    %v2851 = vunpack.c.l.b16 %v586
    %v2852 = vunpack.c.h.b16 %v586
    %v2853 = vunpack.c.l.b16 %v587
    %v2854 = vunpack.c.h.b16 %v587
    %v2855 = vunpack.c.l.b16 %v588
    %v2856 = vunpack.c.h.b16 %v588
    %v2857 = vunpack.c.l.b16 %v589
    %v2858 = vunpack.c.h.b16 %v589
    %v2859 = vunpack.c.l.b16 %v590
    %v2860 = vunpack.c.h.b16 %v590
    %v2861 = vunpack.c.l.b16 %v591
    %v2862 = vunpack.c.h.b16 %v591
    %v2863 = vunpack.c.l.b16 %v592
    %v2864 = vunpack.c.h.b16 %v592
    %v2865 = vunpack.c.l.b16 %v593
    %v2866 = vunpack.c.h.b16 %v593
    %v2867 = vunpack.c.l.b16 %v594
    %v2868 = vunpack.c.h.b16 %v594
    %v2869 = vunpack.c.l.b16 %v595
    %v2870 = vunpack.c.h.b16 %v595
    %v2871 = vunpack.c.l.b16 %v596
    %v2872 = vunpack.c.h.b16 %v596
    %v2873 = vunpack.c.l.b16 %v597
    %v2874 = vunpack.c.h.b16 %v597
    %v2875 = vunpack.c.l.b16 %v598
    %v2876 = vunpack.c.h.b16 %v598
    %v2877 = vunpack.c.l.b16 %v599
    %v2878 = vunpack.c.h.b16 %v599
    %v2879 = vunpack.c.l.b16 %v600
    %v2880 = vunpack.c.h.b16 %v600
    %v2881 = vunpack.c.l.b16 %v601
    %v2882 = vunpack.c.h.b16 %v601
    %v2883 = vunpack.c.l.b16 %v602
    %v2884 = vunpack.c.h.b16 %v602
    %v2885 = vunpack.c.l.b16 %v603
    %v2886 = vunpack.c.h.b16 %v603
    %v2887 = vunpack.c.l.b16 %v604
    %v2888 = vunpack.c.h.b16 %v604
    %v2889 = vunpack.c.l.b16 %v605
    %v2890 = vunpack.c.h.b16 %v605
    %v2891 = vunpack.c.l.b16 %v606
    %v2892 = vunpack.c.h.b16 %v606
    %v2893 = vunpack.c.l.b16 %v607
    %v2894 = vunpack.c.h.b16 %v607
    %v2895 = vunpack.c.l.b16 %v608
    %v2896 = vunpack.c.h.b16 %v608
    %v2897 = vunpack.c.l.b16 %v609
    %v2898 = vunpack.c.h.b16 %v609
    %v2899 = vunpack.c.l.b16 %v610
    %v2900 = vunpack.c.h.b16 %v610
    %v2901 = vunpack.c.l.b16 %v611
    %v2902 = vunpack.c.h.b16 %v611
    %v2903 = vunpack.c.l.b16 %v612
    %v2904 = vunpack.c.h.b16 %v612
    %v2905 = vunpack.c.l.b16 %v613
    %v2906 = vunpack.c.h.b16 %v613
    %v2907 = vunpack.c.l.b16 %v614
    %v2908 = vunpack.c.h.b16 %v614
    %v2909 = vunpack.c.l.b16 %v615
    %v2910 = vunpack.c.h.b16 %v615
    %v2911 = vunpack.c.l.b16 %v616
    %v2912 = vunpack.c.h.b16 %v616
    %v2913 = vunpack.c.l.b16 %v617
    %v2914 = vunpack.c.h.b16 %v617
    %v2915 = vunpack.c.l.b16 %v618
    %v2916 = vunpack.c.h.b16 %v618
    %v2917 = vunpack.c.l.b16 %v619
    %v2918 = vunpack.c.h.b16 %v619
    %v2919 = vunpack.c.l.b16 %v620
    %v2920 = vunpack.c.h.b16 %v620
    %v2921 = vunpack.c.l.b16 %v621
    %v2922 = vunpack.c.h.b16 %v621
    %v2923 = vunpack.c.l.b16 %v622
    %v2924 = vunpack.c.h.b16 %v622
    %v2925 = vunpack.c.l.b16 %v623
    %v2926 = vunpack.c.h.b16 %v623
    %v2927 = vunpack.c.l.b16 %v624
    %v2928 = vunpack.c.h.b16 %v624
    %v2929 = vunpack.c.l.b16 %v625
    %v2930 = vunpack.c.h.b16 %v625
    %v2931 = vunpack.c.l.b16 %v626
    %v2932 = vunpack.c.h.b16 %v626
    %v2933 = vunpack.c.l.b16 %v627
    %v2934 = vunpack.c.h.b16 %v627
    %v2935 = vunpack.c.l.b16 %v628
    %v2936 = vunpack.c.h.b16 %v628
    %v2937 = vunpack.c.l.b16 %v629
    %v2938 = vunpack.c.h.b16 %v629
    %v2939 = vunpack.c.l.b16 %v630
    %v2940 = vunpack.c.h.b16 %v630
    %v2941 = vunpack.c.l.b16 %v631
    %v2942 = vunpack.c.h.b16 %v631
    %v2943 = vunpack.c.l.b16 %v632
    %v2944 = vunpack.c.h.b16 %v632
    %v2945 = vunpack.c.l.b16 %v633
    %v2946 = vunpack.c.h.b16 %v633
    %v2947 = vunpack.c.l.b16 %v634
    %v2948 = vunpack.c.h.b16 %v634
    %v2949 = vunpack.c.l.b16 %v635
    %v2950 = vunpack.c.h.b16 %v635
    %v2951 = vunpack.c.l.b16 %v636
    %v2952 = vunpack.c.h.b16 %v636
    %v2953 = vunpack.c.l.b16 %v637
    %v2954 = vunpack.c.h.b16 %v637
    %v2955 = vunpack.c.l.b16 %v638
    %v2956 = vunpack.c.h.b16 %v638
    %v2957 = vunpack.c.l.b16 %v639
    %v2958 = vunpack.c.h.b16 %v639
    %v2959 = vunpack.c.l.b16 %v640
    %v2960 = vunpack.c.h.b16 %v640
    %v2961 = vunpack.c.l.b16 %v641
    %v2962 = vunpack.c.h.b16 %v641
    %v2963 = vunpack.c.l.b16 %v642
    %v2964 = vunpack.c.h.b16 %v642
    %v2965 = vunpack.c.l.b16 %v643
    %v2966 = vunpack.c.h.b16 %v643
    %v2967 = vunpack.c.l.b16 %v644
    %v2968 = vunpack.c.h.b16 %v644
    %v2969 = vunpack.c.l.b16 %v645
    %v2970 = vunpack.c.h.b16 %v645
    %v2971 = vunpack.c.l.b16 %v646
    %v2972 = vunpack.c.h.b16 %v646
    %v2973 = vunpack.c.l.b16 %v647
    %v2974 = vunpack.c.h.b16 %v647
    %v2975 = vunpack.c.l.b16 %v648
    %v2976 = vunpack.c.h.b16 %v648
    %v2977 = vunpack.c.l.b16 %v649
    %v2978 = vunpack.c.h.b16 %v649
    %v2979 = vunpack.c.l.b16 %v650
    %v2980 = vunpack.c.h.b16 %v650
    %v2981 = vunpack.c.l.b16 %v651
    %v2982 = vunpack.c.h.b16 %v651
    %v2983 = vunpack.c.l.b16 %v652
    %v2984 = vunpack.c.h.b16 %v652
    %v2985 = vunpack.c.l.b16 %v653
    %v2986 = vunpack.c.h.b16 %v653
    %v2987 = vunpack.c.l.b16 %v654
    %v2988 = vunpack.c.h.b16 %v654
    %v2989 = vunpack.c.l.b16 %v655
    %v2990 = vunpack.c.h.b16 %v655
    %v2991 = vunpack.c.l.b16 %v656
    %v2992 = vunpack.c.h.b16 %v656
    %v2993 = vunpack.c.l.b16 %v657
    %v2994 = vunpack.c.h.b16 %v657
    %v2995 = vunpack.c.l.b16 %v658
    %v2996 = vunpack.c.h.b16 %v658
    %v2997 = vunpack.c.l.b16 %v659
    %v2998 = vunpack.c.h.b16 %v659
    %v2999 = vunpack.c.l.b16 %v660
    %v3000 = vunpack.c.h.b16 %v660
    %v3001 = vunpack.c.l.b16 %v661
    %v3002 = vunpack.c.h.b16 %v661
    %v3003 = vunpack.c.l.b16 %v662
    %v3004 = vunpack.c.h.b16 %v662
    %v3005 = vunpack.c.l.b16 %v663
    %v3006 = vunpack.c.h.b16 %v663
    %v3007 = vunpack.c.l.b16 %v664
    %v3008 = vunpack.c.h.b16 %v664
    %v3009 = vunpack.c.l.b16 %v665
    %v3010 = vunpack.c.h.b16 %v665
    %v3011 = vunpack.c.l.b16 %v666
    %v3012 = vunpack.c.h.b16 %v666
    %v3013 = vunpack.c.l.b16 %v667
    %v3014 = vunpack.c.h.b16 %v667
    %v3015 = vunpack.c.l.b16 %v668
    %v3016 = vunpack.c.h.b16 %v668
    %v3017 = vunpack.c.l.b16 %v669
    %v3018 = vunpack.c.h.b16 %v669
    %v3019 = vunpack.c.l.b16 %v670
    %v3020 = vunpack.c.h.b16 %v670
    %v3021 = vunpack.c.l.b16 %v671
    %v3022 = vunpack.c.h.b16 %v671
    %v3023 = vunpack.c.l.b16 %v672
    %v3024 = vunpack.c.h.b16 %v672
    %v3025 = vunpack.c.l.b16 %v673
    %v3026 = vunpack.c.h.b16 %v673
    %v3027 = vunpack.c.l.b16 %v674
    %v3028 = vunpack.c.h.b16 %v674
    %v3029 = vunpack.c.l.b16 %v675
    %v3030 = vunpack.c.h.b16 %v675
    %v3031 = vunpack.c.l.b16 %v676
    %v3032 = vunpack.c.h.b16 %v676
    %v3033 = vpack.c.b16 %v2011, %v2009
    %v3034 = vpack.c.b16 %v2012, %v2010
    %v3035 = vpack.c.b16 %v2015, %v2013
    %v3036 = vpack.c.b16 %v2016, %v2014
    %v3037 = vpack.c.b16 %v2019, %v2017
    %v3038 = vpack.c.b16 %v2020, %v2018
    %v3039 = vpack.c.b16 %v2023, %v2021
    %v3040 = vpack.c.b16 %v2024, %v2022
    %v3041 = vpack.c.b16 %v2027, %v2025
    %v3042 = vpack.c.b16 %v2028, %v2026
    %v3043 = vpack.c.b16 %v2031, %v2029
    %v3044 = vpack.c.b16 %v2032, %v2030
    %v3045 = vpack.c.b16 %v2035, %v2033
    %v3046 = vpack.c.b16 %v2036, %v2034
    %v3047 = vpack.c.b16 %v2039, %v2037
    %v3048 = vpack.c.b16 %v2040, %v2038
    %v3049 = vpack.c.b16 %v2043, %v2041
    %v3050 = vpack.c.b16 %v2044, %v2042
    %v3051 = vpack.c.b16 %v2047, %v2045
    %v3052 = vpack.c.b16 %v2048, %v2046
    %v3053 = vpack.c.b16 %v2051, %v2049
    %v3054 = vpack.c.b16 %v2052, %v2050
    %v3055 = vpack.c.b16 %v2055, %v2053
    %v3056 = vpack.c.b16 %v2056, %v2054
    %v3057 = vpack.c.b16 %v2059, %v2057
    %v3058 = vpack.c.b16 %v2060, %v2058
    %v3059 = vpack.c.b16 %v2063, %v2061
    %v3060 = vpack.c.b16 %v2064, %v2062
    %v3061 = vpack.c.b16 %v2067, %v2065
    %v3062 = vpack.c.b16 %v2068, %v2066
    %v3063 = vpack.c.b16 %v2071, %v2069
    %v3064 = vpack.c.b16 %v2072, %v2070
    %v3065 = vpack.c.b16 %v2075, %v2073
    %v3066 = vpack.c.b16 %v2076, %v2074
    %v3067 = vpack.c.b16 %v2079, %v2077
    %v3068 = vpack.c.b16 %v2080, %v2078
    %v3069 = vpack.c.b16 %v2083, %v2081
    %v3070 = vpack.c.b16 %v2084, %v2082
    %v3071 = vpack.c.b16 %v2087, %v2085
    %v3072 = vpack.c.b16 %v2088, %v2086
    %v3073 = vpack.c.b16 %v2091, %v2089
    %v3074 = vpack.c.b16 %v2092, %v2090
    %v3075 = vpack.c.b16 %v2095, %v2093
    %v3076 = vpack.c.b16 %v2096, %v2094
    %v3077 = vpack.c.b16 %v2099, %v2097
    %v3078 = vpack.c.b16 %v2100, %v2098
    %v3079 = vpack.c.b16 %v2103, %v2101
    %v3080 = vpack.c.b16 %v2104, %v2102
    %v3081 = vpack.c.b16 %v2107, %v2105
    %v3082 = vpack.c.b16 %v2108, %v2106
    %v3083 = vpack.c.b16 %v2111, %v2109
    %v3084 = vpack.c.b16 %v2112, %v2110
    %v3085 = vpack.c.b16 %v2115, %v2113
    %v3086 = vpack.c.b16 %v2116, %v2114
    %v3087 = vpack.c.b16 %v2119, %v2117
    %v3088 = vpack.c.b16 %v2120, %v2118
    %v3089 = vpack.c.b16 %v2123, %v2121
    %v3090 = vpack.c.b16 %v2124, %v2122
    %v3091 = vpack.c.b16 %v2127, %v2125
    %v3092 = vpack.c.b16 %v2128, %v2126
    %v3093 = vpack.c.b16 %v2131, %v2129
    %v3094 = vpack.c.b16 %v2132, %v2130
    %v3095 = vpack.c.b16 %v2135, %v2133
    %v3096 = vpack.c.b16 %v2136, %v2134
    %v3097 = vpack.c.b16 %v2139, %v2137
    %v3098 = vpack.c.b16 %v2140, %v2138
    %v3099 = vpack.c.b16 %v2143, %v2141
    %v3100 = vpack.c.b16 %v2144, %v2142
    %v3101 = vpack.c.b16 %v2147, %v2145
    %v3102 = vpack.c.b16 %v2148, %v2146
    %v3103 = vpack.c.b16 %v2151, %v2149
    %v3104 = vpack.c.b16 %v2152, %v2150
    %v3105 = vpack.c.b16 %v2155, %v2153
    %v3106 = vpack.c.b16 %v2156, %v2154
    %v3107 = vpack.c.b16 %v2159, %v2157
    %v3108 = vpack.c.b16 %v2160, %v2158
    %v3109 = vpack.c.b16 %v2163, %v2161
    %v3110 = vpack.c.b16 %v2164, %v2162
    %v3111 = vpack.c.b16 %v2167, %v2165
    %v3112 = vpack.c.b16 %v2168, %v2166
    %v3113 = vpack.c.b16 %v2171, %v2169
    %v3114 = vpack.c.b16 %v2172, %v2170
    %v3115 = vpack.c.b16 %v2175, %v2173
    %v3116 = vpack.c.b16 %v2176, %v2174
    %v3117 = vpack.c.b16 %v2179, %v2177
    %v3118 = vpack.c.b16 %v2180, %v2178
    %v3119 = vpack.c.b16 %v2183, %v2181
    %v3120 = vpack.c.b16 %v2184, %v2182
    %v3121 = vpack.c.b16 %v2187, %v2185
    %v3122 = vpack.c.b16 %v2188, %v2186
    %v3123 = vpack.c.b16 %v2191, %v2189
    %v3124 = vpack.c.b16 %v2192, %v2190
    %v3125 = vpack.c.b16 %v2195, %v2193
    %v3126 = vpack.c.b16 %v2196, %v2194
    %v3127 = vpack.c.b16 %v2199, %v2197
    %v3128 = vpack.c.b16 %v2200, %v2198
    %v3129 = vpack.c.b16 %v2203, %v2201
    %v3130 = vpack.c.b16 %v2204, %v2202
    %v3131 = vpack.c.b16 %v2207, %v2205
    %v3132 = vpack.c.b16 %v2208, %v2206
    %v3133 = vpack.c.b16 %v2211, %v2209
    %v3134 = vpack.c.b16 %v2212, %v2210
    %v3135 = vpack.c.b16 %v2215, %v2213
    %v3136 = vpack.c.b16 %v2216, %v2214
    %v3137 = vpack.c.b16 %v2219, %v2217
    %v3138 = vpack.c.b16 %v2220, %v2218
    %v3139 = vpack.c.b16 %v2223, %v2221
    %v3140 = vpack.c.b16 %v2224, %v2222
    %v3141 = vpack.c.b16 %v2227, %v2225
    %v3142 = vpack.c.b16 %v2228, %v2226
    %v3143 = vpack.c.b16 %v2231, %v2229
    %v3144 = vpack.c.b16 %v2232, %v2230
    %v3145 = vpack.c.b16 %v2235, %v2233
    %v3146 = vpack.c.b16 %v2236, %v2234
    %v3147 = vpack.c.b16 %v2239, %v2237
    %v3148 = vpack.c.b16 %v2240, %v2238
    %v3149 = vpack.c.b16 %v2243, %v2241
    %v3150 = vpack.c.b16 %v2244, %v2242
    %v3151 = vpack.c.b16 %v2247, %v2245
    %v3152 = vpack.c.b16 %v2248, %v2246
    %v3153 = vpack.c.b16 %v2251, %v2249
    %v3154 = vpack.c.b16 %v2252, %v2250
    %v3155 = vpack.c.b16 %v2255, %v2253
    %v3156 = vpack.c.b16 %v2256, %v2254
    %v3157 = vpack.c.b16 %v2259, %v2257
    %v3158 = vpack.c.b16 %v2260, %v2258
    %v3159 = vpack.c.b16 %v2263, %v2261
    %v3160 = vpack.c.b16 %v2264, %v2262
    %v3161 = vpack.c.b16 %v2267, %v2265
    %v3162 = vpack.c.b16 %v2268, %v2266
    %v3163 = vpack.c.b16 %v2271, %v2269
    %v3164 = vpack.c.b16 %v2272, %v2270
    %v3165 = vpack.c.b16 %v2275, %v2273
    %v3166 = vpack.c.b16 %v2276, %v2274
    %v3167 = vpack.c.b16 %v2279, %v2277
    %v3168 = vpack.c.b16 %v2280, %v2278
    %v3169 = vpack.c.b16 %v2283, %v2281
    %v3170 = vpack.c.b16 %v2284, %v2282
    %v3171 = vpack.c.b16 %v2287, %v2285
    %v3172 = vpack.c.b16 %v2288, %v2286
    %v3173 = vpack.c.b16 %v2291, %v2289
    %v3174 = vpack.c.b16 %v2292, %v2290
    %v3175 = vpack.c.b16 %v2295, %v2293
    %v3176 = vpack.c.b16 %v2296, %v2294
    %v3177 = vpack.c.b16 %v2299, %v2297
    %v3178 = vpack.c.b16 %v2300, %v2298
    %v3179 = vpack.c.b16 %v2303, %v2301
    %v3180 = vpack.c.b16 %v2304, %v2302
    %v3181 = vpack.c.b16 %v2307, %v2305
    %v3182 = vpack.c.b16 %v2308, %v2306
    %v3183 = vpack.c.b16 %v2311, %v2309
    %v3184 = vpack.c.b16 %v2312, %v2310
    %v3185 = vpack.c.b16 %v2315, %v2313
    %v3186 = vpack.c.b16 %v2316, %v2314
    %v3187 = vpack.c.b16 %v2319, %v2317
    %v3188 = vpack.c.b16 %v2320, %v2318
    %v3189 = vpack.c.b16 %v2323, %v2321
    %v3190 = vpack.c.b16 %v2324, %v2322
    %v3191 = vpack.c.b16 %v2327, %v2325
    %v3192 = vpack.c.b16 %v2328, %v2326
    %v3193 = vpack.c.b16 %v2331, %v2329
    %v3194 = vpack.c.b16 %v2332, %v2330
    %v3195 = vpack.c.b16 %v2335, %v2333
    %v3196 = vpack.c.b16 %v2336, %v2334
    %v3197 = vpack.c.b16 %v2339, %v2337
    %v3198 = vpack.c.b16 %v2340, %v2338
    %v3199 = vpack.c.b16 %v2343, %v2341
    %v3200 = vpack.c.b16 %v2344, %v2342
    %v3201 = vpack.c.b16 %v2347, %v2345
    %v3202 = vpack.c.b16 %v2348, %v2346
    %v3203 = vpack.c.b16 %v2351, %v2349
    %v3204 = vpack.c.b16 %v2352, %v2350
    %v3205 = vpack.c.b16 %v2355, %v2353
    %v3206 = vpack.c.b16 %v2356, %v2354
    %v3207 = vpack.c.b16 %v2359, %v2357
    %v3208 = vpack.c.b16 %v2360, %v2358
    %v3209 = vpack.c.b16 %v2363, %v2361
    %v3210 = vpack.c.b16 %v2364, %v2362
    %v3211 = vpack.c.b16 %v2367, %v2365
    %v3212 = vpack.c.b16 %v2368, %v2366
    %v3213 = vpack.c.b16 %v2371, %v2369
    %v3214 = vpack.c.b16 %v2372, %v2370
    %v3215 = vpack.c.b16 %v2375, %v2373
    %v3216 = vpack.c.b16 %v2376, %v2374
    %v3217 = vpack.c.b16 %v2379, %v2377
    %v3218 = vpack.c.b16 %v2380, %v2378
    %v3219 = vpack.c.b16 %v2383, %v2381
    %v3220 = vpack.c.b16 %v2384, %v2382
    %v3221 = vpack.c.b16 %v2387, %v2385
    %v3222 = vpack.c.b16 %v2388, %v2386
    %v3223 = vpack.c.b16 %v2391, %v2389
    %v3224 = vpack.c.b16 %v2392, %v2390
    %v3225 = vpack.c.b16 %v2395, %v2393
    %v3226 = vpack.c.b16 %v2396, %v2394
    %v3227 = vpack.c.b16 %v2399, %v2397
    %v3228 = vpack.c.b16 %v2400, %v2398
    %v3229 = vpack.c.b16 %v2403, %v2401
    %v3230 = vpack.c.b16 %v2404, %v2402
    %v3231 = vpack.c.b16 %v2407, %v2405
    %v3232 = vpack.c.b16 %v2408, %v2406
    %v3233 = vpack.c.b16 %v2411, %v2409
    %v3234 = vpack.c.b16 %v2412, %v2410
    %v3235 = vpack.c.b16 %v2415, %v2413
    %v3236 = vpack.c.b16 %v2416, %v2414
    %v3237 = vpack.c.b16 %v2419, %v2417
    %v3238 = vpack.c.b16 %v2420, %v2418
    %v3239 = vpack.c.b16 %v2423, %v2421
    %v3240 = vpack.c.b16 %v2424, %v2422
    %v3241 = vpack.c.b16 %v2427, %v2425
    %v3242 = vpack.c.b16 %v2428, %v2426
    %v3243 = vpack.c.b16 %v2431, %v2429
    %v3244 = vpack.c.b16 %v2432, %v2430
    %v3245 = vpack.c.b16 %v2435, %v2433
    %v3246 = vpack.c.b16 %v2436, %v2434
    %v3247 = vpack.c.b16 %v2439, %v2437
    %v3248 = vpack.c.b16 %v2440, %v2438
    %v3249 = vpack.c.b16 %v2443, %v2441
    %v3250 = vpack.c.b16 %v2444, %v2442
    %v3251 = vpack.c.b16 %v2447, %v2445
    %v3252 = vpack.c.b16 %v2448, %v2446
    %v3253 = vpack.c.b16 %v2451, %v2449
    %v3254 = vpack.c.b16 %v2452, %v2450
    %v3255 = vpack.c.b16 %v2455, %v2453
    %v3256 = vpack.c.b16 %v2456, %v2454
    %v3257 = vpack.c.b16 %v2459, %v2457
    %v3258 = vpack.c.b16 %v2460, %v2458
    %v3259 = vpack.c.b16 %v2463, %v2461
    %v3260 = vpack.c.b16 %v2464, %v2462
    %v3261 = vpack.c.b16 %v2467, %v2465
    %v3262 = vpack.c.b16 %v2468, %v2466
    %v3263 = vpack.c.b16 %v2471, %v2469
    %v3264 = vpack.c.b16 %v2472, %v2470
    %v3265 = vpack.c.b16 %v2475, %v2473
    %v3266 = vpack.c.b16 %v2476, %v2474
    %v3267 = vpack.c.b16 %v2479, %v2477
    %v3268 = vpack.c.b16 %v2480, %v2478
    %v3269 = vpack.c.b16 %v2483, %v2481
    %v3270 = vpack.c.b16 %v2484, %v2482
    %v3271 = vpack.c.b16 %v2487, %v2485
    %v3272 = vpack.c.b16 %v2488, %v2486
    %v3273 = vpack.c.b16 %v2491, %v2489
    %v3274 = vpack.c.b16 %v2492, %v2490
    %v3275 = vpack.c.b16 %v2495, %v2493
    %v3276 = vpack.c.b16 %v2496, %v2494
    %v3277 = vpack.c.b16 %v2499, %v2497
    %v3278 = vpack.c.b16 %v2500, %v2498
    %v3279 = vpack.c.b16 %v2503, %v2501
    %v3280 = vpack.c.b16 %v2504, %v2502
    %v3281 = vpack.c.b16 %v2507, %v2505
    %v3282 = vpack.c.b16 %v2508, %v2506
    %v3283 = vpack.c.b16 %v2511, %v2509
    %v3284 = vpack.c.b16 %v2512, %v2510
    %v3285 = vpack.c.b16 %v2515, %v2513
    %v3286 = vpack.c.b16 %v2516, %v2514
    %v3287 = vpack.c.b16 %v2519, %v2517
    %v3288 = vpack.c.b16 %v2520, %v2518
    %v3289 = vpack.c.b16 %v2523, %v2521
    %v3290 = vpack.c.b16 %v2524, %v2522
    %v3291 = vpack.c.b16 %v2527, %v2525
    %v3292 = vpack.c.b16 %v2528, %v2526
    %v3293 = vpack.c.b16 %v2531, %v2529
    %v3294 = vpack.c.b16 %v2532, %v2530
    %v3295 = vpack.c.b16 %v2535, %v2533
    %v3296 = vpack.c.b16 %v2536, %v2534
    %v3297 = vpack.c.b16 %v2539, %v2537
    %v3298 = vpack.c.b16 %v2540, %v2538
    %v3299 = vpack.c.b16 %v2543, %v2541
    %v3300 = vpack.c.b16 %v2544, %v2542
    %v3301 = vpack.c.b16 %v2547, %v2545
    %v3302 = vpack.c.b16 %v2548, %v2546
    %v3303 = vpack.c.b16 %v2551, %v2549
    %v3304 = vpack.c.b16 %v2552, %v2550
    %v3305 = vpack.c.b16 %v2555, %v2553
    %v3306 = vpack.c.b16 %v2556, %v2554
    %v3307 = vpack.c.b16 %v2559, %v2557
    %v3308 = vpack.c.b16 %v2560, %v2558
    %v3309 = vpack.c.b16 %v2563, %v2561
    %v3310 = vpack.c.b16 %v2564, %v2562
    %v3311 = vpack.c.b16 %v2567, %v2565
    %v3312 = vpack.c.b16 %v2568, %v2566
    %v3313 = vpack.c.b16 %v2571, %v2569
    %v3314 = vpack.c.b16 %v2572, %v2570
    %v3315 = vpack.c.b16 %v2575, %v2573
    %v3316 = vpack.c.b16 %v2576, %v2574
    %v3317 = vpack.c.b16 %v2579, %v2577
    %v3318 = vpack.c.b16 %v2580, %v2578
    %v3319 = vpack.c.b16 %v2583, %v2581
    %v3320 = vpack.c.b16 %v2584, %v2582
    %v3321 = vpack.c.b16 %v2587, %v2585
    %v3322 = vpack.c.b16 %v2588, %v2586
    %v3323 = vpack.c.b16 %v2591, %v2589
    %v3324 = vpack.c.b16 %v2592, %v2590
    %v3325 = vpack.c.b16 %v2595, %v2593
    %v3326 = vpack.c.b16 %v2596, %v2594
    %v3327 = vpack.c.b16 %v2599, %v2597
    %v3328 = vpack.c.b16 %v2600, %v2598
    %v3329 = vpack.c.b16 %v2603, %v2601
    %v3330 = vpack.c.b16 %v2604, %v2602
    %v3331 = vpack.c.b16 %v2607, %v2605
    %v3332 = vpack.c.b16 %v2608, %v2606
    %v3333 = vpack.c.b16 %v2611, %v2609
    %v3334 = vpack.c.b16 %v2612, %v2610
    %v3335 = vpack.c.b16 %v2615, %v2613
    %v3336 = vpack.c.b16 %v2616, %v2614
    %v3337 = vpack.c.b16 %v2619, %v2617
    %v3338 = vpack.c.b16 %v2620, %v2618
    %v3339 = vpack.c.b16 %v2623, %v2621
    %v3340 = vpack.c.b16 %v2624, %v2622
    %v3341 = vpack.c.b16 %v2627, %v2625
    %v3342 = vpack.c.b16 %v2628, %v2626
    %v3343 = vpack.c.b16 %v2631, %v2629
    %v3344 = vpack.c.b16 %v2632, %v2630
    %v3345 = vpack.c.b16 %v2635, %v2633
    %v3346 = vpack.c.b16 %v2636, %v2634
    %v3347 = vpack.c.b16 %v2639, %v2637
    %v3348 = vpack.c.b16 %v2640, %v2638
    %v3349 = vpack.c.b16 %v2643, %v2641
    %v3350 = vpack.c.b16 %v2644, %v2642
    %v3351 = vpack.c.b16 %v2647, %v2645
    %v3352 = vpack.c.b16 %v2648, %v2646
    %v3353 = vpack.c.b16 %v2651, %v2649
    %v3354 = vpack.c.b16 %v2652, %v2650
    %v3355 = vpack.c.b16 %v2655, %v2653
    %v3356 = vpack.c.b16 %v2656, %v2654
    %v3357 = vpack.c.b16 %v2659, %v2657
    %v3358 = vpack.c.b16 %v2660, %v2658
    %v3359 = vpack.c.b16 %v2663, %v2661
    %v3360 = vpack.c.b16 %v2664, %v2662
    %v3361 = vpack.c.b16 %v2667, %v2665
    %v3362 = vpack.c.b16 %v2668, %v2666
    %v3363 = vpack.c.b16 %v2671, %v2669
    %v3364 = vpack.c.b16 %v2672, %v2670
    %v3365 = vpack.c.b16 %v2675, %v2673
    %v3366 = vpack.c.b16 %v2676, %v2674
    %v3367 = vpack.c.b16 %v2679, %v2677
    %v3368 = vpack.c.b16 %v2680, %v2678
    %v3369 = vpack.c.b16 %v2683, %v2681
    %v3370 = vpack.c.b16 %v2684, %v2682
    %v3371 = vpack.c.b16 %v2687, %v2685
    %v3372 = vpack.c.b16 %v2688, %v2686
    %v3373 = vpack.c.b16 %v2691, %v2689
    %v3374 = vpack.c.b16 %v2692, %v2690
    %v3375 = vpack.c.b16 %v2695, %v2693
    %v3376 = vpack.c.b16 %v2696, %v2694
    %v3377 = vpack.c.b16 %v2699, %v2697
    %v3378 = vpack.c.b16 %v2700, %v2698
    %v3379 = vpack.c.b16 %v2703, %v2701
    %v3380 = vpack.c.b16 %v2704, %v2702
    %v3381 = vpack.c.b16 %v2707, %v2705
    %v3382 = vpack.c.b16 %v2708, %v2706
    %v3383 = vpack.c.b16 %v2711, %v2709
    %v3384 = vpack.c.b16 %v2712, %v2710
    %v3385 = vpack.c.b16 %v2715, %v2713
    %v3386 = vpack.c.b16 %v2716, %v2714
    %v3387 = vpack.c.b16 %v2719, %v2717
    %v3388 = vpack.c.b16 %v2720, %v2718
    %v3389 = vpack.c.b16 %v2723, %v2721
    %v3390 = vpack.c.b16 %v2724, %v2722
    %v3391 = vpack.c.b16 %v2727, %v2725
    %v3392 = vpack.c.b16 %v2728, %v2726
    %v3393 = vpack.c.b16 %v2731, %v2729
    %v3394 = vpack.c.b16 %v2732, %v2730
    %v3395 = vpack.c.b16 %v2735, %v2733
    %v3396 = vpack.c.b16 %v2736, %v2734
    %v3397 = vpack.c.b16 %v2739, %v2737
    %v3398 = vpack.c.b16 %v2740, %v2738
    %v3399 = vpack.c.b16 %v2743, %v2741
    %v3400 = vpack.c.b16 %v2744, %v2742
    %v3401 = vpack.c.b16 %v2747, %v2745
    %v3402 = vpack.c.b16 %v2748, %v2746
    %v3403 = vpack.c.b16 %v2751, %v2749
    %v3404 = vpack.c.b16 %v2752, %v2750
    %v3405 = vpack.c.b16 %v2755, %v2753
    %v3406 = vpack.c.b16 %v2756, %v2754
    %v3407 = vpack.c.b16 %v2759, %v2757
    %v3408 = vpack.c.b16 %v2760, %v2758
    %v3409 = vpack.c.b16 %v2763, %v2761
    %v3410 = vpack.c.b16 %v2764, %v2762
    %v3411 = vpack.c.b16 %v2767, %v2765
    %v3412 = vpack.c.b16 %v2768, %v2766
    %v3413 = vpack.c.b16 %v2771, %v2769
    %v3414 = vpack.c.b16 %v2772, %v2770
    %v3415 = vpack.c.b16 %v2775, %v2773
    %v3416 = vpack.c.b16 %v2776, %v2774
    %v3417 = vpack.c.b16 %v2779, %v2777
    %v3418 = vpack.c.b16 %v2780, %v2778
    %v3419 = vpack.c.b16 %v2783, %v2781
    %v3420 = vpack.c.b16 %v2784, %v2782
    %v3421 = vpack.c.b16 %v2787, %v2785
    %v3422 = vpack.c.b16 %v2788, %v2786
    %v3423 = vpack.c.b16 %v2791, %v2789
    %v3424 = vpack.c.b16 %v2792, %v2790
    %v3425 = vpack.c.b16 %v2795, %v2793
    %v3426 = vpack.c.b16 %v2796, %v2794
    %v3427 = vpack.c.b16 %v2799, %v2797
    %v3428 = vpack.c.b16 %v2800, %v2798
    %v3429 = vpack.c.b16 %v2803, %v2801
    %v3430 = vpack.c.b16 %v2804, %v2802
    %v3431 = vpack.c.b16 %v2807, %v2805
    %v3432 = vpack.c.b16 %v2808, %v2806
    %v3433 = vpack.c.b16 %v2811, %v2809
    %v3434 = vpack.c.b16 %v2812, %v2810
    %v3435 = vpack.c.b16 %v2815, %v2813
    %v3436 = vpack.c.b16 %v2816, %v2814
    %v3437 = vpack.c.b16 %v2819, %v2817
    %v3438 = vpack.c.b16 %v2820, %v2818
    %v3439 = vpack.c.b16 %v2823, %v2821
    %v3440 = vpack.c.b16 %v2824, %v2822
    %v3441 = vpack.c.b16 %v2827, %v2825
    %v3442 = vpack.c.b16 %v2828, %v2826
    %v3443 = vpack.c.b16 %v2831, %v2829
    %v3444 = vpack.c.b16 %v2832, %v2830
    %v3445 = vpack.c.b16 %v2835, %v2833
    %v3446 = vpack.c.b16 %v2836, %v2834
    %v3447 = vpack.c.b16 %v2839, %v2837
    %v3448 = vpack.c.b16 %v2840, %v2838
    %v3449 = vpack.c.b16 %v2843, %v2841
    %v3450 = vpack.c.b16 %v2844, %v2842
    %v3451 = vpack.c.b16 %v2847, %v2845
    %v3452 = vpack.c.b16 %v2848, %v2846
    %v3453 = vpack.c.b16 %v2851, %v2849
    %v3454 = vpack.c.b16 %v2852, %v2850
    %v3455 = vpack.c.b16 %v2855, %v2853
    %v3456 = vpack.c.b16 %v2856, %v2854
    %v3457 = vpack.c.b16 %v2859, %v2857
    %v3458 = vpack.c.b16 %v2860, %v2858
    %v3459 = vpack.c.b16 %v2863, %v2861
    %v3460 = vpack.c.b16 %v2864, %v2862
    %v3461 = vpack.c.b16 %v2867, %v2865
    %v3462 = vpack.c.b16 %v2868, %v2866
    %v3463 = vpack.c.b16 %v2871, %v2869
    %v3464 = vpack.c.b16 %v2872, %v2870
    %v3465 = vpack.c.b16 %v2875, %v2873
    %v3466 = vpack.c.b16 %v2876, %v2874
    %v3467 = vpack.c.b16 %v2879, %v2877
    %v3468 = vpack.c.b16 %v2880, %v2878
    %v3469 = vpack.c.b16 %v2883, %v2881
    %v3470 = vpack.c.b16 %v2884, %v2882
    %v3471 = vpack.c.b16 %v2887, %v2885
    %v3472 = vpack.c.b16 %v2888, %v2886
    %v3473 = vpack.c.b16 %v2891, %v2889
    %v3474 = vpack.c.b16 %v2892, %v2890
    %v3475 = vpack.c.b16 %v2895, %v2893
    %v3476 = vpack.c.b16 %v2896, %v2894
    %v3477 = vpack.c.b16 %v2899, %v2897
    %v3478 = vpack.c.b16 %v2900, %v2898
    %v3479 = vpack.c.b16 %v2903, %v2901
    %v3480 = vpack.c.b16 %v2904, %v2902
    %v3481 = vpack.c.b16 %v2907, %v2905
    %v3482 = vpack.c.b16 %v2908, %v2906
    %v3483 = vpack.c.b16 %v2911, %v2909
    %v3484 = vpack.c.b16 %v2912, %v2910
    %v3485 = vpack.c.b16 %v2915, %v2913
    %v3486 = vpack.c.b16 %v2916, %v2914
    %v3487 = vpack.c.b16 %v2919, %v2917
    %v3488 = vpack.c.b16 %v2920, %v2918
    %v3489 = vpack.c.b16 %v2923, %v2921
    %v3490 = vpack.c.b16 %v2924, %v2922
    %v3491 = vpack.c.b16 %v2927, %v2925
    %v3492 = vpack.c.b16 %v2928, %v2926
    %v3493 = vpack.c.b16 %v2931, %v2929
    %v3494 = vpack.c.b16 %v2932, %v2930
    %v3495 = vpack.c.b16 %v2935, %v2933
    %v3496 = vpack.c.b16 %v2936, %v2934
    %v3497 = vpack.c.b16 %v2939, %v2937
    %v3498 = vpack.c.b16 %v2940, %v2938
    %v3499 = vpack.c.b16 %v2943, %v2941
    %v3500 = vpack.c.b16 %v2944, %v2942
    %v3501 = vpack.c.b16 %v2947, %v2945
    %v3502 = vpack.c.b16 %v2948, %v2946
    %v3503 = vpack.c.b16 %v2951, %v2949
    %v3504 = vpack.c.b16 %v2952, %v2950
    %v3505 = vpack.c.b16 %v2955, %v2953
    %v3506 = vpack.c.b16 %v2956, %v2954
    %v3507 = vpack.c.b16 %v2959, %v2957
    %v3508 = vpack.c.b16 %v2960, %v2958
    %v3509 = vpack.c.b16 %v2963, %v2961
    %v3510 = vpack.c.b16 %v2964, %v2962
    %v3511 = vpack.c.b16 %v2967, %v2965
    %v3512 = vpack.c.b16 %v2968, %v2966
    %v3513 = vpack.c.b16 %v2971, %v2969
    %v3514 = vpack.c.b16 %v2972, %v2970
    %v3515 = vpack.c.b16 %v2975, %v2973
    %v3516 = vpack.c.b16 %v2976, %v2974
    %v3517 = vpack.c.b16 %v2979, %v2977
    %v3518 = vpack.c.b16 %v2980, %v2978
    %v3519 = vpack.c.b16 %v2983, %v2981
    %v3520 = vpack.c.b16 %v2984, %v2982
    %v3521 = vpack.c.b16 %v2987, %v2985
    %v3522 = vpack.c.b16 %v2988, %v2986
    %v3523 = vpack.c.b16 %v2991, %v2989
    %v3524 = vpack.c.b16 %v2992, %v2990
    %v3525 = vpack.c.b16 %v2995, %v2993
    %v3526 = vpack.c.b16 %v2996, %v2994
    %v3527 = vpack.c.b16 %v2999, %v2997
    %v3528 = vpack.c.b16 %v3000, %v2998
    %v3529 = vpack.c.b16 %v3003, %v3001
    %v3530 = vpack.c.b16 %v3004, %v3002
    %v3531 = vpack.c.b16 %v3007, %v3005
    %v3532 = vpack.c.b16 %v3008, %v3006
    %v3533 = vpack.c.b16 %v3011, %v3009
    %v3534 = vpack.c.b16 %v3012, %v3010
    %v3535 = vpack.c.b16 %v3015, %v3013
    %v3536 = vpack.c.b16 %v3016, %v3014
    %v3537 = vpack.c.b16 %v3019, %v3017
    %v3538 = vpack.c.b16 %v3020, %v3018
    %v3539 = vpack.c.b16 %v3023, %v3021
    %v3540 = vpack.c.b16 %v3024, %v3022
    %v3541 = vpack.c.b16 %v3027, %v3025
    %v3542 = vpack.c.b16 %v3028, %v3026
    %v3543 = vpack.c.b16 %v3031, %v3029
    %v3544 = vpack.c.b16 %v3032, %v3030
    %4057 = vmatprep.subr.bf16.mxu0 %v3048
    %4058 = vmatpush1.bf16.msra.mxu0 %v3047
    %4059 = vmatprep.subr.bf16.mxu0 %v3046
    %4060 = vmatpush1.bf16.msra.mxu0 %v3045
    %4061 = vmatprep.subr.bf16.mxu0 %v3044
    %4062 = vmatpush1.bf16.msra.mxu0 %v3043
    %4063 = vmatprep.subr.bf16.mxu0 %v3042
    %4064 = vmatpush1.bf16.msra.mxu0 %v3041
    %4065 = vmatprep.subr.bf16.mxu0 %v3040
    %4066 = vmatpush1.bf16.msra.mxu0 %v3039
    %4067 = vmatprep.subr.bf16.mxu0 %v3038
    %4068 = vmatpush1.bf16.msra.mxu0 %v3037
    %4069 = vmatprep.subr.bf16.mxu0 %v3036
    %4070 = vmatpush1.bf16.msra.mxu0 %v3035
    %4071 = vmatprep.subr.bf16.mxu0 %v3034
    %4072 = vmatpush1.bf16.msra.mxu0 %v3033
    %4073 = vmatprep.subr.bf16.mxu0 %v3064
    %4074 = vmatpush2.bf16.msra.mxu0 %v3063
    %4075 = vmatprep.subr.bf16.mxu0 %v3062
    %4076 = vmatpush2.bf16.msra.mxu0 %v3061
    %4077 = vmatprep.subr.bf16.mxu0 %v3060
    %4078 = vmatpush2.bf16.msra.mxu0 %v3059
    %4079 = vmatprep.subr.bf16.mxu0 %v3058
    %4080 = vmatpush2.bf16.msra.mxu0 %v3057
    %4081 = vmatprep.subr.bf16.mxu0 %v3056
    %4082 = vmatpush2.bf16.msra.mxu0 %v3055
    %4083 = vmatprep.subr.bf16.mxu0 %v3054
    %4084 = vmatpush2.bf16.msra.mxu0 %v3053
    %4085 = vmatprep.subr.bf16.mxu0 %v3052
    %4086 = vmatpush2.bf16.msra.mxu0 %v3051
    %4087 = vmatprep.subr.bf16.mxu0 %v3050
    %4088 = vmatpush2.bf16.msra.mxu0 %v3049
    %4089 = vmatprep.mubr.bf16.mxu0 %v768
    %4090 = vmatmul.mubr.bf16.gmra.mxu0 %v767
    %v4091 = vpop.f32.mrf.mxu0
    %v4092 = vadd.f32 %v1490, %v4091
    %v4093 = vpop.f32.mrf.mxu0
    %v4094 = vadd.f32 %v1494, %v4093
    %v4095 = vpop.f32.mrf.mxu0
    %v4096 = vpop.f32.mrf.mxu0
    %4097 = vdwg.mxu0
    %4098 = vmatprep.subr.bf16.mxu0 %v3080
    %4099 = vmatpush1.bf16.msra.mxu0 %v3079
    %4100 = vmatprep.subr.bf16.mxu0 %v3078
    %4101 = vmatpush1.bf16.msra.mxu0 %v3077
    %4102 = vmatprep.subr.bf16.mxu0 %v3076
    %4103 = vmatpush1.bf16.msra.mxu0 %v3075
    %4104 = vmatprep.subr.bf16.mxu0 %v3074
    %4105 = vmatpush1.bf16.msra.mxu0 %v3073
    %4106 = vmatprep.subr.bf16.mxu0 %v3072
    %4107 = vmatpush1.bf16.msra.mxu0 %v3071
    %4108 = vmatprep.subr.bf16.mxu0 %v3070
    %4109 = vmatpush1.bf16.msra.mxu0 %v3069
    %4110 = vmatprep.subr.bf16.mxu0 %v3068
    %4111 = vmatpush1.bf16.msra.mxu0 %v3067
    %4112 = vmatprep.subr.bf16.mxu0 %v3066
    %4113 = vmatpush1.bf16.msra.mxu0 %v3065
    %4114 = vmatprep.subr.bf16.mxu0 %v3096
    %4115 = vmatpush2.bf16.msra.mxu0 %v3095
    %4116 = vmatprep.subr.bf16.mxu0 %v3094
    %4117 = vmatpush2.bf16.msra.mxu0 %v3093
    %4118 = vmatprep.subr.bf16.mxu0 %v3092
    %4119 = vmatpush2.bf16.msra.mxu0 %v3091
    %4120 = vmatprep.subr.bf16.mxu0 %v3090
    %4121 = vmatpush2.bf16.msra.mxu0 %v3089
    %4122 = vmatprep.subr.bf16.mxu0 %v3088
    %4123 = vmatpush2.bf16.msra.mxu0 %v3087
    %4124 = vmatprep.subr.bf16.mxu0 %v3086
    %4125 = vmatpush2.bf16.msra.mxu0 %v3085
    %4126 = vmatprep.subr.bf16.mxu0 %v3084
    %4127 = vmatpush2.bf16.msra.mxu0 %v3083
    %4128 = vmatprep.subr.bf16.mxu0 %v3082
    %4129 = vmatpush2.bf16.msra.mxu0 %v3081
    %4130 = vmatprep.mubr.bf16.mxu0 %v770
    %4131 = vmatmul.mubr.bf16.gmra.mxu0 %v769
    %v4132 = vpop.f32.mrf.mxu0
    %v4133 = vadd.f32 %v4092, %v4132
    %v4134 = vpop.f32.mrf.mxu0
    %v4135 = vadd.f32 %v4094, %v4134
    %v4136 = vpop.f32.mrf.mxu0
    %v4137 = vpop.f32.mrf.mxu0
    %4138 = vdwg.mxu0
    %4139 = vmatprep.subr.bf16.mxu0 %v3112
    %4140 = vmatpush1.bf16.msra.mxu0 %v3111
    %4141 = vmatprep.subr.bf16.mxu0 %v3110
    %4142 = vmatpush1.bf16.msra.mxu0 %v3109
    %4143 = vmatprep.subr.bf16.mxu0 %v3108
    %4144 = vmatpush1.bf16.msra.mxu0 %v3107
    %4145 = vmatprep.subr.bf16.mxu0 %v3106
    %4146 = vmatpush1.bf16.msra.mxu0 %v3105
    %4147 = vmatprep.subr.bf16.mxu0 %v3104
    %4148 = vmatpush1.bf16.msra.mxu0 %v3103
    %4149 = vmatprep.subr.bf16.mxu0 %v3102
    %4150 = vmatpush1.bf16.msra.mxu0 %v3101
    %4151 = vmatprep.subr.bf16.mxu0 %v3100
    %4152 = vmatpush1.bf16.msra.mxu0 %v3099
    %4153 = vmatprep.subr.bf16.mxu0 %v3098
    %4154 = vmatpush1.bf16.msra.mxu0 %v3097
    %4155 = vmatprep.subr.bf16.mxu0 %v3128
    %4156 = vmatpush2.bf16.msra.mxu0 %v3127
    %4157 = vmatprep.subr.bf16.mxu0 %v3126
    %4158 = vmatpush2.bf16.msra.mxu0 %v3125
    %4159 = vmatprep.subr.bf16.mxu0 %v3124
    %4160 = vmatpush2.bf16.msra.mxu0 %v3123
    %4161 = vmatprep.subr.bf16.mxu0 %v3122
    %4162 = vmatpush2.bf16.msra.mxu0 %v3121
    %4163 = vmatprep.subr.bf16.mxu0 %v3120
    %4164 = vmatpush2.bf16.msra.mxu0 %v3119
    %4165 = vmatprep.subr.bf16.mxu0 %v3118
    %4166 = vmatpush2.bf16.msra.mxu0 %v3117
    %4167 = vmatprep.subr.bf16.mxu0 %v3116
    %4168 = vmatpush2.bf16.msra.mxu0 %v3115
    %4169 = vmatprep.subr.bf16.mxu0 %v3114
    %4170 = vmatpush2.bf16.msra.mxu0 %v3113
    %4171 = vmatprep.mubr.bf16.mxu0 %v772
    %4172 = vmatmul.mubr.bf16.gmra.mxu0 %v771
    %v4173 = vpop.f32.mrf.mxu0
    %v4174 = vadd.f32 %v4133, %v4173
    %v4175 = vpop.f32.mrf.mxu0
    %v4176 = vadd.f32 %v4135, %v4175
    %v4177 = vpop.f32.mrf.mxu0
    %v4178 = vpop.f32.mrf.mxu0
    %4179 = vdwg.mxu0
    %4180 = vmatprep.subr.bf16.mxu0 %v3144
    %4181 = vmatpush1.bf16.msra.mxu0 %v3143
    %4182 = vmatprep.subr.bf16.mxu0 %v3142
    %4183 = vmatpush1.bf16.msra.mxu0 %v3141
    %4184 = vmatprep.subr.bf16.mxu0 %v3140
    %4185 = vmatpush1.bf16.msra.mxu0 %v3139
    %4186 = vmatprep.subr.bf16.mxu0 %v3138
    %4187 = vmatpush1.bf16.msra.mxu0 %v3137
    %4188 = vmatprep.subr.bf16.mxu0 %v3136
    %4189 = vmatpush1.bf16.msra.mxu0 %v3135
    %4190 = vmatprep.subr.bf16.mxu0 %v3134
    %4191 = vmatpush1.bf16.msra.mxu0 %v3133
    %4192 = vmatprep.subr.bf16.mxu0 %v3132
    %4193 = vmatpush1.bf16.msra.mxu0 %v3131
    %4194 = vmatprep.subr.bf16.mxu0 %v3130
    %4195 = vmatpush1.bf16.msra.mxu0 %v3129
    %4196 = vmatprep.subr.bf16.mxu0 %v3160
    %4197 = vmatpush2.bf16.msra.mxu0 %v3159
    %4198 = vmatprep.subr.bf16.mxu0 %v3158
    %4199 = vmatpush2.bf16.msra.mxu0 %v3157
    %4200 = vmatprep.subr.bf16.mxu0 %v3156
    %4201 = vmatpush2.bf16.msra.mxu0 %v3155
    %4202 = vmatprep.subr.bf16.mxu0 %v3154
    %4203 = vmatpush2.bf16.msra.mxu0 %v3153
    %4204 = vmatprep.subr.bf16.mxu0 %v3152
    %4205 = vmatpush2.bf16.msra.mxu0 %v3151
    %4206 = vmatprep.subr.bf16.mxu0 %v3150
    %4207 = vmatpush2.bf16.msra.mxu0 %v3149
    %4208 = vmatprep.subr.bf16.mxu0 %v3148
    %4209 = vmatpush2.bf16.msra.mxu0 %v3147
    %4210 = vmatprep.subr.bf16.mxu0 %v3146
    %4211 = vmatpush2.bf16.msra.mxu0 %v3145
    %4212 = vmatprep.mubr.bf16.mxu0 %v774
    %4213 = vmatmul.mubr.bf16.gmra.mxu0 %v773
    %v4214 = vpop.f32.mrf.mxu0
    %v4215 = vadd.f32 %v4174, %v4214
    %v4216 = vpop.f32.mrf.mxu0
    %v4217 = vadd.f32 %v4176, %v4216
    %v4218 = vpop.f32.mrf.mxu0
    %v4219 = vpop.f32.mrf.mxu0
    %4220 = vdwg.mxu0
    %4221 = vmatprep.subr.bf16.mxu0 %v3176
    %4222 = vmatpush1.bf16.msra.mxu0 %v3175
    %4223 = vmatprep.subr.bf16.mxu0 %v3174
    %4224 = vmatpush1.bf16.msra.mxu0 %v3173
    %4225 = vmatprep.subr.bf16.mxu0 %v3172
    %4226 = vmatpush1.bf16.msra.mxu0 %v3171
    %4227 = vmatprep.subr.bf16.mxu0 %v3170
    %4228 = vmatpush1.bf16.msra.mxu0 %v3169
    %4229 = vmatprep.subr.bf16.mxu0 %v3168
    %4230 = vmatpush1.bf16.msra.mxu0 %v3167
    %4231 = vmatprep.subr.bf16.mxu0 %v3166
    %4232 = vmatpush1.bf16.msra.mxu0 %v3165
    %4233 = vmatprep.subr.bf16.mxu0 %v3164
    %4234 = vmatpush1.bf16.msra.mxu0 %v3163
    %4235 = vmatprep.subr.bf16.mxu0 %v3162
    %4236 = vmatpush1.bf16.msra.mxu0 %v3161
    %4237 = vmatprep.subr.bf16.mxu0 %v3192
    %4238 = vmatpush2.bf16.msra.mxu0 %v3191
    %4239 = vmatprep.subr.bf16.mxu0 %v3190
    %4240 = vmatpush2.bf16.msra.mxu0 %v3189
    %4241 = vmatprep.subr.bf16.mxu0 %v3188
    %4242 = vmatpush2.bf16.msra.mxu0 %v3187
    %4243 = vmatprep.subr.bf16.mxu0 %v3186
    %4244 = vmatpush2.bf16.msra.mxu0 %v3185
    %4245 = vmatprep.subr.bf16.mxu0 %v3184
    %4246 = vmatpush2.bf16.msra.mxu0 %v3183
    %4247 = vmatprep.subr.bf16.mxu0 %v3182
    %4248 = vmatpush2.bf16.msra.mxu0 %v3181
    %4249 = vmatprep.subr.bf16.mxu0 %v3180
    %4250 = vmatpush2.bf16.msra.mxu0 %v3179
    %4251 = vmatprep.subr.bf16.mxu0 %v3178
    %4252 = vmatpush2.bf16.msra.mxu0 %v3177
    %4253 = vmatprep.mubr.bf16.mxu0 %v776
    %4254 = vmatmul.mubr.bf16.gmra.mxu0 %v775
    %v4255 = vpop.f32.mrf.mxu0
    %v4256 = vadd.f32 %v4215, %v4255
    %v4257 = vpop.f32.mrf.mxu0
    %v4258 = vadd.f32 %v4217, %v4257
    %v4259 = vpop.f32.mrf.mxu0
    %v4260 = vpop.f32.mrf.mxu0
    %4261 = vdwg.mxu0
    %4262 = vmatprep.subr.bf16.mxu0 %v3208
    %4263 = vmatpush1.bf16.msra.mxu0 %v3207
    %4264 = vmatprep.subr.bf16.mxu0 %v3206
    %4265 = vmatpush1.bf16.msra.mxu0 %v3205
    %4266 = vmatprep.subr.bf16.mxu0 %v3204
    %4267 = vmatpush1.bf16.msra.mxu0 %v3203
    %4268 = vmatprep.subr.bf16.mxu0 %v3202
    %4269 = vmatpush1.bf16.msra.mxu0 %v3201
    %4270 = vmatprep.subr.bf16.mxu0 %v3200
    %4271 = vmatpush1.bf16.msra.mxu0 %v3199
    %4272 = vmatprep.subr.bf16.mxu0 %v3198
    %4273 = vmatpush1.bf16.msra.mxu0 %v3197
    %4274 = vmatprep.subr.bf16.mxu0 %v3196
    %4275 = vmatpush1.bf16.msra.mxu0 %v3195
    %4276 = vmatprep.subr.bf16.mxu0 %v3194
    %4277 = vmatpush1.bf16.msra.mxu0 %v3193
    %4278 = vmatprep.subr.bf16.mxu0 %v3224
    %4279 = vmatpush2.bf16.msra.mxu0 %v3223
    %4280 = vmatprep.subr.bf16.mxu0 %v3222
    %4281 = vmatpush2.bf16.msra.mxu0 %v3221
    %4282 = vmatprep.subr.bf16.mxu0 %v3220
    %4283 = vmatpush2.bf16.msra.mxu0 %v3219
    %4284 = vmatprep.subr.bf16.mxu0 %v3218
    %4285 = vmatpush2.bf16.msra.mxu0 %v3217
    %4286 = vmatprep.subr.bf16.mxu0 %v3216
    %4287 = vmatpush2.bf16.msra.mxu0 %v3215
    %4288 = vmatprep.subr.bf16.mxu0 %v3214
    %4289 = vmatpush2.bf16.msra.mxu0 %v3213
    %4290 = vmatprep.subr.bf16.mxu0 %v3212
    %4291 = vmatpush2.bf16.msra.mxu0 %v3211
    %4292 = vmatprep.subr.bf16.mxu0 %v3210
    %4293 = vmatpush2.bf16.msra.mxu0 %v3209
    %4294 = vmatprep.mubr.bf16.mxu0 %v778
    %4295 = vmatmul.mubr.bf16.gmra.mxu0 %v777
    %v4296 = vpop.f32.mrf.mxu0
    %v4297 = vadd.f32 %v4256, %v4296
    %v4298 = vpop.f32.mrf.mxu0
    %v4299 = vadd.f32 %v4258, %v4298
    %v4300 = vpop.f32.mrf.mxu0
    %v4301 = vpop.f32.mrf.mxu0
    %4302 = vdwg.mxu0
    %4303 = vmatprep.subr.bf16.mxu0 %v3240
    %4304 = vmatpush1.bf16.msra.mxu0 %v3239
    %4305 = vmatprep.subr.bf16.mxu0 %v3238
    %4306 = vmatpush1.bf16.msra.mxu0 %v3237
    %4307 = vmatprep.subr.bf16.mxu0 %v3236
    %4308 = vmatpush1.bf16.msra.mxu0 %v3235
    %4309 = vmatprep.subr.bf16.mxu0 %v3234
    %4310 = vmatpush1.bf16.msra.mxu0 %v3233
    %4311 = vmatprep.subr.bf16.mxu0 %v3232
    %4312 = vmatpush1.bf16.msra.mxu0 %v3231
    %4313 = vmatprep.subr.bf16.mxu0 %v3230
    %4314 = vmatpush1.bf16.msra.mxu0 %v3229
    %4315 = vmatprep.subr.bf16.mxu0 %v3228
    %4316 = vmatpush1.bf16.msra.mxu0 %v3227
    %4317 = vmatprep.subr.bf16.mxu0 %v3226
    %4318 = vmatpush1.bf16.msra.mxu0 %v3225
    %4319 = vmatprep.subr.bf16.mxu0 %v3256
    %4320 = vmatpush2.bf16.msra.mxu0 %v3255
    %4321 = vmatprep.subr.bf16.mxu0 %v3254
    %4322 = vmatpush2.bf16.msra.mxu0 %v3253
    %4323 = vmatprep.subr.bf16.mxu0 %v3252
    %4324 = vmatpush2.bf16.msra.mxu0 %v3251
    %4325 = vmatprep.subr.bf16.mxu0 %v3250
    %4326 = vmatpush2.bf16.msra.mxu0 %v3249
    %4327 = vmatprep.subr.bf16.mxu0 %v3248
    %4328 = vmatpush2.bf16.msra.mxu0 %v3247
    %4329 = vmatprep.subr.bf16.mxu0 %v3246
    %4330 = vmatpush2.bf16.msra.mxu0 %v3245
    %4331 = vmatprep.subr.bf16.mxu0 %v3244
    %4332 = vmatpush2.bf16.msra.mxu0 %v3243
    %4333 = vmatprep.subr.bf16.mxu0 %v3242
    %4334 = vmatpush2.bf16.msra.mxu0 %v3241
    %4335 = vmatprep.mubr.bf16.mxu0 %v780
    %4336 = vmatmul.mubr.bf16.gmra.mxu0 %v779
    %v4337 = vpop.f32.mrf.mxu0
    %v4338 = vadd.f32 %v4297, %v4337
    %v4339 = vpop.f32.mrf.mxu0
    %v4340 = vadd.f32 %v4299, %v4339
    %v4341 = vpop.f32.mrf.mxu0
    %v4342 = vpop.f32.mrf.mxu0
    %4343 = vdwg.mxu0
    %4344 = vmatprep.subr.bf16.mxu0 %v3272
    %4345 = vmatpush1.bf16.msra.mxu0 %v3271
    %4346 = vmatprep.subr.bf16.mxu0 %v3270
    %4347 = vmatpush1.bf16.msra.mxu0 %v3269
    %4348 = vmatprep.subr.bf16.mxu0 %v3268
    %4349 = vmatpush1.bf16.msra.mxu0 %v3267
    %4350 = vmatprep.subr.bf16.mxu0 %v3266
    %4351 = vmatpush1.bf16.msra.mxu0 %v3265
    %4352 = vmatprep.subr.bf16.mxu0 %v3264
    %4353 = vmatpush1.bf16.msra.mxu0 %v3263
    %4354 = vmatprep.subr.bf16.mxu0 %v3262
    %4355 = vmatpush1.bf16.msra.mxu0 %v3261
    %4356 = vmatprep.subr.bf16.mxu0 %v3260
    %4357 = vmatpush1.bf16.msra.mxu0 %v3259
    %4358 = vmatprep.subr.bf16.mxu0 %v3258
    %4359 = vmatpush1.bf16.msra.mxu0 %v3257
    %4360 = vmatprep.subr.bf16.mxu0 %v3288
    %4361 = vmatpush2.bf16.msra.mxu0 %v3287
    %4362 = vmatprep.subr.bf16.mxu0 %v3286
    %4363 = vmatpush2.bf16.msra.mxu0 %v3285
    %4364 = vmatprep.subr.bf16.mxu0 %v3284
    %4365 = vmatpush2.bf16.msra.mxu0 %v3283
    %4366 = vmatprep.subr.bf16.mxu0 %v3282
    %4367 = vmatpush2.bf16.msra.mxu0 %v3281
    %4368 = vmatprep.subr.bf16.mxu0 %v3280
    %4369 = vmatpush2.bf16.msra.mxu0 %v3279
    %4370 = vmatprep.subr.bf16.mxu0 %v3278
    %4371 = vmatpush2.bf16.msra.mxu0 %v3277
    %4372 = vmatprep.subr.bf16.mxu0 %v3276
    %4373 = vmatpush2.bf16.msra.mxu0 %v3275
    %4374 = vmatprep.subr.bf16.mxu0 %v3274
    %4375 = vmatpush2.bf16.msra.mxu0 %v3273
    %4376 = vmatprep.mubr.bf16.mxu0 %v782
    %4377 = vmatmul.mubr.bf16.gmra.mxu0 %v781
    %v4378 = vpop.f32.mrf.mxu0
    %v4379 = vadd.f32 %v4338, %v4378
    %v4380 = vpop.f32.mrf.mxu0
    %v4381 = vadd.f32 %v4340, %v4380
    %v4382 = vpop.f32.mrf.mxu0
    %v4383 = vpop.f32.mrf.mxu0
    %4384 = vdwg.mxu0
    %4385 = vmatprep.subr.bf16.mxu0 %v3304
    %4386 = vmatpush1.bf16.msra.mxu0 %v3303
    %4387 = vmatprep.subr.bf16.mxu0 %v3302
    %4388 = vmatpush1.bf16.msra.mxu0 %v3301
    %4389 = vmatprep.subr.bf16.mxu0 %v3300
    %4390 = vmatpush1.bf16.msra.mxu0 %v3299
    %4391 = vmatprep.subr.bf16.mxu0 %v3298
    %4392 = vmatpush1.bf16.msra.mxu0 %v3297
    %4393 = vmatprep.subr.bf16.mxu0 %v3296
    %4394 = vmatpush1.bf16.msra.mxu0 %v3295
    %4395 = vmatprep.subr.bf16.mxu0 %v3294
    %4396 = vmatpush1.bf16.msra.mxu0 %v3293
    %4397 = vmatprep.subr.bf16.mxu0 %v3292
    %4398 = vmatpush1.bf16.msra.mxu0 %v3291
    %4399 = vmatprep.subr.bf16.mxu0 %v3290
    %4400 = vmatpush1.bf16.msra.mxu0 %v3289
    %4401 = vmatprep.subr.bf16.mxu0 %v3320
    %4402 = vmatpush2.bf16.msra.mxu0 %v3319
    %4403 = vmatprep.subr.bf16.mxu0 %v3318
    %4404 = vmatpush2.bf16.msra.mxu0 %v3317
    %4405 = vmatprep.subr.bf16.mxu0 %v3316
    %4406 = vmatpush2.bf16.msra.mxu0 %v3315
    %4407 = vmatprep.subr.bf16.mxu0 %v3314
    %4408 = vmatpush2.bf16.msra.mxu0 %v3313
    %4409 = vmatprep.subr.bf16.mxu0 %v3312
    %4410 = vmatpush2.bf16.msra.mxu0 %v3311
    %4411 = vmatprep.subr.bf16.mxu0 %v3310
    %4412 = vmatpush2.bf16.msra.mxu0 %v3309
    %4413 = vmatprep.subr.bf16.mxu0 %v3308
    %4414 = vmatpush2.bf16.msra.mxu0 %v3307
    %4415 = vmatprep.subr.bf16.mxu0 %v3306
    %4416 = vmatpush2.bf16.msra.mxu0 %v3305
    %4417 = vmatprep.mubr.bf16.mxu0 %v784
    %4418 = vmatmul.mubr.bf16.gmra.mxu0 %v783
    %v4419 = vpop.f32.mrf.mxu0
    %v4420 = vadd.f32 %v4379, %v4419
    %v4421 = vpop.f32.mrf.mxu0
    %v4422 = vadd.f32 %v4381, %v4421
    %v4423 = vpop.f32.mrf.mxu0
    %v4424 = vpop.f32.mrf.mxu0
    %4425 = vdwg.mxu0
    %4426 = vmatprep.subr.bf16.mxu0 %v3336
    %4427 = vmatpush1.bf16.msra.mxu0 %v3335
    %4428 = vmatprep.subr.bf16.mxu0 %v3334
    %4429 = vmatpush1.bf16.msra.mxu0 %v3333
    %4430 = vmatprep.subr.bf16.mxu0 %v3332
    %4431 = vmatpush1.bf16.msra.mxu0 %v3331
    %4432 = vmatprep.subr.bf16.mxu0 %v3330
    %4433 = vmatpush1.bf16.msra.mxu0 %v3329
    %4434 = vmatprep.subr.bf16.mxu0 %v3328
    %4435 = vmatpush1.bf16.msra.mxu0 %v3327
    %4436 = vmatprep.subr.bf16.mxu0 %v3326
    %4437 = vmatpush1.bf16.msra.mxu0 %v3325
    %4438 = vmatprep.subr.bf16.mxu0 %v3324
    %4439 = vmatpush1.bf16.msra.mxu0 %v3323
    %4440 = vmatprep.subr.bf16.mxu0 %v3322
    %4441 = vmatpush1.bf16.msra.mxu0 %v3321
    %4442 = vmatprep.subr.bf16.mxu0 %v3352
    %4443 = vmatpush2.bf16.msra.mxu0 %v3351
    %4444 = vmatprep.subr.bf16.mxu0 %v3350
    %4445 = vmatpush2.bf16.msra.mxu0 %v3349
    %4446 = vmatprep.subr.bf16.mxu0 %v3348
    %4447 = vmatpush2.bf16.msra.mxu0 %v3347
    %4448 = vmatprep.subr.bf16.mxu0 %v3346
    %4449 = vmatpush2.bf16.msra.mxu0 %v3345
    %4450 = vmatprep.subr.bf16.mxu0 %v3344
    %4451 = vmatpush2.bf16.msra.mxu0 %v3343
    %4452 = vmatprep.subr.bf16.mxu0 %v3342
    %4453 = vmatpush2.bf16.msra.mxu0 %v3341
    %4454 = vmatprep.subr.bf16.mxu0 %v3340
    %4455 = vmatpush2.bf16.msra.mxu0 %v3339
    %4456 = vmatprep.subr.bf16.mxu0 %v3338
    %4457 = vmatpush2.bf16.msra.mxu0 %v3337
    %4458 = vmatprep.mubr.bf16.mxu0 %v786
    %4459 = vmatmul.mubr.bf16.gmra.mxu0 %v785
    %v4460 = vpop.f32.mrf.mxu0
    %v4461 = vadd.f32 %v4420, %v4460
    %v4462 = vpop.f32.mrf.mxu0
    %v4463 = vadd.f32 %v4422, %v4462
    %v4464 = vpop.f32.mrf.mxu0
    %v4465 = vpop.f32.mrf.mxu0
    %4466 = vdwg.mxu0
    %4467 = vmatprep.subr.bf16.mxu0 %v3368
    %4468 = vmatpush1.bf16.msra.mxu0 %v3367
    %4469 = vmatprep.subr.bf16.mxu0 %v3366
    %4470 = vmatpush1.bf16.msra.mxu0 %v3365
    %4471 = vmatprep.subr.bf16.mxu0 %v3364
    %4472 = vmatpush1.bf16.msra.mxu0 %v3363
    %4473 = vmatprep.subr.bf16.mxu0 %v3362
    %4474 = vmatpush1.bf16.msra.mxu0 %v3361
    %4475 = vmatprep.subr.bf16.mxu0 %v3360
    %4476 = vmatpush1.bf16.msra.mxu0 %v3359
    %4477 = vmatprep.subr.bf16.mxu0 %v3358
    %4478 = vmatpush1.bf16.msra.mxu0 %v3357
    %4479 = vmatprep.subr.bf16.mxu0 %v3356
    %4480 = vmatpush1.bf16.msra.mxu0 %v3355
    %4481 = vmatprep.subr.bf16.mxu0 %v3354
    %4482 = vmatpush1.bf16.msra.mxu0 %v3353
    %4483 = vmatprep.subr.bf16.mxu0 %v3384
    %4484 = vmatpush2.bf16.msra.mxu0 %v3383
    %4485 = vmatprep.subr.bf16.mxu0 %v3382
    %4486 = vmatpush2.bf16.msra.mxu0 %v3381
    %4487 = vmatprep.subr.bf16.mxu0 %v3380
    %4488 = vmatpush2.bf16.msra.mxu0 %v3379
    %4489 = vmatprep.subr.bf16.mxu0 %v3378
    %4490 = vmatpush2.bf16.msra.mxu0 %v3377
    %4491 = vmatprep.subr.bf16.mxu0 %v3376
    %4492 = vmatpush2.bf16.msra.mxu0 %v3375
    %4493 = vmatprep.subr.bf16.mxu0 %v3374
    %4494 = vmatpush2.bf16.msra.mxu0 %v3373
    %4495 = vmatprep.subr.bf16.mxu0 %v3372
    %4496 = vmatpush2.bf16.msra.mxu0 %v3371
    %4497 = vmatprep.subr.bf16.mxu0 %v3370
    %4498 = vmatpush2.bf16.msra.mxu0 %v3369
    %4499 = vmatprep.mubr.bf16.mxu0 %v788
    %4500 = vmatmul.mubr.bf16.gmra.mxu0 %v787
    %v4501 = vpop.f32.mrf.mxu0
    %v4502 = vadd.f32 %v4461, %v4501
    %v4503 = vpop.f32.mrf.mxu0
    %v4504 = vadd.f32 %v4463, %v4503
    %v4505 = vpop.f32.mrf.mxu0
    %v4506 = vpop.f32.mrf.mxu0
    %4507 = vdwg.mxu0
    %4508 = vmatprep.subr.bf16.mxu0 %v3400
    %4509 = vmatpush1.bf16.msra.mxu0 %v3399
    %4510 = vmatprep.subr.bf16.mxu0 %v3398
    %4511 = vmatpush1.bf16.msra.mxu0 %v3397
    %4512 = vmatprep.subr.bf16.mxu0 %v3396
    %4513 = vmatpush1.bf16.msra.mxu0 %v3395
    %4514 = vmatprep.subr.bf16.mxu0 %v3394
    %4515 = vmatpush1.bf16.msra.mxu0 %v3393
    %4516 = vmatprep.subr.bf16.mxu0 %v3392
    %4517 = vmatpush1.bf16.msra.mxu0 %v3391
    %4518 = vmatprep.subr.bf16.mxu0 %v3390
    %4519 = vmatpush1.bf16.msra.mxu0 %v3389
    %4520 = vmatprep.subr.bf16.mxu0 %v3388
    %4521 = vmatpush1.bf16.msra.mxu0 %v3387
    %4522 = vmatprep.subr.bf16.mxu0 %v3386
    %4523 = vmatpush1.bf16.msra.mxu0 %v3385
    %4524 = vmatprep.subr.bf16.mxu0 %v3416
    %4525 = vmatpush2.bf16.msra.mxu0 %v3415
    %4526 = vmatprep.subr.bf16.mxu0 %v3414
    %4527 = vmatpush2.bf16.msra.mxu0 %v3413
    %4528 = vmatprep.subr.bf16.mxu0 %v3412
    %4529 = vmatpush2.bf16.msra.mxu0 %v3411
    %4530 = vmatprep.subr.bf16.mxu0 %v3410
    %4531 = vmatpush2.bf16.msra.mxu0 %v3409
    %4532 = vmatprep.subr.bf16.mxu0 %v3408
    %4533 = vmatpush2.bf16.msra.mxu0 %v3407
    %4534 = vmatprep.subr.bf16.mxu0 %v3406
    %4535 = vmatpush2.bf16.msra.mxu0 %v3405
    %4536 = vmatprep.subr.bf16.mxu0 %v3404
    %4537 = vmatpush2.bf16.msra.mxu0 %v3403
    %4538 = vmatprep.subr.bf16.mxu0 %v3402
    %4539 = vmatpush2.bf16.msra.mxu0 %v3401
    %4540 = vmatprep.mubr.bf16.mxu0 %v790
    %4541 = vmatmul.mubr.bf16.gmra.mxu0 %v789
    %v4542 = vpop.f32.mrf.mxu0
    %v4543 = vadd.f32 %v4502, %v4542
    %v4544 = vpop.f32.mrf.mxu0
    %v4545 = vadd.f32 %v4504, %v4544
    %v4546 = vpop.f32.mrf.mxu0
    %v4547 = vpop.f32.mrf.mxu0
    %4548 = vdwg.mxu0
    %4549 = vmatprep.subr.bf16.mxu0 %v3432
    %4550 = vmatpush1.bf16.msra.mxu0 %v3431
    %4551 = vmatprep.subr.bf16.mxu0 %v3430
    %4552 = vmatpush1.bf16.msra.mxu0 %v3429
    %4553 = vmatprep.subr.bf16.mxu0 %v3428
    %4554 = vmatpush1.bf16.msra.mxu0 %v3427
    %4555 = vmatprep.subr.bf16.mxu0 %v3426
    %4556 = vmatpush1.bf16.msra.mxu0 %v3425
    %4557 = vmatprep.subr.bf16.mxu0 %v3424
    %4558 = vmatpush1.bf16.msra.mxu0 %v3423
    %4559 = vmatprep.subr.bf16.mxu0 %v3422
    %4560 = vmatpush1.bf16.msra.mxu0 %v3421
    %4561 = vmatprep.subr.bf16.mxu0 %v3420
    %4562 = vmatpush1.bf16.msra.mxu0 %v3419
    %4563 = vmatprep.subr.bf16.mxu0 %v3418
    %4564 = vmatpush1.bf16.msra.mxu0 %v3417
    %4565 = vmatprep.subr.bf16.mxu0 %v3448
    %4566 = vmatpush2.bf16.msra.mxu0 %v3447
    %4567 = vmatprep.subr.bf16.mxu0 %v3446
    %4568 = vmatpush2.bf16.msra.mxu0 %v3445
    %4569 = vmatprep.subr.bf16.mxu0 %v3444
    %4570 = vmatpush2.bf16.msra.mxu0 %v3443
    %4571 = vmatprep.subr.bf16.mxu0 %v3442
    %4572 = vmatpush2.bf16.msra.mxu0 %v3441
    %4573 = vmatprep.subr.bf16.mxu0 %v3440
    %4574 = vmatpush2.bf16.msra.mxu0 %v3439
    %4575 = vmatprep.subr.bf16.mxu0 %v3438
    %4576 = vmatpush2.bf16.msra.mxu0 %v3437
    %4577 = vmatprep.subr.bf16.mxu0 %v3436
    %4578 = vmatpush2.bf16.msra.mxu0 %v3435
    %4579 = vmatprep.subr.bf16.mxu0 %v3434
    %4580 = vmatpush2.bf16.msra.mxu0 %v3433
    %4581 = vmatprep.mubr.bf16.mxu0 %v792
    %4582 = vmatmul.mubr.bf16.gmra.mxu0 %v791
    %v4583 = vpop.f32.mrf.mxu0
    %v4584 = vadd.f32 %v4543, %v4583
    %v4585 = vpop.f32.mrf.mxu0
    %v4586 = vadd.f32 %v4545, %v4585
    %v4587 = vpop.f32.mrf.mxu0
    %v4588 = vpop.f32.mrf.mxu0
    %4589 = vdwg.mxu0
    %4590 = vmatprep.subr.bf16.mxu0 %v3464
    %4591 = vmatpush1.bf16.msra.mxu0 %v3463
    %4592 = vmatprep.subr.bf16.mxu0 %v3462
    %4593 = vmatpush1.bf16.msra.mxu0 %v3461
    %4594 = vmatprep.subr.bf16.mxu0 %v3460
    %4595 = vmatpush1.bf16.msra.mxu0 %v3459
    %4596 = vmatprep.subr.bf16.mxu0 %v3458
    %4597 = vmatpush1.bf16.msra.mxu0 %v3457
    %4598 = vmatprep.subr.bf16.mxu0 %v3456
    %4599 = vmatpush1.bf16.msra.mxu0 %v3455
    %4600 = vmatprep.subr.bf16.mxu0 %v3454
    %4601 = vmatpush1.bf16.msra.mxu0 %v3453
    %4602 = vmatprep.subr.bf16.mxu0 %v3452
    %4603 = vmatpush1.bf16.msra.mxu0 %v3451
    %4604 = vmatprep.subr.bf16.mxu0 %v3450
    %4605 = vmatpush1.bf16.msra.mxu0 %v3449
    %4606 = vmatprep.subr.bf16.mxu0 %v3480
    %4607 = vmatpush2.bf16.msra.mxu0 %v3479
    %4608 = vmatprep.subr.bf16.mxu0 %v3478
    %4609 = vmatpush2.bf16.msra.mxu0 %v3477
    %4610 = vmatprep.subr.bf16.mxu0 %v3476
    %4611 = vmatpush2.bf16.msra.mxu0 %v3475
    %4612 = vmatprep.subr.bf16.mxu0 %v3474
    %4613 = vmatpush2.bf16.msra.mxu0 %v3473
    %4614 = vmatprep.subr.bf16.mxu0 %v3472
    %4615 = vmatpush2.bf16.msra.mxu0 %v3471
    %4616 = vmatprep.subr.bf16.mxu0 %v3470
    %4617 = vmatpush2.bf16.msra.mxu0 %v3469
    %4618 = vmatprep.subr.bf16.mxu0 %v3468
    %4619 = vmatpush2.bf16.msra.mxu0 %v3467
    %4620 = vmatprep.subr.bf16.mxu0 %v3466
    %4621 = vmatpush2.bf16.msra.mxu0 %v3465
    %4622 = vmatprep.mubr.bf16.mxu0 %v794
    %4623 = vmatmul.mubr.bf16.gmra.mxu0 %v793
    %v4624 = vpop.f32.mrf.mxu0
    %v4625 = vadd.f32 %v4584, %v4624
    %v4626 = vpop.f32.mrf.mxu0
    %v4627 = vadd.f32 %v4586, %v4626
    %v4628 = vpop.f32.mrf.mxu0
    %v4629 = vpop.f32.mrf.mxu0
    %4630 = vdwg.mxu0
    %4631 = vmatprep.subr.bf16.mxu0 %v3496
    %4632 = vmatpush1.bf16.msra.mxu0 %v3495
    %4633 = vmatprep.subr.bf16.mxu0 %v3494
    %4634 = vmatpush1.bf16.msra.mxu0 %v3493
    %4635 = vmatprep.subr.bf16.mxu0 %v3492
    %4636 = vmatpush1.bf16.msra.mxu0 %v3491
    %4637 = vmatprep.subr.bf16.mxu0 %v3490
    %4638 = vmatpush1.bf16.msra.mxu0 %v3489
    %4639 = vmatprep.subr.bf16.mxu0 %v3488
    %4640 = vmatpush1.bf16.msra.mxu0 %v3487
    %4641 = vmatprep.subr.bf16.mxu0 %v3486
    %4642 = vmatpush1.bf16.msra.mxu0 %v3485
    %4643 = vmatprep.subr.bf16.mxu0 %v3484
    %4644 = vmatpush1.bf16.msra.mxu0 %v3483
    %4645 = vmatprep.subr.bf16.mxu0 %v3482
    %4646 = vmatpush1.bf16.msra.mxu0 %v3481
    %4647 = vmatprep.subr.bf16.mxu0 %v3512
    %4648 = vmatpush2.bf16.msra.mxu0 %v3511
    %4649 = vmatprep.subr.bf16.mxu0 %v3510
    %4650 = vmatpush2.bf16.msra.mxu0 %v3509
    %4651 = vmatprep.subr.bf16.mxu0 %v3508
    %4652 = vmatpush2.bf16.msra.mxu0 %v3507
    %4653 = vmatprep.subr.bf16.mxu0 %v3506
    %4654 = vmatpush2.bf16.msra.mxu0 %v3505
    %4655 = vmatprep.subr.bf16.mxu0 %v3504
    %4656 = vmatpush2.bf16.msra.mxu0 %v3503
    %4657 = vmatprep.subr.bf16.mxu0 %v3502
    %4658 = vmatpush2.bf16.msra.mxu0 %v3501
    %4659 = vmatprep.subr.bf16.mxu0 %v3500
    %4660 = vmatpush2.bf16.msra.mxu0 %v3499
    %4661 = vmatprep.subr.bf16.mxu0 %v3498
    %4662 = vmatpush2.bf16.msra.mxu0 %v3497
    %4663 = vmatprep.mubr.bf16.mxu0 %v796
    %4664 = vmatmul.mubr.bf16.gmra.mxu0 %v795
    %v4665 = vpop.f32.mrf.mxu0
    %v4666 = vadd.f32 %v4625, %v4665
    %v4667 = vpop.f32.mrf.mxu0
    %v4668 = vadd.f32 %v4627, %v4667
    %v4669 = vpop.f32.mrf.mxu0
    %v4670 = vpop.f32.mrf.mxu0
    %4671 = vdwg.mxu0
    %4672 = vmatprep.subr.bf16.mxu0 %v3528
    %4673 = vmatpush1.bf16.msra.mxu0 %v3527
    %4674 = vmatprep.subr.bf16.mxu0 %v3526
    %4675 = vmatpush1.bf16.msra.mxu0 %v3525
    %4676 = vmatprep.subr.bf16.mxu0 %v3524
    %4677 = vmatpush1.bf16.msra.mxu0 %v3523
    %4678 = vmatprep.subr.bf16.mxu0 %v3522
    %4679 = vmatpush1.bf16.msra.mxu0 %v3521
    %4680 = vmatprep.subr.bf16.mxu0 %v3520
    %4681 = vmatpush1.bf16.msra.mxu0 %v3519
    %4682 = vmatprep.subr.bf16.mxu0 %v3518
    %4683 = vmatpush1.bf16.msra.mxu0 %v3517
    %4684 = vmatprep.subr.bf16.mxu0 %v3516
    %4685 = vmatpush1.bf16.msra.mxu0 %v3515
    %4686 = vmatprep.subr.bf16.mxu0 %v3514
    %4687 = vmatpush1.bf16.msra.mxu0 %v3513
    %4688 = vmatprep.subr.bf16.mxu0 %v3544
    %4689 = vmatpush2.bf16.msra.mxu0 %v3543
    %4690 = vmatprep.subr.bf16.mxu0 %v3542
    %4691 = vmatpush2.bf16.msra.mxu0 %v3541
    %4692 = vmatprep.subr.bf16.mxu0 %v3540
    %4693 = vmatpush2.bf16.msra.mxu0 %v3539
    %4694 = vmatprep.subr.bf16.mxu0 %v3538
    %4695 = vmatpush2.bf16.msra.mxu0 %v3537
    %4696 = vmatprep.subr.bf16.mxu0 %v3536
    %4697 = vmatpush2.bf16.msra.mxu0 %v3535
    %4698 = vmatprep.subr.bf16.mxu0 %v3534
    %4699 = vmatpush2.bf16.msra.mxu0 %v3533
    %4700 = vmatprep.subr.bf16.mxu0 %v3532
    %4701 = vmatpush2.bf16.msra.mxu0 %v3531
    %4702 = vmatprep.subr.bf16.mxu0 %v3530
    %4703 = vmatpush2.bf16.msra.mxu0 %v3529
    %4704 = vmatprep.mubr.bf16.mxu0 %v798
    %4705 = vmatmul.mubr.bf16.gmra.mxu0 %v797
    %v4706 = vpop.f32.mrf.mxu0
    %v4707 = vadd.f32 %v4666, %v4706
    %v4708 = vpop.f32.mrf.mxu0
    %v4709 = vadd.f32 %v4668, %v4708
    %v4710 = vpop.f32.mrf.mxu0
    %v4711 = vpop.f32.mrf.mxu0
    %4712 = vdwg.mxu0
    %v4713 = vmax.f32 %v4707, 0.0
    %v4714 = vmax.f32 %v4709, 0.0
    %4747 = vrot.lane.b32.xlu0 %v677, 96
    %v4748 = vpop.permute.xlu0 %4747
    %4749 = vrot.lane.b32.xlu0 %v678, 96
    %v4750 = vpop.permute.xlu0 %4749
    %4751 = vrot.lane.b32.xlu0 %v679, 96
    %v4752 = vpop.permute.xlu0 %4751
    %4753 = vrot.lane.b32.xlu0 %v680, 96
    %v4754 = vpop.permute.xlu0 %4753
    %4755 = vrot.lane.b32.xlu0 %v681, 96
    %v4756 = vpop.permute.xlu0 %4755
    %4757 = vrot.lane.b32.xlu0 %v682, 96
    %v4758 = vpop.permute.xlu0 %4757
    %4759 = vrot.lane.b32.xlu0 %v683, 96
    %v4760 = vpop.permute.xlu0 %4759
    %4761 = vrot.lane.b32.xlu0 %v684, 96
    %v4762 = vpop.permute.xlu0 %4761
    %4763 = vrot.lane.b32.xlu0 %v685, 96
    %v4764 = vpop.permute.xlu0 %4763
    %4765 = vrot.lane.b32.xlu0 %v686, 96
    %v4766 = vpop.permute.xlu0 %4765
    %4767 = vrot.lane.b32.xlu0 %v687, 96
    %v4768 = vpop.permute.xlu0 %4767
    %4769 = vrot.lane.b32.xlu0 %v688, 96
    %v4770 = vpop.permute.xlu0 %4769
    %4771 = vrot.lane.b32.xlu0 %v689, 96
    %v4772 = vpop.permute.xlu0 %4771
    %4773 = vrot.lane.b32.xlu0 %v690, 96
    %v4774 = vpop.permute.xlu0 %4773
    %4775 = vrot.lane.b32.xlu0 %v691, 96
    %v4776 = vpop.permute.xlu0 %4775
    %4777 = vrot.lane.b32.xlu0 %v692, 96
    %v4778 = vpop.permute.xlu0 %4777
    %4779 = vrot.lane.b32.xlu0 %v693, 96
    %v4780 = vpop.permute.xlu0 %4779
    %4781 = vrot.lane.b32.xlu0 %v694, 96
    %v4782 = vpop.permute.xlu0 %4781
    %4783 = vrot.lane.b32.xlu0 %v695, 96
    %v4784 = vpop.permute.xlu0 %4783
    %4785 = vrot.lane.b32.xlu0 %v696, 96
    %v4786 = vpop.permute.xlu0 %4785
    %4787 = vrot.lane.b32.xlu0 %v697, 96
    %v4788 = vpop.permute.xlu0 %4787
    %4789 = vrot.lane.b32.xlu0 %v698, 96
    %v4790 = vpop.permute.xlu0 %4789
    %4791 = vrot.lane.b32.xlu0 %v699, 96
    %v4792 = vpop.permute.xlu0 %4791
    %4793 = vrot.lane.b32.xlu0 %v700, 96
    %v4794 = vpop.permute.xlu0 %4793
    %4795 = vrot.lane.b32.xlu0 %v701, 96
    %v4796 = vpop.permute.xlu0 %4795
    %4797 = vrot.lane.b32.xlu0 %v702, 96
    %v4798 = vpop.permute.xlu0 %4797
    %4799 = vrot.lane.b32.xlu0 %v703, 96
    %v4800 = vpop.permute.xlu0 %4799
    %4801 = vrot.lane.b32.xlu0 %v704, 96
    %v4802 = vpop.permute.xlu0 %4801
    %4803 = vrot.lane.b32.xlu0 %v705, 96
    %v4804 = vpop.permute.xlu0 %4803
    %4805 = vrot.lane.b32.xlu0 %v706, 96
    %v4806 = vpop.permute.xlu0 %4805
    %4807 = vrot.lane.b32.xlu0 %v707, 96
    %v4808 = vpop.permute.xlu0 %4807
    %4809 = vrot.lane.b32.xlu0 %v708, 96
    %v4810 = vpop.permute.xlu0 %4809
    %4844 = vrot.lane.b32.xlu0 %v721, 96
    %v4845 = vpop.permute.xlu0 %4844
    %4847 = vmatprep.subr.mxu0 0.0
    %4848 = vmatpush1.msra.mxu0 %v4778
    %4849 = vmatprep.subr.mxu0 0.0
    %4850 = vmatpush1.msra.mxu0 %v4776
    %4851 = vmatprep.subr.mxu0 0.0
    %4852 = vmatpush1.msra.mxu0 %v4774
    %4853 = vmatprep.subr.mxu0 0.0
    %4854 = vmatpush1.msra.mxu0 %v4772
    %4855 = vmatprep.subr.mxu0 0.0
    %4856 = vmatpush1.msra.mxu0 %v4770
    %4857 = vmatprep.subr.mxu0 0.0
    %4858 = vmatpush1.msra.mxu0 %v4768
    %4859 = vmatprep.subr.mxu0 0.0
    %4860 = vmatpush1.msra.mxu0 %v4766
    %4861 = vmatprep.subr.mxu0 0.0
    %4862 = vmatpush1.msra.mxu0 %v4764
    %4863 = vmatprep.subr.mxu0 0.0
    %4864 = vmatpush1.msra.mxu0 %v4762
    %4865 = vmatprep.subr.mxu0 0.0
    %4866 = vmatpush1.msra.mxu0 %v4760
    %4867 = vmatprep.subr.mxu0 0.0
    %4868 = vmatpush1.msra.mxu0 %v4758
    %4869 = vmatprep.subr.mxu0 0.0
    %4870 = vmatpush1.msra.mxu0 %v4756
    %4871 = vmatprep.subr.mxu0 0.0
    %4872 = vmatpush1.msra.mxu0 %v4754
    %4873 = vmatprep.subr.mxu0 0.0
    %4874 = vmatpush1.msra.mxu0 %v4752
    %4875 = vmatprep.subr.mxu0 0.0
    %4876 = vmatpush1.msra.mxu0 %v4750
    %4877 = vmatprep.subr.mxu0 0.0
    %4878 = vmatpush1.msra.mxu0 %v4748
    %4879 = vmatprep.subr.mxu0 0.0
    %4880 = vmatpush2.msra.mxu0 %v4810
    %4881 = vmatprep.subr.mxu0 0.0
    %4882 = vmatpush2.msra.mxu0 %v4808
    %4883 = vmatprep.subr.mxu0 0.0
    %4884 = vmatpush2.msra.mxu0 %v4806
    %4885 = vmatprep.subr.mxu0 0.0
    %4886 = vmatpush2.msra.mxu0 %v4804
    %4887 = vmatprep.subr.mxu0 0.0
    %4888 = vmatpush2.msra.mxu0 %v4802
    %4889 = vmatprep.subr.mxu0 0.0
    %4890 = vmatpush2.msra.mxu0 %v4800
    %4891 = vmatprep.subr.mxu0 0.0
    %4892 = vmatpush2.msra.mxu0 %v4798
    %4893 = vmatprep.subr.mxu0 0.0
    %4894 = vmatpush2.msra.mxu0 %v4796
    %4895 = vmatprep.subr.mxu0 0.0
    %4896 = vmatpush2.msra.mxu0 %v4794
    %4897 = vmatprep.subr.mxu0 0.0
    %4898 = vmatpush2.msra.mxu0 %v4792
    %4899 = vmatprep.subr.mxu0 0.0
    %4900 = vmatpush2.msra.mxu0 %v4790
    %4901 = vmatprep.subr.mxu0 0.0
    %4902 = vmatpush2.msra.mxu0 %v4788
    %4903 = vmatprep.subr.mxu0 0.0
    %4904 = vmatpush2.msra.mxu0 %v4786
    %4905 = vmatprep.subr.mxu0 0.0
    %4906 = vmatpush2.msra.mxu0 %v4784
    %4907 = vmatprep.subr.mxu0 0.0
    %4908 = vmatpush2.msra.mxu0 %v4782
    %4909 = vmatprep.subr.mxu0 0.0
    %4910 = vmatpush2.msra.mxu0 %v4780
    %4911 = vmatprep.mubr.f32.mxu0 %v4714
    %4912 = vmatmul.mubr.f32.gmra.mxu0 %v4713
    %v4913 = vpop.f32.mrf.mxu0
    %v4914 = vadd.f32 %v4845, %v4913
    %v4915 = vpop.f32.mrf.mxu0
    %4916 = vdwg.mxu0
    %v4917 = vmax.f32 %v4914, 0.0
    %vm4918 = vcmask 261120
    %v4920 = vsel %vm4918, %v4917, 0
    %4922 = vmatprep.subr.mxu0 0.0
    %4923 = vmatpush1.msra.mxu0 0.0
    %4924 = vmatprep.subr.mxu0 0.0
    %4925 = vmatpush1.msra.mxu0 0.0
    %4926 = vmatprep.subr.mxu0 0.0
    %4927 = vmatpush1.msra.mxu0 0.0
    %4928 = vmatprep.subr.mxu0 0.0
    %4929 = vmatpush1.msra.mxu0 0.0
    %4930 = vmatprep.subr.mxu0 0.0
    %4931 = vmatpush1.msra.mxu0 0.0
    %4932 = vmatprep.subr.mxu0 0.0
    %4933 = vmatpush1.msra.mxu0 0.0
    %4934 = vmatprep.subr.mxu0 0.0
    %4935 = vmatpush1.msra.mxu0 0.0
    %4936 = vmatprep.subr.mxu0 0.0
    %4937 = vmatpush1.msra.mxu0 0.0
    %4938 = vmatprep.subr.mxu0 0.0
    %4939 = vmatpush1.msra.mxu0 0.0
    %4940 = vmatprep.subr.mxu0 0.0
    %4941 = vmatpush1.msra.mxu0 0.0
    %4942 = vmatprep.subr.mxu0 0.0
    %4943 = vmatpush1.msra.mxu0 0.0
    %4944 = vmatprep.subr.mxu0 0.0
    %4945 = vmatpush1.msra.mxu0 0.0
    %4946 = vmatprep.subr.mxu0 0.0
    %4947 = vmatpush1.msra.mxu0 %v716
    %4948 = vmatprep.subr.mxu0 0.0
    %4949 = vmatpush1.msra.mxu0 %v715
    %4950 = vmatprep.subr.mxu0 0.0
    %4951 = vmatpush1.msra.mxu0 %v714
    %4952 = vmatprep.subr.mxu0 0.0
    %4953 = vmatpush1.msra.mxu0 %v713
    %4954 = vmatprep.subr.mxu0 0.0
    %4955 = vmatpush2.msra.mxu0 0.0
    %4956 = vmatprep.subr.mxu0 0.0
    %4957 = vmatpush2.msra.mxu0 0.0
    %4958 = vmatprep.subr.mxu0 0.0
    %4959 = vmatpush2.msra.mxu0 0.0
    %4960 = vmatprep.subr.mxu0 0.0
    %4961 = vmatpush2.msra.mxu0 0.0
    %4962 = vmatprep.subr.mxu0 0.0
    %4963 = vmatpush2.msra.mxu0 0.0
    %4964 = vmatprep.subr.mxu0 0.0
    %4965 = vmatpush2.msra.mxu0 0.0
    %4966 = vmatprep.subr.mxu0 0.0
    %4967 = vmatpush2.msra.mxu0 0.0
    %4968 = vmatprep.subr.mxu0 0.0
    %4969 = vmatpush2.msra.mxu0 0.0
    %4970 = vmatprep.subr.mxu0 0.0
    %4971 = vmatpush2.msra.mxu0 0.0
    %4972 = vmatprep.subr.mxu0 0.0
    %4973 = vmatpush2.msra.mxu0 0.0
    %4974 = vmatprep.subr.mxu0 0.0
    %4975 = vmatpush2.msra.mxu0 0.0
    %4976 = vmatprep.subr.mxu0 0.0
    %4977 = vmatpush2.msra.mxu0 0.0
    %4978 = vmatprep.subr.mxu0 0.0
    %4979 = vmatpush2.msra.mxu0 0.0
    %4980 = vmatprep.subr.mxu0 0.0
    %4981 = vmatpush2.msra.mxu0 0.0
    %4982 = vmatprep.subr.mxu0 0.0
    %4983 = vmatpush2.msra.mxu0 0.0
    %4984 = vmatprep.subr.mxu0 0.0
    %4985 = vmatpush2.msra.mxu0 0.0
    %4986 = vmatprep.mubr.f32.mxu0 0.0
    %4987 = vmatmul.mubr.f32.gmra.mxu0 %v4920
    %v4988 = vpop.f32.mrf.mxu0
    %v4989 = vadd.f32 0.0, %v4988
    %v4990 = vpop.f32.mrf.mxu0
    %4991 = vdwg.mxu0
    %v4993 = vsel %vm4918, %v1485, 0
    %4995 = vmatprep.subr.mxu0 0.0
    %4996 = vmatpush1.msra.mxu0 0.0
    %4997 = vmatprep.subr.mxu0 0.0
    %4998 = vmatpush1.msra.mxu0 0.0
    %4999 = vmatprep.subr.mxu0 0.0
    %5000 = vmatpush1.msra.mxu0 0.0
    %5001 = vmatprep.subr.mxu0 0.0
    %5002 = vmatpush1.msra.mxu0 0.0
    %5003 = vmatprep.subr.mxu0 0.0
    %5004 = vmatpush1.msra.mxu0 0.0
    %5005 = vmatprep.subr.mxu0 0.0
    %5006 = vmatpush1.msra.mxu0 0.0
    %5007 = vmatprep.subr.mxu0 0.0
    %5008 = vmatpush1.msra.mxu0 0.0
    %5009 = vmatprep.subr.mxu0 0.0
    %5010 = vmatpush1.msra.mxu0 0.0
    %5011 = vmatprep.subr.mxu0 0.0
    %5012 = vmatpush1.msra.mxu0 0.0
    %5013 = vmatprep.subr.mxu0 0.0
    %5014 = vmatpush1.msra.mxu0 0.0
    %5015 = vmatprep.subr.mxu0 0.0
    %5016 = vmatpush1.msra.mxu0 0.0
    %5017 = vmatprep.subr.mxu0 0.0
    %5018 = vmatpush1.msra.mxu0 0.0
    %5019 = vmatprep.subr.mxu0 0.0
    %5020 = vmatpush1.msra.mxu0 %v712
    %5021 = vmatprep.subr.mxu0 0.0
    %5022 = vmatpush1.msra.mxu0 %v711
    %5023 = vmatprep.subr.mxu0 0.0
    %5024 = vmatpush1.msra.mxu0 %v710
    %5025 = vmatprep.subr.mxu0 0.0
    %5026 = vmatpush1.msra.mxu0 %v709
    %5027 = vmatprep.subr.mxu0 0.0
    %5028 = vmatpush2.msra.mxu0 0.0
    %5029 = vmatprep.subr.mxu0 0.0
    %5030 = vmatpush2.msra.mxu0 0.0
    %5031 = vmatprep.subr.mxu0 0.0
    %5032 = vmatpush2.msra.mxu0 0.0
    %5033 = vmatprep.subr.mxu0 0.0
    %5034 = vmatpush2.msra.mxu0 0.0
    %5035 = vmatprep.subr.mxu0 0.0
    %5036 = vmatpush2.msra.mxu0 0.0
    %5037 = vmatprep.subr.mxu0 0.0
    %5038 = vmatpush2.msra.mxu0 0.0
    %5039 = vmatprep.subr.mxu0 0.0
    %5040 = vmatpush2.msra.mxu0 0.0
    %5041 = vmatprep.subr.mxu0 0.0
    %5042 = vmatpush2.msra.mxu0 0.0
    %5043 = vmatprep.subr.mxu0 0.0
    %5044 = vmatpush2.msra.mxu0 0.0
    %5045 = vmatprep.subr.mxu0 0.0
    %5046 = vmatpush2.msra.mxu0 0.0
    %5047 = vmatprep.subr.mxu0 0.0
    %5048 = vmatpush2.msra.mxu0 0.0
    %5049 = vmatprep.subr.mxu0 0.0
    %5050 = vmatpush2.msra.mxu0 0.0
    %5051 = vmatprep.subr.mxu0 0.0
    %5052 = vmatpush2.msra.mxu0 0.0
    %5053 = vmatprep.subr.mxu0 0.0
    %5054 = vmatpush2.msra.mxu0 0.0
    %5055 = vmatprep.subr.mxu0 0.0
    %5056 = vmatpush2.msra.mxu0 0.0
    %5057 = vmatprep.subr.mxu0 0.0
    %5058 = vmatpush2.msra.mxu0 0.0
    %5059 = vmatprep.mubr.f32.mxu0 0.0
    %5060 = vmatmul.mubr.f32.gmra.mxu0 %v4993
    %v5061 = vpop.f32.mrf.mxu0
    %v5062 = vadd.f32 %v4989, %v5061
    %v5063 = vpop.f32.mrf.mxu0
    %5064 = vdwg.mxu0
    %5065 = vrot.lane.b32.xlu0 %v721, 64
    %v5066 = vpop.permute.xlu0 %5065
    %v5068 = vadd.f32 %v5062, %v5066
    %v5069 = vmax.f32 %v5068, 0.0
    %v5070 = vmul.f32 %v5069, %v722
    %vm5071 = vcmask 523264
    %v5072 = vsel %vm5071, %v5070, 0.0
    %5073 = vadd.xlane.f32.xlu0 %v5072
    %v5074 = vpop.xlane.xlu0 %5073
    %v5075 = vadd.f32 %v5074, %v722
    %v5076 = vxor.u32 %v5075, 2147483648
    %v5077 = vmul.f32 %v5076, 1.442695
    %v5078 = vpow.pop %v5077
    %v5079 = vadd.f32 %v5078, 1.0
    %v5080 = vrcp.pop %v5079
    %v5081 = vmul.f32 1.0, %v5080
    %5083 = vset.pattern.permute.xlu0 64
    %5084 = vperm.xlu0 %5083, %v5081
    %v5085 = vpop.permute.xlu0 %5084
    %5087 = vst [vmem:[#allocation10] sm:$0xff] %v5085
    // Predicated region
    $region34: #{tpu_custom_call.1} parent=1 // pred_check
      _
    $region35: #{tpu_custom_call.1} parent=1 // pred_check_branch
      %5089 = sbr.rel (0) target = $region37
    $region36: #{tpu_custom_call.1} parent=1 // pred_region
      %s5091 = ssub.s32 128, 128
      %5092 = vsyncadd [#allocation4], %s5091
      %s5094 = sshll.u32 [#allocation10], 4
      %s5095 = int_to_ptr.vmem [resolvable:$true] %s5094
      %5097 = dma.vmem_to_hbm [thread:$0]  %s5095, 128, %s4, [#allocation4]
    $region37: #{tpu_custom_call.1} parent=1 // pred_fallthru
      _
    // Predicated region
    $region38: #{tpu_custom_call.1} parent=1 // pred_check
      _
    $region39: #{tpu_custom_call.1} parent=1 // pred_check_branch
      %5099 = sbr.rel (0) target = $region41
    $region40: #{tpu_custom_call.1} parent=1 // pred_region
      %5100 = dma.done [#allocation4], 128
    $region41: #{tpu_custom_call.1} parent=1 // pred_fallthru
      _
    %5101 = vsyncpa [#allocation3], 1
    %5102 = vsyncpa [#allocation6], 1
    %5103 = vsyncpa [#allocation9], 1
    %5104 = vsyncpa [#allocation4], 1

</llo_original>
